<compile_context>
chip_gen: v7x
topology: tpu7x:2x2x1
jax: 0.10.0
libtpu: 0.0.40
codegen_flags: <defaults>
</compile_context>

<pallas_src>
import math

import jax
import jax.numpy as jnp
from jax.experimental import pallas as pl
from jax.experimental.pallas import tpu as pltpu  # noqa: F401  (see scaling note above)

# ----- mini-BERT config (stand-in for hidden_size=768, 12 layers, 12 heads) --
B = 2            # batch
S = 8            # sequence length
H = 32           # hidden size
NH = 4           # attention heads
HD = H // NH     # head dim
FF = 4 * H       # FFN intermediate size
L = 2            # encoder layers
VOCAB = 100
NUM_CLASSES = 2
LN_EPS = 1e-12


def _layernorm(x, g, b):
    """LayerNorm over the last axis; sum(x) and sum(x*x) in ONE reduce pass."""
    n = x.shape[0]
    stacked = jnp.concatenate([x, x * x], axis=0)               # (2n, H)
    sums = jnp.sum(stacked, axis=-1, keepdims=True) * (1.0 / H)  # single XLU pass
    mu, ex2 = sums[:n], sums[n:]
    var = jnp.maximum(ex2 - mu * mu, 0.0)
    return (x - mu) * jax.lax.rsqrt(var + LN_EPS) * g + b


# ----------------------------- fused Pallas kernel ----------------------------
def fused_forward_kernel(x_ref, mask_ref, embln_ref, wqkv_ref, bqkv_ref,
                         wo_ref, vecs_ref, w1_ref, b1_ref, w2_ref,
                         fcw_ref, fcb_ref, out_ref):
    """Embedding LN -> L encoder layers -> CLS -> fc -> log_softmax (all B at once)."""
    mask = mask_ref[...]                                          # (B*S, B*S) additive
    x = _layernorm(x_ref[...], embln_ref[0:1, :], embln_ref[1:2, :])   # (B*S, H) f32

    for l in range(L):                 # static unroll; all weights VMEM-resident
        # ---- fused QKV projection: one wide matmul (scale folded into Q) ----
        qkv = (jnp.dot(x.astype(jnp.bfloat16), wqkv_ref[l],
                       preferred_element_type=jnp.float32)
               + bqkv_ref[l])                                     # (B*S, 3H)

        # ---- per-head scores / softmax / context (static lane slices) -------
        ctx_parts = []
        for n in range(NH):
            qn = qkv[:, n * HD:(n + 1) * HD]                      # (B*S, HD)
            kn = qkv[:, H + n * HD:H + (n + 1) * HD]
            vn = qkv[:, 2 * H + n * HD:2 * H + (n + 1) * HD]
            s = jax.lax.dot_general(qn, kn, (((1,), (1,)), ((), ())),
                                    preferred_element_type=jnp.float32) + mask
            s = s - jnp.max(s, axis=-1, keepdims=True)
            p = jnp.exp(s)
            p = p * pl.reciprocal(jnp.sum(p, axis=-1, keepdims=True), approx=True)
            ctx_parts.append(jnp.dot(p, vn, preferred_element_type=jnp.float32))
        ctx = jnp.concatenate(ctx_parts, axis=-1)                 # (B*S, H)

        # ---- single output projection + residual + LN ------------------------
        attn_out = (jnp.dot(ctx.astype(jnp.bfloat16), wo_ref[l],
                            preferred_element_type=jnp.float32)
                    + vecs_ref[l, 0:1, :])
        h1 = _layernorm(x + attn_out, vecs_ref[l, 1:2, :], vecs_ref[l, 2:3, :])

        # ---- FFN -------------------------------------------------------------
        # TODO(synk): BERT uses exact (erf) GELU; tanh-approx GELU used for robust TPU lowering.
        ff = jax.nn.gelu(
            jnp.dot(h1.astype(jnp.bfloat16), w1_ref[l],
                    preferred_element_type=jnp.float32) + b1_ref[l],
            approximate=True)
        ff = (jnp.dot(ff.astype(jnp.bfloat16), w2_ref[l],
                      preferred_element_type=jnp.float32)
              + vecs_ref[l, 3:4, :])
        x = _layernorm(h1 + ff, vecs_ref[l, 4:5, :], vecs_ref[l, 5:6, :])

    # ---- classifier head on CLS rows (nn.Dropout is identity at inference) ---
    cls = jnp.concatenate([x[b * S:b * S + 1, :] for b in range(B)], axis=0)  # (B, H)
    logits = (jnp.dot(cls.astype(jnp.bfloat16), fcw_ref[...],
                      preferred_element_type=jnp.float32) + fcb_ref[...])
    z = logits - jnp.max(logits, axis=-1, keepdims=True)
    lse = jnp.log(jnp.sum(jnp.exp(z), axis=-1, keepdims=True))
    out_ref[...] = z - lse                                        # single store


# ------------------------------ wrapper ----------------------------------------
def neural_net_forward(params, input_ids, input_mask, segment_ids):
    # Plain-JAX glue: embedding gathers (data-dependent), mask construction.
    pos = jnp.arange(S)
    x = (jnp.take(params["word_emb"], input_ids, axis=0)
         + jnp.take(params["type_emb"], segment_ids, axis=0)
         + params["pos_emb"][pos][None, :, :])                    # (B, S, H)
    x = x.reshape(B * S, H)

    # Block-diagonal (per-sequence) + key-padding additive attention mask for
    # the folded (B*S, B*S) score matrix.  Matches BERT's -10000 soft masking.
    key_valid = input_mask.astype(jnp.float32).reshape(-1)        # (B*S,)
    seq_id = jnp.arange(B * S) // S
    same_seq = seq_id[:, None] == seq_id[None, :]
    mask2d = jnp.where(same_seq & (key_valid[None, :] > 0.0), 0.0, -10000.0)

    w = params["packed"]
    out = pl.pallas_call(
        fused_forward_kernel,
        out_shape=jax.ShapeDtypeStruct((B, NUM_CLASSES), jnp.float32),
    )(x, mask2d, w["emb_ln"], w["wqkv"], w["bqkv"], w["wo"], w["vecs"],
      w["w1"], w["b1"], w["w2"], w["fc_w"], w["fc_b"])
    return out


# ------------------------------ parameters -------------------------------------
def pack_params(params):
    """Stack per-layer weights along a leading layer axis, fuse Q/K/V into one
    (L,H,3H) matrix (attention scale folded into Q), concatenate the (1,H)
    bias/LayerNorm vectors into one (L,6,H) array, cast matmul weights to bf16."""
    def stack(name):
        return jnp.stack([lyr[name] for lyr in params["layers"]])

    scale = 1.0 / math.sqrt(HD)
    wqkv = jnp.concatenate([stack("wq") * scale, stack("wk"), stack("wv")],
                           axis=-1)                               # (L, H, 3H)
    bqkv = jnp.concatenate([stack("bq") * scale, stack("bk"), stack("bv")],
                           axis=-1)                               # (L, 1, 3H)
    # rows: 0=bo, 1=ln1g, 2=ln1b, 3=b2, 4=ln2g, 5=ln2b
    vecs = jnp.concatenate([stack("bo"), stack("ln1g"), stack("ln1b"),
                            stack("b2"), stack("ln2g"), stack("ln2b")],
                           axis=1)                                # (L, 6, H)
    bf16 = lambda a: a.astype(jnp.bfloat16)
    return {
        "wqkv": bf16(wqkv), "bqkv": bqkv,
        "wo": bf16(stack("wo")), "vecs": vecs,
        "w1": bf16(stack("w1")), "b1": stack("b1"),
        "w2": bf16(stack("w2")),
        "fc_w": bf16(params["fc_w"]), "fc_b": params["fc_b"],
        "emb_ln": jnp.concatenate([params["emb_ln_g"], params["emb_ln_b"]],
                                  axis=0),                        # (2, H)
    }


def init_params(key):
    std = 0.02
    keys = iter(jax.random.split(key, 4 + 6 * L))

    def nrm(shape):
        return (std * jax.random.normal(next(keys), shape)).astype(jnp.float32)

    layers = []
    for _ in range(L):
        layers.append(dict(
            wq=nrm((H, H)), bq=jnp.zeros((1, H), jnp.float32),
            wk=nrm((H, H)), bk=jnp.zeros((1, H), jnp.float32),
            wv=nrm((H, H)), bv=jnp.zeros((1, H), jnp.float32),
            wo=nrm((H, H)), bo=jnp.zeros((1, H), jnp.float32),
            ln1g=jnp.ones((1, H), jnp.float32), ln1b=jnp.zeros((1, H), jnp.float32),
            w1=nrm((H, FF)), b1=jnp.zeros((1, FF), jnp.float32),
            w2=nrm((FF, H)), b2=jnp.zeros((1, H), jnp.float32),
            ln2g=jnp.ones((1, H), jnp.float32), ln2b=jnp.zeros((1, H), jnp.float32),
        ))

    params = {
        "word_emb": nrm((VOCAB, H)),
        "pos_emb": nrm((S, H)),
        "type_emb": nrm((2, H)),
        "emb_ln_g": jnp.ones((1, H), jnp.float32),
        "emb_ln_b": jnp.zeros((1, H), jnp.float32),
        "fc_w": nrm((H, NUM_CLASSES)),
        "fc_b": jnp.zeros((1, NUM_CLASSES), jnp.float32),
        "layers": layers,
    }
    params["packed"] = pack_params(params)
    return params


if __name__ == "__main__":
    key = jax.random.PRNGKey(0)
    k_param, k_ids, k_seg = jax.random.split(key, 3)

    params = init_params(k_param)
    input_ids = jax.random.randint(k_ids, (B, S), 0, VOCAB, dtype=jnp.int32)
    input_mask = jnp.concatenate(
        [jnp.ones((B, S - 2), jnp.int32), jnp.zeros((B, 2), jnp.int32)], axis=1)
    segment_ids = jax.random.randint(k_seg, (B, S), 0, 2, dtype=jnp.int32)

    out = neural_net_forward(params, input_ids, input_mask, segment_ids)
    out = jax.block_until_ready(out)
    assert out.shape == (B, NUM_CLASSES)
    # log_softmax rows must (exp-)sum to 1.
    assert bool(jnp.allclose(jnp.sum(jnp.exp(out), axis=-1), 1.0, atol=1e-5))
    print("KERNEL_OK")
</pallas_src>

<mosaic_0001>
module attributes {stable_mosaic.version = 11 : i64} {
  func.func @fused_forward_kernel(%arg0: memref<16x32xf32, #tpu.memory_space<vmem>>, %arg1: memref<16x16xf32, #tpu.memory_space<vmem>>, %arg2: memref<2x32xf32, #tpu.memory_space<vmem>>, %arg3: memref<2x32x96xbf16, #tpu.memory_space<vmem>>, %arg4: memref<2x1x96xf32, #tpu.memory_space<vmem>>, %arg5: memref<2x32x32xbf16, #tpu.memory_space<vmem>>, %arg6: memref<2x6x32xf32, #tpu.memory_space<vmem>>, %arg7: memref<2x32x128xbf16, #tpu.memory_space<vmem>>, %arg8: memref<2x1x128xf32, #tpu.memory_space<vmem>>, %arg9: memref<2x128x32xbf16, #tpu.memory_space<vmem>>, %arg10: memref<32x2xbf16, #tpu.memory_space<vmem>>, %arg11: memref<1x2xf32, #tpu.memory_space<vmem>>, %arg12: memref<2x2xf32, #tpu.memory_space<vmem>>) attributes {dimension_semantics = [], scalar_prefetch = 0 : i64, scratch_operands = 0 : i64, tpu.core_type = #tpu.core_type<tc>} {
    %c0 = arith.constant 0 : index
    %c0_0 = arith.constant 0 : index
    %0 = vector.load %arg1[%c0, %c0_0] : memref<16x16xf32, #tpu.memory_space<vmem>>, vector<16x16xf32>
    %c0_1 = arith.constant 0 : index
    %c0_2 = arith.constant 0 : index
    %1 = vector.load %arg0[%c0_1, %c0_2] : memref<16x32xf32, #tpu.memory_space<vmem>>, vector<16x32xf32>
    %c0_3 = arith.constant 0 : index
    %c0_4 = arith.constant 0 : index
    %2 = vector.load %arg2[%c0_3, %c0_4] : memref<2x32xf32, #tpu.memory_space<vmem>>, vector<1x32xf32>
    %c1 = arith.constant 1 : index
    %c0_5 = arith.constant 0 : index
    %3 = vector.load %arg2[%c1, %c0_5] : memref<2x32xf32, #tpu.memory_space<vmem>>, vector<1x32xf32>
    %4 = arith.mulf %1, %1 : vector<16x32xf32>
    %5 = tpu.concatenate %1, %4 in 0 : vector<16x32xf32>, vector<16x32xf32> -> vector<32x32xf32>
    %cst = arith.constant dense<0.000000e+00> : vector<32xf32>
    %6 = vector.multi_reduction <add>, %5, %cst [1] : vector<32x32xf32> to vector<32xf32>
    %7 = vector.shape_cast %6 : vector<32xf32> to vector<32x1xf32>
    %cst_6 = arith.constant 3.125000e-02 : f32
    %8 = vector.broadcast %cst_6 : f32 to vector<32x1xf32>
    %9 = arith.mulf %7, %8 : vector<32x1xf32>
    %10 = vector.extract_strided_slice %9 {offsets = [0, 0], sizes = [16, 1], strides = [1, 1]} : vector<32x1xf32> to vector<16x1xf32>
    %11 = vector.extract_strided_slice %9 {offsets = [16, 0], sizes = [16, 1], strides = [1, 1]} : vector<32x1xf32> to vector<16x1xf32>
    %12 = arith.mulf %10, %10 : vector<16x1xf32>
    %13 = arith.subf %11, %12 : vector<16x1xf32>
    %cst_7 = arith.constant 0.000000e+00 : f32
    %14 = vector.broadcast %cst_7 : f32 to vector<16x1xf32>
    %15 = arith.maximumf %13, %14 : vector<16x1xf32>
    %16 = vector.broadcast %10 : vector<16x1xf32> to vector<16x32xf32>
    %17 = arith.subf %1, %16 : vector<16x32xf32>
    %cst_8 = arith.constant 9.99999996E-13 : f32
    %18 = vector.broadcast %cst_8 : f32 to vector<16x1xf32>
    %19 = arith.addf %15, %18 : vector<16x1xf32>
    %20 = math.rsqrt %19 : vector<16x1xf32>
    %21 = vector.broadcast %20 : vector<16x1xf32> to vector<16x32xf32>
    %22 = arith.mulf %17, %21 : vector<16x32xf32>
    %23 = vector.broadcast %2 : vector<1x32xf32> to vector<16x32xf32>
    %24 = arith.mulf %22, %23 : vector<16x32xf32>
    %25 = vector.broadcast %3 : vector<1x32xf32> to vector<16x32xf32>
    %26 = arith.addf %24, %25 : vector<16x32xf32>
    %27 = arith.truncf %26 : vector<16x32xf32> to vector<16x32xbf16>
    %c0_9 = arith.constant 0 : index
    %c0_10 = arith.constant 0 : index
    %c0_11 = arith.constant 0 : index
    %28 = vector.load %arg3[%c0_9, %c0_10, %c0_11] : memref<2x32x96xbf16, #tpu.memory_space<vmem>>, vector<1x32x96xbf16>
    %29 = vector.shape_cast %28 : vector<1x32x96xbf16> to vector<32x96xbf16>
    %cst_12 = arith.constant dense<0.000000e+00> : vector<16x96xf32>
    %30 = tpu.matmul %27, %29, %cst_12 {dimension_numbers = #tpu.dot_dimension_numbers<[1], [0], [0], [1], [0, 0, 1, 1], [], []>} : vector<16x32xbf16>, vector<32x96xbf16>, vector<16x96xf32> -> vector<16x96xf32>
    %c0_13 = arith.constant 0 : index
    %c0_14 = arith.constant 0 : index
    %c0_15 = arith.constant 0 : index
    %31 = vector.load %arg4[%c0_13, %c0_14, %c0_15] : memref<2x1x96xf32, #tpu.memory_space<vmem>>, vector<1x1x96xf32>
    %32 = vector.shape_cast %31 : vector<1x1x96xf32> to vector<1x96xf32>
    %33 = vector.broadcast %32 : vector<1x96xf32> to vector<16x96xf32>
    %34 = arith.addf %30, %33 : vector<16x96xf32>
    %35 = vector.extract_strided_slice %34 {offsets = [0, 0], sizes = [16, 8], strides = [1, 1]} : vector<16x96xf32> to vector<16x8xf32>
    %36 = vector.extract_strided_slice %34 {offsets = [0, 32], sizes = [16, 8], strides = [1, 1]} : vector<16x96xf32> to vector<16x8xf32>
    %37 = vector.extract_strided_slice %34 {offsets = [0, 64], sizes = [16, 8], strides = [1, 1]} : vector<16x96xf32> to vector<16x8xf32>
    %cst_16 = arith.constant dense<0.000000e+00> : vector<16x16xf32>
    %38 = tpu.matmul %35, %36, %cst_16 {dimension_numbers = #tpu.dot_dimension_numbers<[1], [1], [0], [0], [0, 0, 1, 0], [], []>} : vector<16x8xf32>, vector<16x8xf32>, vector<16x16xf32> -> vector<16x16xf32>
    %39 = arith.addf %38, %0 : vector<16x16xf32>
    %cst_17 = arith.constant dense<0xFF800000> : vector<16xf32>
    %40 = vector.multi_reduction <maximumf>, %39, %cst_17 [1] : vector<16x16xf32> to vector<16xf32>
    %41 = vector.shape_cast %40 : vector<16xf32> to vector<16x1xf32>
    %42 = vector.broadcast %41 : vector<16x1xf32> to vector<16x16xf32>
    %43 = arith.subf %39, %42 : vector<16x16xf32>
    %44 = math.exp %43 : vector<16x16xf32>
    %cst_18 = arith.constant dense<0.000000e+00> : vector<16xf32>
    %45 = vector.multi_reduction <add>, %44, %cst_18 [1] : vector<16x16xf32> to vector<16xf32>
    %46 = vector.shape_cast %45 : vector<16xf32> to vector<16x1xf32>
    %47 = tpu.reciprocal %46 {approx = true} : vector<16x1xf32> -> vector<16x1xf32>
    %48 = vector.broadcast %47 : vector<16x1xf32> to vector<16x16xf32>
    %49 = arith.mulf %44, %48 : vector<16x16xf32>
    %cst_19 = arith.constant dense<0.000000e+00> : vector<16x8xf32>
    %50 = tpu.matmul %49, %37, %cst_19 {dimension_numbers = #tpu.dot_dimension_numbers<[1], [0], [0], [1], [0, 0, 1, 1], [], []>} : vector<16x16xf32>, vector<16x8xf32>, vector<16x8xf32> -> vector<16x8xf32>
    %51 = vector.extract_strided_slice %34 {offsets = [0, 8], sizes = [16, 8], strides = [1, 1]} : vector<16x96xf32> to vector<16x8xf32>
    %52 = vector.extract_strided_slice %34 {offsets = [0, 40], sizes = [16, 8], strides = [1, 1]} : vector<16x96xf32> to vector<16x8xf32>
    %53 = vector.extract_strided_slice %34 {offsets = [0, 72], sizes = [16, 8], strides = [1, 1]} : vector<16x96xf32> to vector<16x8xf32>
    %cst_20 = arith.constant dense<0.000000e+00> : vector<16x16xf32>
    %54 = tpu.matmul %51, %52, %cst_20 {dimension_numbers = #tpu.dot_dimension_numbers<[1], [1], [0], [0], [0, 0, 1, 0], [], []>} : vector<16x8xf32>, vector<16x8xf32>, vector<16x16xf32> -> vector<16x16xf32>
    %55 = arith.addf %54, %0 : vector<16x16xf32>
    %cst_21 = arith.constant dense<0xFF800000> : vector<16xf32>
    %56 = vector.multi_reduction <maximumf>, %55, %cst_21 [1] : vector<16x16xf32> to vector<16xf32>
    %57 = vector.shape_cast %56 : vector<16xf32> to vector<16x1xf32>
    %58 = vector.broadcast %57 : vector<16x1xf32> to vector<16x16xf32>
    %59 = arith.subf %55, %58 : vector<16x16xf32>
    %60 = math.exp %59 : vector<16x16xf32>
    %cst_22 = arith.constant dense<0.000000e+00> : vector<16xf32>
    %61 = vector.multi_reduction <add>, %60, %cst_22 [1] : vector<16x16xf32> to vector<16xf32>
    %62 = vector.shape_cast %61 : vector<16xf32> to vector<16x1xf32>
    %63 = tpu.reciprocal %62 {approx = true} : vector<16x1xf32> -> vector<16x1xf32>
    %64 = vector.broadcast %63 : vector<16x1xf32> to vector<16x16xf32>
    %65 = arith.mulf %60, %64 : vector<16x16xf32>
    %cst_23 = arith.constant dense<0.000000e+00> : vector<16x8xf32>
    %66 = tpu.matmul %65, %53, %cst_23 {dimension_numbers = #tpu.dot_dimension_numbers<[1], [0], [0], [1], [0, 0, 1, 1], [], []>} : vector<16x16xf32>, vector<16x8xf32>, vector<16x8xf32> -> vector<16x8xf32>
    %67 = vector.extract_strided_slice %34 {offsets = [0, 16], sizes = [16, 8], strides = [1, 1]} : vector<16x96xf32> to vector<16x8xf32>
    %68 = vector.extract_strided_slice %34 {offsets = [0, 48], sizes = [16, 8], strides = [1, 1]} : vector<16x96xf32> to vector<16x8xf32>
    %69 = vector.extract_strided_slice %34 {offsets = [0, 80], sizes = [16, 8], strides = [1, 1]} : vector<16x96xf32> to vector<16x8xf32>
    %cst_24 = arith.constant dense<0.000000e+00> : vector<16x16xf32>
    %70 = tpu.matmul %67, %68, %cst_24 {dimension_numbers = #tpu.dot_dimension_numbers<[1], [1], [0], [0], [0, 0, 1, 0], [], []>} : vector<16x8xf32>, vector<16x8xf32>, vector<16x16xf32> -> vector<16x16xf32>
    %71 = arith.addf %70, %0 : vector<16x16xf32>
    %cst_25 = arith.constant dense<0xFF800000> : vector<16xf32>
    %72 = vector.multi_reduction <maximumf>, %71, %cst_25 [1] : vector<16x16xf32> to vector<16xf32>
    %73 = vector.shape_cast %72 : vector<16xf32> to vector<16x1xf32>
    %74 = vector.broadcast %73 : vector<16x1xf32> to vector<16x16xf32>
    %75 = arith.subf %71, %74 : vector<16x16xf32>
    %76 = math.exp %75 : vector<16x16xf32>
    %cst_26 = arith.constant dense<0.000000e+00> : vector<16xf32>
    %77 = vector.multi_reduction <add>, %76, %cst_26 [1] : vector<16x16xf32> to vector<16xf32>
    %78 = vector.shape_cast %77 : vector<16xf32> to vector<16x1xf32>
    %79 = tpu.reciprocal %78 {approx = true} : vector<16x1xf32> -> vector<16x1xf32>
    %80 = vector.broadcast %79 : vector<16x1xf32> to vector<16x16xf32>
    %81 = arith.mulf %76, %80 : vector<16x16xf32>
    %cst_27 = arith.constant dense<0.000000e+00> : vector<16x8xf32>
    %82 = tpu.matmul %81, %69, %cst_27 {dimension_numbers = #tpu.dot_dimension_numbers<[1], [0], [0], [1], [0, 0, 1, 1], [], []>} : vector<16x16xf32>, vector<16x8xf32>, vector<16x8xf32> -> vector<16x8xf32>
    %83 = vector.extract_strided_slice %34 {offsets = [0, 24], sizes = [16, 8], strides = [1, 1]} : vector<16x96xf32> to vector<16x8xf32>
    %84 = vector.extract_strided_slice %34 {offsets = [0, 56], sizes = [16, 8], strides = [1, 1]} : vector<16x96xf32> to vector<16x8xf32>
    %85 = vector.extract_strided_slice %34 {offsets = [0, 88], sizes = [16, 8], strides = [1, 1]} : vector<16x96xf32> to vector<16x8xf32>
    %cst_28 = arith.constant dense<0.000000e+00> : vector<16x16xf32>
    %86 = tpu.matmul %83, %84, %cst_28 {dimension_numbers = #tpu.dot_dimension_numbers<[1], [1], [0], [0], [0, 0, 1, 0], [], []>} : vector<16x8xf32>, vector<16x8xf32>, vector<16x16xf32> -> vector<16x16xf32>
    %87 = arith.addf %86, %0 : vector<16x16xf32>
    %cst_29 = arith.constant dense<0xFF800000> : vector<16xf32>
    %88 = vector.multi_reduction <maximumf>, %87, %cst_29 [1] : vector<16x16xf32> to vector<16xf32>
    %89 = vector.shape_cast %88 : vector<16xf32> to vector<16x1xf32>
    %90 = vector.broadcast %89 : vector<16x1xf32> to vector<16x16xf32>
    %91 = arith.subf %87, %90 : vector<16x16xf32>
    %92 = math.exp %91 : vector<16x16xf32>
    %cst_30 = arith.constant dense<0.000000e+00> : vector<16xf32>
    %93 = vector.multi_reduction <add>, %92, %cst_30 [1] : vector<16x16xf32> to vector<16xf32>
    %94 = vector.shape_cast %93 : vector<16xf32> to vector<16x1xf32>
    %95 = tpu.reciprocal %94 {approx = true} : vector<16x1xf32> -> vector<16x1xf32>
    %96 = vector.broadcast %95 : vector<16x1xf32> to vector<16x16xf32>
    %97 = arith.mulf %92, %96 : vector<16x16xf32>
    %cst_31 = arith.constant dense<0.000000e+00> : vector<16x8xf32>
    %98 = tpu.matmul %97, %85, %cst_31 {dimension_numbers = #tpu.dot_dimension_numbers<[1], [0], [0], [1], [0, 0, 1, 1], [], []>} : vector<16x16xf32>, vector<16x8xf32>, vector<16x8xf32> -> vector<16x8xf32>
    %99 = tpu.concatenate %50, %66, %82, %98 in 1 : vector<16x8xf32>, vector<16x8xf32>, vector<16x8xf32>, vector<16x8xf32> -> vector<16x32xf32>
    %100 = arith.truncf %99 : vector<16x32xf32> to vector<16x32xbf16>
    %c0_32 = arith.constant 0 : index
    %c0_33 = arith.constant 0 : index
    %c0_34 = arith.constant 0 : index
    %101 = vector.load %arg5[%c0_32, %c0_33, %c0_34] : memref<2x32x32xbf16, #tpu.memory_space<vmem>>, vector<1x32x32xbf16>
    %102 = vector.shape_cast %101 : vector<1x32x32xbf16> to vector<32x32xbf16>
    %cst_35 = arith.constant dense<0.000000e+00> : vector<16x32xf32>
    %103 = tpu.matmul %100, %102, %cst_35 {dimension_numbers = #tpu.dot_dimension_numbers<[1], [0], [0], [1], [0, 0, 1, 1], [], []>} : vector<16x32xbf16>, vector<32x32xbf16>, vector<16x32xf32> -> vector<16x32xf32>
    %c0_36 = arith.constant 0 : index
    %c0_37 = arith.constant 0 : index
    %c0_38 = arith.constant 0 : index
    %104 = vector.load %arg6[%c0_36, %c0_37, %c0_38] : memref<2x6x32xf32, #tpu.memory_space<vmem>>, vector<1x1x32xf32>
    %105 = vector.shape_cast %104 : vector<1x1x32xf32> to vector<1x32xf32>
    %106 = vector.broadcast %105 : vector<1x32xf32> to vector<16x32xf32>
    %107 = arith.addf %103, %106 : vector<16x32xf32>
    %108 = arith.addf %26, %107 : vector<16x32xf32>
    %c0_39 = arith.constant 0 : index
    %c1_40 = arith.constant 1 : index
    %c0_41 = arith.constant 0 : index
    %109 = vector.load %arg6[%c0_39, %c1_40, %c0_41] : memref<2x6x32xf32, #tpu.memory_space<vmem>>, vector<1x1x32xf32>
    %110 = vector.shape_cast %109 : vector<1x1x32xf32> to vector<1x32xf32>
    %c0_42 = arith.constant 0 : index
    %c2 = arith.constant 2 : index
    %c0_43 = arith.constant 0 : index
    %111 = vector.load %arg6[%c0_42, %c2, %c0_43] : memref<2x6x32xf32, #tpu.memory_space<vmem>>, vector<1x1x32xf32>
    %112 = vector.shape_cast %111 : vector<1x1x32xf32> to vector<1x32xf32>
    %113 = arith.mulf %108, %108 : vector<16x32xf32>
    %114 = tpu.concatenate %108, %113 in 0 : vector<16x32xf32>, vector<16x32xf32> -> vector<32x32xf32>
    %cst_44 = arith.constant dense<0.000000e+00> : vector<32xf32>
    %115 = vector.multi_reduction <add>, %114, %cst_44 [1] : vector<32x32xf32> to vector<32xf32>
    %116 = vector.shape_cast %115 : vector<32xf32> to vector<32x1xf32>
    %cst_45 = arith.constant 3.125000e-02 : f32
    %117 = vector.broadcast %cst_45 : f32 to vector<32x1xf32>
    %118 = arith.mulf %116, %117 : vector<32x1xf32>
    %119 = vector.extract_strided_slice %118 {offsets = [0, 0], sizes = [16, 1], strides = [1, 1]} : vector<32x1xf32> to vector<16x1xf32>
    %120 = vector.extract_strided_slice %118 {offsets = [16, 0], sizes = [16, 1], strides = [1, 1]} : vector<32x1xf32> to vector<16x1xf32>
    %121 = arith.mulf %119, %119 : vector<16x1xf32>
    %122 = arith.subf %120, %121 : vector<16x1xf32>
    %cst_46 = arith.constant 0.000000e+00 : f32
    %123 = vector.broadcast %cst_46 : f32 to vector<16x1xf32>
    %124 = arith.maximumf %122, %123 : vector<16x1xf32>
    %125 = vector.broadcast %119 : vector<16x1xf32> to vector<16x32xf32>
    %126 = arith.subf %108, %125 : vector<16x32xf32>
    %cst_47 = arith.constant 9.99999996E-13 : f32
    %127 = vector.broadcast %cst_47 : f32 to vector<16x1xf32>
    %128 = arith.addf %124, %127 : vector<16x1xf32>
    %129 = math.rsqrt %128 : vector<16x1xf32>
    %130 = vector.broadcast %129 : vector<16x1xf32> to vector<16x32xf32>
    %131 = arith.mulf %126, %130 : vector<16x32xf32>
    %132 = vector.broadcast %110 : vector<1x32xf32> to vector<16x32xf32>
    %133 = arith.mulf %131, %132 : vector<16x32xf32>
    %134 = vector.broadcast %112 : vector<1x32xf32> to vector<16x32xf32>
    %135 = arith.addf %133, %134 : vector<16x32xf32>
    %136 = arith.truncf %135 : vector<16x32xf32> to vector<16x32xbf16>
    %c0_48 = arith.constant 0 : index
    %c0_49 = arith.constant 0 : index
    %c0_50 = arith.constant 0 : index
    %137 = vector.load %arg7[%c0_48, %c0_49, %c0_50] : memref<2x32x128xbf16, #tpu.memory_space<vmem>>, vector<1x32x128xbf16>
    %138 = vector.shape_cast %137 : vector<1x32x128xbf16> to vector<32x128xbf16>
    %cst_51 = arith.constant dense<0.000000e+00> : vector<16x128xf32>
    %139 = tpu.matmul %136, %138, %cst_51 {dimension_numbers = #tpu.dot_dimension_numbers<[1], [0], [0], [1], [0, 0, 1, 1], [], []>} : vector<16x32xbf16>, vector<32x128xbf16>, vector<16x128xf32> -> vector<16x128xf32>
    %c0_52 = arith.constant 0 : index
    %c0_53 = arith.constant 0 : index
    %c0_54 = arith.constant 0 : index
    %140 = vector.load %arg8[%c0_52, %c0_53, %c0_54] : memref<2x1x128xf32, #tpu.memory_space<vmem>>, vector<1x1x128xf32>
    %141 = vector.shape_cast %140 : vector<1x1x128xf32> to vector<1x128xf32>
    %142 = vector.broadcast %141 : vector<1x128xf32> to vector<16x128xf32>
    %143 = arith.addf %139, %142 : vector<16x128xf32>
    %144 = arith.mulf %143, %143 : vector<16x128xf32>
    %145 = arith.mulf %143, %144 : vector<16x128xf32>
    %cst_55 = arith.constant 4.471500e-02 : f32
    %146 = vector.broadcast %cst_55 : f32 to vector<16x128xf32>
    %147 = arith.mulf %146, %145 : vector<16x128xf32>
    %148 = arith.addf %143, %147 : vector<16x128xf32>
    %cst_56 = arith.constant 0.797884583 : f32
    %149 = vector.broadcast %cst_56 : f32 to vector<16x128xf32>
    %150 = arith.mulf %149, %148 : vector<16x128xf32>
    %151 = math.tanh %150 : vector<16x128xf32>
    %cst_57 = arith.constant 1.000000e+00 : f32
    %152 = vector.broadcast %cst_57 : f32 to vector<16x128xf32>
    %153 = arith.addf %152, %151 : vector<16x128xf32>
    %cst_58 = arith.constant 5.000000e-01 : f32
    %154 = vector.broadcast %cst_58 : f32 to vector<16x128xf32>
    %155 = arith.mulf %154, %153 : vector<16x128xf32>
    %156 = arith.mulf %143, %155 : vector<16x128xf32>
    %157 = arith.truncf %156 : vector<16x128xf32> to vector<16x128xbf16>
    %c0_59 = arith.constant 0 : index
    %c0_60 = arith.constant 0 : index
    %c0_61 = arith.constant 0 : index
    %158 = vector.load %arg9[%c0_59, %c0_60, %c0_61] : memref<2x128x32xbf16, #tpu.memory_space<vmem>>, vector<1x128x32xbf16>
    %159 = vector.shape_cast %158 : vector<1x128x32xbf16> to vector<128x32xbf16>
    %cst_62 = arith.constant dense<0.000000e+00> : vector<16x32xf32>
    %160 = tpu.matmul %157, %159, %cst_62 {dimension_numbers = #tpu.dot_dimension_numbers<[1], [0], [0], [1], [0, 0, 1, 1], [], []>} : vector<16x128xbf16>, vector<128x32xbf16>, vector<16x32xf32> -> vector<16x32xf32>
    %c0_63 = arith.constant 0 : index
    %c3 = arith.constant 3 : index
    %c0_64 = arith.constant 0 : index
    %161 = vector.load %arg6[%c0_63, %c3, %c0_64] : memref<2x6x32xf32, #tpu.memory_space<vmem>>, vector<1x1x32xf32>
    %162 = vector.shape_cast %161 : vector<1x1x32xf32> to vector<1x32xf32>
    %163 = vector.broadcast %162 : vector<1x32xf32> to vector<16x32xf32>
    %164 = arith.addf %160, %163 : vector<16x32xf32>
    %165 = arith.addf %135, %164 : vector<16x32xf32>
    %c0_65 = arith.constant 0 : index
    %c4 = arith.constant 4 : index
    %c0_66 = arith.constant 0 : index
    %166 = vector.load %arg6[%c0_65, %c4, %c0_66] : memref<2x6x32xf32, #tpu.memory_space<vmem>>, vector<1x1x32xf32>
    %167 = vector.shape_cast %166 : vector<1x1x32xf32> to vector<1x32xf32>
    %c0_67 = arith.constant 0 : index
    %c5 = arith.constant 5 : index
    %c0_68 = arith.constant 0 : index
    %168 = vector.load %arg6[%c0_67, %c5, %c0_68] : memref<2x6x32xf32, #tpu.memory_space<vmem>>, vector<1x1x32xf32>
    %169 = vector.shape_cast %168 : vector<1x1x32xf32> to vector<1x32xf32>
    %170 = arith.mulf %165, %165 : vector<16x32xf32>
    %171 = tpu.concatenate %165, %170 in 0 : vector<16x32xf32>, vector<16x32xf32> -> vector<32x32xf32>
    %cst_69 = arith.constant dense<0.000000e+00> : vector<32xf32>
    %172 = vector.multi_reduction <add>, %171, %cst_69 [1] : vector<32x32xf32> to vector<32xf32>
    %173 = vector.shape_cast %172 : vector<32xf32> to vector<32x1xf32>
    %cst_70 = arith.constant 3.125000e-02 : f32
    %174 = vector.broadcast %cst_70 : f32 to vector<32x1xf32>
    %175 = arith.mulf %173, %174 : vector<32x1xf32>
    %176 = vector.extract_strided_slice %175 {offsets = [0, 0], sizes = [16, 1], strides = [1, 1]} : vector<32x1xf32> to vector<16x1xf32>
    %177 = vector.extract_strided_slice %175 {offsets = [16, 0], sizes = [16, 1], strides = [1, 1]} : vector<32x1xf32> to vector<16x1xf32>
    %178 = arith.mulf %176, %176 : vector<16x1xf32>
    %179 = arith.subf %177, %178 : vector<16x1xf32>
    %cst_71 = arith.constant 0.000000e+00 : f32
    %180 = vector.broadcast %cst_71 : f32 to vector<16x1xf32>
    %181 = arith.maximumf %179, %180 : vector<16x1xf32>
    %182 = vector.broadcast %176 : vector<16x1xf32> to vector<16x32xf32>
    %183 = arith.subf %165, %182 : vector<16x32xf32>
    %cst_72 = arith.constant 9.99999996E-13 : f32
    %184 = vector.broadcast %cst_72 : f32 to vector<16x1xf32>
    %185 = arith.addf %181, %184 : vector<16x1xf32>
    %186 = math.rsqrt %185 : vector<16x1xf32>
    %187 = vector.broadcast %186 : vector<16x1xf32> to vector<16x32xf32>
    %188 = arith.mulf %183, %187 : vector<16x32xf32>
    %189 = vector.broadcast %167 : vector<1x32xf32> to vector<16x32xf32>
    %190 = arith.mulf %188, %189 : vector<16x32xf32>
    %191 = vector.broadcast %169 : vector<1x32xf32> to vector<16x32xf32>
    %192 = arith.addf %190, %191 : vector<16x32xf32>
    %193 = arith.truncf %192 : vector<16x32xf32> to vector<16x32xbf16>
    %c1_73 = arith.constant 1 : index
    %c0_74 = arith.constant 0 : index
    %c0_75 = arith.constant 0 : index
    %194 = vector.load %arg3[%c1_73, %c0_74, %c0_75] : memref<2x32x96xbf16, #tpu.memory_space<vmem>>, vector<1x32x96xbf16>
    %195 = vector.shape_cast %194 : vector<1x32x96xbf16> to vector<32x96xbf16>
    %cst_76 = arith.constant dense<0.000000e+00> : vector<16x96xf32>
    %196 = tpu.matmul %193, %195, %cst_76 {dimension_numbers = #tpu.dot_dimension_numbers<[1], [0], [0], [1], [0, 0, 1, 1], [], []>} : vector<16x32xbf16>, vector<32x96xbf16>, vector<16x96xf32> -> vector<16x96xf32>
    %c1_77 = arith.constant 1 : index
    %c0_78 = arith.constant 0 : index
    %c0_79 = arith.constant 0 : index
    %197 = vector.load %arg4[%c1_77, %c0_78, %c0_79] : memref<2x1x96xf32, #tpu.memory_space<vmem>>, vector<1x1x96xf32>
    %198 = vector.shape_cast %197 : vector<1x1x96xf32> to vector<1x96xf32>
    %199 = vector.broadcast %198 : vector<1x96xf32> to vector<16x96xf32>
    %200 = arith.addf %196, %199 : vector<16x96xf32>
    %201 = vector.extract_strided_slice %200 {offsets = [0, 0], sizes = [16, 8], strides = [1, 1]} : vector<16x96xf32> to vector<16x8xf32>
    %202 = vector.extract_strided_slice %200 {offsets = [0, 32], sizes = [16, 8], strides = [1, 1]} : vector<16x96xf32> to vector<16x8xf32>
    %203 = vector.extract_strided_slice %200 {offsets = [0, 64], sizes = [16, 8], strides = [1, 1]} : vector<16x96xf32> to vector<16x8xf32>
    %cst_80 = arith.constant dense<0.000000e+00> : vector<16x16xf32>
    %204 = tpu.matmul %201, %202, %cst_80 {dimension_numbers = #tpu.dot_dimension_numbers<[1], [1], [0], [0], [0, 0, 1, 0], [], []>} : vector<16x8xf32>, vector<16x8xf32>, vector<16x16xf32> -> vector<16x16xf32>
    %205 = arith.addf %204, %0 : vector<16x16xf32>
    %cst_81 = arith.constant dense<0xFF800000> : vector<16xf32>
    %206 = vector.multi_reduction <maximumf>, %205, %cst_81 [1] : vector<16x16xf32> to vector<16xf32>
    %207 = vector.shape_cast %206 : vector<16xf32> to vector<16x1xf32>
    %208 = vector.broadcast %207 : vector<16x1xf32> to vector<16x16xf32>
    %209 = arith.subf %205, %208 : vector<16x16xf32>
    %210 = math.exp %209 : vector<16x16xf32>
    %cst_82 = arith.constant dense<0.000000e+00> : vector<16xf32>
    %211 = vector.multi_reduction <add>, %210, %cst_82 [1] : vector<16x16xf32> to vector<16xf32>
    %212 = vector.shape_cast %211 : vector<16xf32> to vector<16x1xf32>
    %213 = tpu.reciprocal %212 {approx = true} : vector<16x1xf32> -> vector<16x1xf32>
    %214 = vector.broadcast %213 : vector<16x1xf32> to vector<16x16xf32>
    %215 = arith.mulf %210, %214 : vector<16x16xf32>
    %cst_83 = arith.constant dense<0.000000e+00> : vector<16x8xf32>
    %216 = tpu.matmul %215, %203, %cst_83 {dimension_numbers = #tpu.dot_dimension_numbers<[1], [0], [0], [1], [0, 0, 1, 1], [], []>} : vector<16x16xf32>, vector<16x8xf32>, vector<16x8xf32> -> vector<16x8xf32>
    %217 = vector.extract_strided_slice %200 {offsets = [0, 8], sizes = [16, 8], strides = [1, 1]} : vector<16x96xf32> to vector<16x8xf32>
    %218 = vector.extract_strided_slice %200 {offsets = [0, 40], sizes = [16, 8], strides = [1, 1]} : vector<16x96xf32> to vector<16x8xf32>
    %219 = vector.extract_strided_slice %200 {offsets = [0, 72], sizes = [16, 8], strides = [1, 1]} : vector<16x96xf32> to vector<16x8xf32>
    %cst_84 = arith.constant dense<0.000000e+00> : vector<16x16xf32>
    %220 = tpu.matmul %217, %218, %cst_84 {dimension_numbers = #tpu.dot_dimension_numbers<[1], [1], [0], [0], [0, 0, 1, 0], [], []>} : vector<16x8xf32>, vector<16x8xf32>, vector<16x16xf32> -> vector<16x16xf32>
    %221 = arith.addf %220, %0 : vector<16x16xf32>
    %cst_85 = arith.constant dense<0xFF800000> : vector<16xf32>
    %222 = vector.multi_reduction <maximumf>, %221, %cst_85 [1] : vector<16x16xf32> to vector<16xf32>
    %223 = vector.shape_cast %222 : vector<16xf32> to vector<16x1xf32>
    %224 = vector.broadcast %223 : vector<16x1xf32> to vector<16x16xf32>
    %225 = arith.subf %221, %224 : vector<16x16xf32>
    %226 = math.exp %225 : vector<16x16xf32>
    %cst_86 = arith.constant dense<0.000000e+00> : vector<16xf32>
    %227 = vector.multi_reduction <add>, %226, %cst_86 [1] : vector<16x16xf32> to vector<16xf32>
    %228 = vector.shape_cast %227 : vector<16xf32> to vector<16x1xf32>
    %229 = tpu.reciprocal %228 {approx = true} : vector<16x1xf32> -> vector<16x1xf32>
    %230 = vector.broadcast %229 : vector<16x1xf32> to vector<16x16xf32>
    %231 = arith.mulf %226, %230 : vector<16x16xf32>
    %cst_87 = arith.constant dense<0.000000e+00> : vector<16x8xf32>
    %232 = tpu.matmul %231, %219, %cst_87 {dimension_numbers = #tpu.dot_dimension_numbers<[1], [0], [0], [1], [0, 0, 1, 1], [], []>} : vector<16x16xf32>, vector<16x8xf32>, vector<16x8xf32> -> vector<16x8xf32>
    %233 = vector.extract_strided_slice %200 {offsets = [0, 16], sizes = [16, 8], strides = [1, 1]} : vector<16x96xf32> to vector<16x8xf32>
    %234 = vector.extract_strided_slice %200 {offsets = [0, 48], sizes = [16, 8], strides = [1, 1]} : vector<16x96xf32> to vector<16x8xf32>
    %235 = vector.extract_strided_slice %200 {offsets = [0, 80], sizes = [16, 8], strides = [1, 1]} : vector<16x96xf32> to vector<16x8xf32>
    %cst_88 = arith.constant dense<0.000000e+00> : vector<16x16xf32>
    %236 = tpu.matmul %233, %234, %cst_88 {dimension_numbers = #tpu.dot_dimension_numbers<[1], [1], [0], [0], [0, 0, 1, 0], [], []>} : vector<16x8xf32>, vector<16x8xf32>, vector<16x16xf32> -> vector<16x16xf32>
    %237 = arith.addf %236, %0 : vector<16x16xf32>
    %cst_89 = arith.constant dense<0xFF800000> : vector<16xf32>
    %238 = vector.multi_reduction <maximumf>, %237, %cst_89 [1] : vector<16x16xf32> to vector<16xf32>
    %239 = vector.shape_cast %238 : vector<16xf32> to vector<16x1xf32>
    %240 = vector.broadcast %239 : vector<16x1xf32> to vector<16x16xf32>
    %241 = arith.subf %237, %240 : vector<16x16xf32>
    %242 = math.exp %241 : vector<16x16xf32>
    %cst_90 = arith.constant dense<0.000000e+00> : vector<16xf32>
    %243 = vector.multi_reduction <add>, %242, %cst_90 [1] : vector<16x16xf32> to vector<16xf32>
    %244 = vector.shape_cast %243 : vector<16xf32> to vector<16x1xf32>
    %245 = tpu.reciprocal %244 {approx = true} : vector<16x1xf32> -> vector<16x1xf32>
    %246 = vector.broadcast %245 : vector<16x1xf32> to vector<16x16xf32>
    %247 = arith.mulf %242, %246 : vector<16x16xf32>
    %cst_91 = arith.constant dense<0.000000e+00> : vector<16x8xf32>
    %248 = tpu.matmul %247, %235, %cst_91 {dimension_numbers = #tpu.dot_dimension_numbers<[1], [0], [0], [1], [0, 0, 1, 1], [], []>} : vector<16x16xf32>, vector<16x8xf32>, vector<16x8xf32> -> vector<16x8xf32>
    %249 = vector.extract_strided_slice %200 {offsets = [0, 24], sizes = [16, 8], strides = [1, 1]} : vector<16x96xf32> to vector<16x8xf32>
    %250 = vector.extract_strided_slice %200 {offsets = [0, 56], sizes = [16, 8], strides = [1, 1]} : vector<16x96xf32> to vector<16x8xf32>
    %251 = vector.extract_strided_slice %200 {offsets = [0, 88], sizes = [16, 8], strides = [1, 1]} : vector<16x96xf32> to vector<16x8xf32>
    %cst_92 = arith.constant dense<0.000000e+00> : vector<16x16xf32>
    %252 = tpu.matmul %249, %250, %cst_92 {dimension_numbers = #tpu.dot_dimension_numbers<[1], [1], [0], [0], [0, 0, 1, 0], [], []>} : vector<16x8xf32>, vector<16x8xf32>, vector<16x16xf32> -> vector<16x16xf32>
    %253 = arith.addf %252, %0 : vector<16x16xf32>
    %cst_93 = arith.constant dense<0xFF800000> : vector<16xf32>
    %254 = vector.multi_reduction <maximumf>, %253, %cst_93 [1] : vector<16x16xf32> to vector<16xf32>
    %255 = vector.shape_cast %254 : vector<16xf32> to vector<16x1xf32>
    %256 = vector.broadcast %255 : vector<16x1xf32> to vector<16x16xf32>
    %257 = arith.subf %253, %256 : vector<16x16xf32>
    %258 = math.exp %257 : vector<16x16xf32>
    %cst_94 = arith.constant dense<0.000000e+00> : vector<16xf32>
    %259 = vector.multi_reduction <add>, %258, %cst_94 [1] : vector<16x16xf32> to vector<16xf32>
    %260 = vector.shape_cast %259 : vector<16xf32> to vector<16x1xf32>
    %261 = tpu.reciprocal %260 {approx = true} : vector<16x1xf32> -> vector<16x1xf32>
    %262 = vector.broadcast %261 : vector<16x1xf32> to vector<16x16xf32>
    %263 = arith.mulf %258, %262 : vector<16x16xf32>
    %cst_95 = arith.constant dense<0.000000e+00> : vector<16x8xf32>
    %264 = tpu.matmul %263, %251, %cst_95 {dimension_numbers = #tpu.dot_dimension_numbers<[1], [0], [0], [1], [0, 0, 1, 1], [], []>} : vector<16x16xf32>, vector<16x8xf32>, vector<16x8xf32> -> vector<16x8xf32>
    %265 = tpu.concatenate %216, %232, %248, %264 in 1 : vector<16x8xf32>, vector<16x8xf32>, vector<16x8xf32>, vector<16x8xf32> -> vector<16x32xf32>
    %266 = arith.truncf %265 : vector<16x32xf32> to vector<16x32xbf16>
    %c1_96 = arith.constant 1 : index
    %c0_97 = arith.constant 0 : index
    %c0_98 = arith.constant 0 : index
    %267 = vector.load %arg5[%c1_96, %c0_97, %c0_98] : memref<2x32x32xbf16, #tpu.memory_space<vmem>>, vector<1x32x32xbf16>
    %268 = vector.shape_cast %267 : vector<1x32x32xbf16> to vector<32x32xbf16>
    %cst_99 = arith.constant dense<0.000000e+00> : vector<16x32xf32>
    %269 = tpu.matmul %266, %268, %cst_99 {dimension_numbers = #tpu.dot_dimension_numbers<[1], [0], [0], [1], [0, 0, 1, 1], [], []>} : vector<16x32xbf16>, vector<32x32xbf16>, vector<16x32xf32> -> vector<16x32xf32>
    %c1_100 = arith.constant 1 : index
    %c0_101 = arith.constant 0 : index
    %c0_102 = arith.constant 0 : index
    %270 = vector.load %arg6[%c1_100, %c0_101, %c0_102] : memref<2x6x32xf32, #tpu.memory_space<vmem>>, vector<1x1x32xf32>
    %271 = vector.shape_cast %270 : vector<1x1x32xf32> to vector<1x32xf32>
    %272 = vector.broadcast %271 : vector<1x32xf32> to vector<16x32xf32>
    %273 = arith.addf %269, %272 : vector<16x32xf32>
    %274 = arith.addf %192, %273 : vector<16x32xf32>
    %c1_103 = arith.constant 1 : index
    %c1_104 = arith.constant 1 : index
    %c0_105 = arith.constant 0 : index
    %275 = vector.load %arg6[%c1_103, %c1_104, %c0_105] : memref<2x6x32xf32, #tpu.memory_space<vmem>>, vector<1x1x32xf32>
    %276 = vector.shape_cast %275 : vector<1x1x32xf32> to vector<1x32xf32>
    %c1_106 = arith.constant 1 : index
    %c2_107 = arith.constant 2 : index
    %c0_108 = arith.constant 0 : index
    %277 = vector.load %arg6[%c1_106, %c2_107, %c0_108] : memref<2x6x32xf32, #tpu.memory_space<vmem>>, vector<1x1x32xf32>
    %278 = vector.shape_cast %277 : vector<1x1x32xf32> to vector<1x32xf32>
    %279 = arith.mulf %274, %274 : vector<16x32xf32>
    %280 = tpu.concatenate %274, %279 in 0 : vector<16x32xf32>, vector<16x32xf32> -> vector<32x32xf32>
    %cst_109 = arith.constant dense<0.000000e+00> : vector<32xf32>
    %281 = vector.multi_reduction <add>, %280, %cst_109 [1] : vector<32x32xf32> to vector<32xf32>
    %282 = vector.shape_cast %281 : vector<32xf32> to vector<32x1xf32>
    %cst_110 = arith.constant 3.125000e-02 : f32
    %283 = vector.broadcast %cst_110 : f32 to vector<32x1xf32>
    %284 = arith.mulf %282, %283 : vector<32x1xf32>
    %285 = vector.extract_strided_slice %284 {offsets = [0, 0], sizes = [16, 1], strides = [1, 1]} : vector<32x1xf32> to vector<16x1xf32>
    %286 = vector.extract_strided_slice %284 {offsets = [16, 0], sizes = [16, 1], strides = [1, 1]} : vector<32x1xf32> to vector<16x1xf32>
    %287 = arith.mulf %285, %285 : vector<16x1xf32>
    %288 = arith.subf %286, %287 : vector<16x1xf32>
    %cst_111 = arith.constant 0.000000e+00 : f32
    %289 = vector.broadcast %cst_111 : f32 to vector<16x1xf32>
    %290 = arith.maximumf %288, %289 : vector<16x1xf32>
    %291 = vector.broadcast %285 : vector<16x1xf32> to vector<16x32xf32>
    %292 = arith.subf %274, %291 : vector<16x32xf32>
    %cst_112 = arith.constant 9.99999996E-13 : f32
    %293 = vector.broadcast %cst_112 : f32 to vector<16x1xf32>
    %294 = arith.addf %290, %293 : vector<16x1xf32>
    %295 = math.rsqrt %294 : vector<16x1xf32>
    %296 = vector.broadcast %295 : vector<16x1xf32> to vector<16x32xf32>
    %297 = arith.mulf %292, %296 : vector<16x32xf32>
    %298 = vector.broadcast %276 : vector<1x32xf32> to vector<16x32xf32>
    %299 = arith.mulf %297, %298 : vector<16x32xf32>
    %300 = vector.broadcast %278 : vector<1x32xf32> to vector<16x32xf32>
    %301 = arith.addf %299, %300 : vector<16x32xf32>
    %302 = arith.truncf %301 : vector<16x32xf32> to vector<16x32xbf16>
    %c1_113 = arith.constant 1 : index
    %c0_114 = arith.constant 0 : index
    %c0_115 = arith.constant 0 : index
    %303 = vector.load %arg7[%c1_113, %c0_114, %c0_115] : memref<2x32x128xbf16, #tpu.memory_space<vmem>>, vector<1x32x128xbf16>
    %304 = vector.shape_cast %303 : vector<1x32x128xbf16> to vector<32x128xbf16>
    %cst_116 = arith.constant dense<0.000000e+00> : vector<16x128xf32>
    %305 = tpu.matmul %302, %304, %cst_116 {dimension_numbers = #tpu.dot_dimension_numbers<[1], [0], [0], [1], [0, 0, 1, 1], [], []>} : vector<16x32xbf16>, vector<32x128xbf16>, vector<16x128xf32> -> vector<16x128xf32>
    %c1_117 = arith.constant 1 : index
    %c0_118 = arith.constant 0 : index
    %c0_119 = arith.constant 0 : index
    %306 = vector.load %arg8[%c1_117, %c0_118, %c0_119] : memref<2x1x128xf32, #tpu.memory_space<vmem>>, vector<1x1x128xf32>
    %307 = vector.shape_cast %306 : vector<1x1x128xf32> to vector<1x128xf32>
    %308 = vector.broadcast %307 : vector<1x128xf32> to vector<16x128xf32>
    %309 = arith.addf %305, %308 : vector<16x128xf32>
    %310 = arith.mulf %309, %309 : vector<16x128xf32>
    %311 = arith.mulf %309, %310 : vector<16x128xf32>
    %cst_120 = arith.constant 4.471500e-02 : f32
    %312 = vector.broadcast %cst_120 : f32 to vector<16x128xf32>
    %313 = arith.mulf %312, %311 : vector<16x128xf32>
    %314 = arith.addf %309, %313 : vector<16x128xf32>
    %cst_121 = arith.constant 0.797884583 : f32
    %315 = vector.broadcast %cst_121 : f32 to vector<16x128xf32>
    %316 = arith.mulf %315, %314 : vector<16x128xf32>
    %317 = math.tanh %316 : vector<16x128xf32>
    %cst_122 = arith.constant 1.000000e+00 : f32
    %318 = vector.broadcast %cst_122 : f32 to vector<16x128xf32>
    %319 = arith.addf %318, %317 : vector<16x128xf32>
    %cst_123 = arith.constant 5.000000e-01 : f32
    %320 = vector.broadcast %cst_123 : f32 to vector<16x128xf32>
    %321 = arith.mulf %320, %319 : vector<16x128xf32>
    %322 = arith.mulf %309, %321 : vector<16x128xf32>
    %323 = arith.truncf %322 : vector<16x128xf32> to vector<16x128xbf16>
    %c1_124 = arith.constant 1 : index
    %c0_125 = arith.constant 0 : index
    %c0_126 = arith.constant 0 : index
    %324 = vector.load %arg9[%c1_124, %c0_125, %c0_126] : memref<2x128x32xbf16, #tpu.memory_space<vmem>>, vector<1x128x32xbf16>
    %325 = vector.shape_cast %324 : vector<1x128x32xbf16> to vector<128x32xbf16>
    %cst_127 = arith.constant dense<0.000000e+00> : vector<16x32xf32>
    %326 = tpu.matmul %323, %325, %cst_127 {dimension_numbers = #tpu.dot_dimension_numbers<[1], [0], [0], [1], [0, 0, 1, 1], [], []>} : vector<16x128xbf16>, vector<128x32xbf16>, vector<16x32xf32> -> vector<16x32xf32>
    %c1_128 = arith.constant 1 : index
    %c3_129 = arith.constant 3 : index
    %c0_130 = arith.constant 0 : index
    %327 = vector.load %arg6[%c1_128, %c3_129, %c0_130] : memref<2x6x32xf32, #tpu.memory_space<vmem>>, vector<1x1x32xf32>
    %328 = vector.shape_cast %327 : vector<1x1x32xf32> to vector<1x32xf32>
    %329 = vector.broadcast %328 : vector<1x32xf32> to vector<16x32xf32>
    %330 = arith.addf %326, %329 : vector<16x32xf32>
    %331 = arith.addf %301, %330 : vector<16x32xf32>
    %c1_131 = arith.constant 1 : index
    %c4_132 = arith.constant 4 : index
    %c0_133 = arith.constant 0 : index
    %332 = vector.load %arg6[%c1_131, %c4_132, %c0_133] : memref<2x6x32xf32, #tpu.memory_space<vmem>>, vector<1x1x32xf32>
    %333 = vector.shape_cast %332 : vector<1x1x32xf32> to vector<1x32xf32>
    %c1_134 = arith.constant 1 : index
    %c5_135 = arith.constant 5 : index
    %c0_136 = arith.constant 0 : index
    %334 = vector.load %arg6[%c1_134, %c5_135, %c0_136] : memref<2x6x32xf32, #tpu.memory_space<vmem>>, vector<1x1x32xf32>
    %335 = vector.shape_cast %334 : vector<1x1x32xf32> to vector<1x32xf32>
    %336 = arith.mulf %331, %331 : vector<16x32xf32>
    %337 = tpu.concatenate %331, %336 in 0 : vector<16x32xf32>, vector<16x32xf32> -> vector<32x32xf32>
    %cst_137 = arith.constant dense<0.000000e+00> : vector<32xf32>
    %338 = vector.multi_reduction <add>, %337, %cst_137 [1] : vector<32x32xf32> to vector<32xf32>
    %339 = vector.shape_cast %338 : vector<32xf32> to vector<32x1xf32>
    %cst_138 = arith.constant 3.125000e-02 : f32
    %340 = vector.broadcast %cst_138 : f32 to vector<32x1xf32>
    %341 = arith.mulf %339, %340 : vector<32x1xf32>
    %342 = vector.extract_strided_slice %341 {offsets = [0, 0], sizes = [16, 1], strides = [1, 1]} : vector<32x1xf32> to vector<16x1xf32>
    %343 = vector.extract_strided_slice %341 {offsets = [16, 0], sizes = [16, 1], strides = [1, 1]} : vector<32x1xf32> to vector<16x1xf32>
    %344 = arith.mulf %342, %342 : vector<16x1xf32>
    %345 = arith.subf %343, %344 : vector<16x1xf32>
    %cst_139 = arith.constant 0.000000e+00 : f32
    %346 = vector.broadcast %cst_139 : f32 to vector<16x1xf32>
    %347 = arith.maximumf %345, %346 : vector<16x1xf32>
    %348 = vector.broadcast %342 : vector<16x1xf32> to vector<16x32xf32>
    %349 = arith.subf %331, %348 : vector<16x32xf32>
    %cst_140 = arith.constant 9.99999996E-13 : f32
    %350 = vector.broadcast %cst_140 : f32 to vector<16x1xf32>
    %351 = arith.addf %347, %350 : vector<16x1xf32>
    %352 = math.rsqrt %351 : vector<16x1xf32>
    %353 = vector.broadcast %352 : vector<16x1xf32> to vector<16x32xf32>
    %354 = arith.mulf %349, %353 : vector<16x32xf32>
    %355 = vector.broadcast %333 : vector<1x32xf32> to vector<16x32xf32>
    %356 = arith.mulf %354, %355 : vector<16x32xf32>
    %357 = vector.broadcast %335 : vector<1x32xf32> to vector<16x32xf32>
    %358 = arith.addf %356, %357 : vector<16x32xf32>
    %359 = vector.extract_strided_slice %358 {offsets = [0, 0], sizes = [1, 32], strides = [1, 1]} : vector<16x32xf32> to vector<1x32xf32>
    %360 = vector.extract_strided_slice %358 {offsets = [8, 0], sizes = [1, 32], strides = [1, 1]} : vector<16x32xf32> to vector<1x32xf32>
    %361 = tpu.concatenate %359, %360 in 0 : vector<1x32xf32>, vector<1x32xf32> -> vector<2x32xf32>
    %362 = arith.truncf %361 : vector<2x32xf32> to vector<2x32xbf16>
    %c0_141 = arith.constant 0 : index
    %c0_142 = arith.constant 0 : index
    %363 = vector.load %arg10[%c0_141, %c0_142] : memref<32x2xbf16, #tpu.memory_space<vmem>>, vector<32x2xbf16>
    %cst_143 = arith.constant dense<0.000000e+00> : vector<2x2xf32>
    %364 = tpu.matmul %362, %363, %cst_143 {dimension_numbers = #tpu.dot_dimension_numbers<[1], [0], [0], [1], [0, 0, 1, 1], [], []>} : vector<2x32xbf16>, vector<32x2xbf16>, vector<2x2xf32> -> vector<2x2xf32>
    %c0_144 = arith.constant 0 : index
    %c0_145 = arith.constant 0 : index
    %365 = vector.load %arg11[%c0_144, %c0_145] : memref<1x2xf32, #tpu.memory_space<vmem>>, vector<1x2xf32>
    %366 = vector.broadcast %365 : vector<1x2xf32> to vector<2x2xf32>
    %367 = arith.addf %364, %366 : vector<2x2xf32>
    %cst_146 = arith.constant dense<0xFF800000> : vector<2xf32>
    %368 = vector.multi_reduction <maximumf>, %367, %cst_146 [1] : vector<2x2xf32> to vector<2xf32>
    %369 = vector.shape_cast %368 : vector<2xf32> to vector<2x1xf32>
    %370 = vector.broadcast %369 : vector<2x1xf32> to vector<2x2xf32>
    %371 = arith.subf %367, %370 : vector<2x2xf32>
    %372 = math.exp %371 : vector<2x2xf32>
    %cst_147 = arith.constant dense<0.000000e+00> : vector<2xf32>
    %373 = vector.multi_reduction <add>, %372, %cst_147 [1] : vector<2x2xf32> to vector<2xf32>
    %374 = vector.shape_cast %373 : vector<2xf32> to vector<2x1xf32>
    %375 = math.log %374 : vector<2x1xf32>
    %376 = vector.broadcast %375 : vector<2x1xf32> to vector<2x2xf32>
    %377 = arith.subf %371, %376 : vector<2x2xf32>
    %c0_148 = arith.constant 0 : index
    %c0_149 = arith.constant 0 : index
    %378 = vector.load %arg12[%c0_148, %c0_149] : memref<2x2xf32, #tpu.memory_space<vmem>>, vector<2x2xf32>
    tpu.vector_store %arg12[%c0_148, %c0_149], %377 {strides = array<i32>} : memref<2x2xf32, #tpu.memory_space<vmem>>, vector<2x2xf32>,
    return
  }
}

</mosaic_0001>

<llo_original>
// kernel: tpu_custom_call.1
$region0: #{tpu_custom_call.1}
  #allocation0 [shape = 'u32[]', space=smem, size = 0x4, offset = 0x4, fixed_abs, tag = 'smem constant byte address 0x4 - core index']
  #allocation1 [shape = 'u32[144,128]{1,0:T(1,128)}', space=vmem, size = 0x12000, scoped, tag = 'internal scratch']
  %s0 = inlined_call_operand.vmem [shape: f32[16,32], index: 0, kind: input, shape index: {}]
  %s1 = inlined_call_operand.vmem [shape: f32[16,16], index: 1, kind: input, shape index: {}]
  %s2 = inlined_call_operand.vmem [shape: f32[2,32], index: 2, kind: input, shape index: {}]
  %s3 = inlined_call_operand.vmem [shape: bf16[2,32,96], index: 3, kind: input, shape index: {}]
  %s4 = inlined_call_operand.vmem [shape: f32[2,1,96], index: 4, kind: input, shape index: {}]
  %s5 = inlined_call_operand.vmem [shape: bf16[2,32,32], index: 5, kind: input, shape index: {}]
  %s6 = inlined_call_operand.vmem [shape: f32[2,6,32], index: 6, kind: input, shape index: {}]
  %s7 = inlined_call_operand.vmem [shape: bf16[2,32,128], index: 7, kind: input, shape index: {}]
  %s8 = inlined_call_operand.vmem [shape: f32[2,1,128], index: 8, kind: input, shape index: {}]
  %s9 = inlined_call_operand.vmem [shape: bf16[2,128,32], index: 9, kind: input, shape index: {}]
  %s10 = inlined_call_operand.vmem [shape: bf16[32,2], index: 10, kind: input, shape index: {}]
  %s11 = inlined_call_operand.vmem [shape: f32[1,2], index: 11, kind: input, shape index: {}]
  %s12 = inlined_call_operand.hbm [shape: f32[2,2], index: 12, kind: output, shape index: {}]
  %s13 = sld [smem:[#allocation0]]
  $region58: #{tpu_custom_call.1} parent=0
    _
  %s15 = ssub.s32 1, %s13
  %s16 = scalar_select 0, %s15, %s13
  $region1: #{tpu_custom_call.1} parent=0
    #allocation2 [shape = 'u8[1024]{0}', space=vmem, size = 0x400, scoped, tag = 'output window, operand 0, single buffered']
    #allocation3 [shape = 's32[1]{0}', space=sflag, size = 0x4, scoped, tag = 'scoped memory for tpu_custom_call.1']
    %17 = vsyncpa [#allocation3], 0
    // Predicated region
    $region2: #{tpu_custom_call.1} parent=1 // pred_check
      _
    $region3: #{tpu_custom_call.1} parent=1 // pred_check_branch
      %19 = sbr.rel (0) target = $region5
    $region4: #{tpu_custom_call.1} parent=1 // pred_region
      _
    $region5: #{tpu_custom_call.1} parent=1 // pred_fallthru
      _
    // Predicated region
    $region6: #{tpu_custom_call.1} parent=1 // pred_check
      _
    $region7: #{tpu_custom_call.1} parent=1 // pred_check_branch
      %21 = sbr.rel (0) target = $region9
    $region8: #{tpu_custom_call.1} parent=1 // pred_region
      _
    $region9: #{tpu_custom_call.1} parent=1 // pred_fallthru
      _
    // Predicated region
    $region10: #{tpu_custom_call.1} parent=1 // pred_check
      _
    $region11: #{tpu_custom_call.1} parent=1 // pred_check_branch
      %23 = sbr.rel (0) target = $region13
    $region12: #{tpu_custom_call.1} parent=1 // pred_region
      _
    $region13: #{tpu_custom_call.1} parent=1 // pred_fallthru
      _
    // Predicated region
    $region14: #{tpu_custom_call.1} parent=1 // pred_check
      _
    $region15: #{tpu_custom_call.1} parent=1 // pred_check_branch
      %25 = sbr.rel (0) target = $region17
    $region16: #{tpu_custom_call.1} parent=1 // pred_region
      _
    $region17: #{tpu_custom_call.1} parent=1 // pred_fallthru
      _
    // Predicated region
    $region18: #{tpu_custom_call.1} parent=1 // pred_check
      _
    $region19: #{tpu_custom_call.1} parent=1 // pred_check_branch
      %27 = sbr.rel (0) target = $region21
    $region20: #{tpu_custom_call.1} parent=1 // pred_region
      _
    $region21: #{tpu_custom_call.1} parent=1 // pred_fallthru
      _
    // Predicated region
    $region22: #{tpu_custom_call.1} parent=1 // pred_check
      _
    $region23: #{tpu_custom_call.1} parent=1 // pred_check_branch
      %29 = sbr.rel (0) target = $region25
    $region24: #{tpu_custom_call.1} parent=1 // pred_region
      _
    $region25: #{tpu_custom_call.1} parent=1 // pred_fallthru
      _
    // Predicated region
    $region26: #{tpu_custom_call.1} parent=1 // pred_check
      _
    $region27: #{tpu_custom_call.1} parent=1 // pred_check_branch
      %31 = sbr.rel (0) target = $region29
    $region28: #{tpu_custom_call.1} parent=1 // pred_region
      _
    $region29: #{tpu_custom_call.1} parent=1 // pred_fallthru
      _
    // Predicated region
    $region30: #{tpu_custom_call.1} parent=1 // pred_check
      _
    $region31: #{tpu_custom_call.1} parent=1 // pred_check_branch
      %33 = sbr.rel (0) target = $region33
    $region32: #{tpu_custom_call.1} parent=1 // pred_region
      _
    $region33: #{tpu_custom_call.1} parent=1 // pred_fallthru
      _
    // Predicated region
    $region34: #{tpu_custom_call.1} parent=1 // pred_check
      _
    $region35: #{tpu_custom_call.1} parent=1 // pred_check_branch
      %35 = sbr.rel (0) target = $region37
    $region36: #{tpu_custom_call.1} parent=1 // pred_region
      _
    $region37: #{tpu_custom_call.1} parent=1 // pred_fallthru
      _
    // Predicated region
    $region38: #{tpu_custom_call.1} parent=1 // pred_check
      _
    $region39: #{tpu_custom_call.1} parent=1 // pred_check_branch
      %37 = sbr.rel (0) target = $region41
    $region40: #{tpu_custom_call.1} parent=1 // pred_region
      _
    $region41: #{tpu_custom_call.1} parent=1 // pred_fallthru
      _
    // Predicated region
    $region42: #{tpu_custom_call.1} parent=1 // pred_check
      _
    $region43: #{tpu_custom_call.1} parent=1 // pred_check_branch
      %39 = sbr.rel (0) target = $region45
    $region44: #{tpu_custom_call.1} parent=1 // pred_region
      _
    $region45: #{tpu_custom_call.1} parent=1 // pred_fallthru
      _
    // Predicated region
    $region46: #{tpu_custom_call.1} parent=1 // pred_check
      _
    $region47: #{tpu_custom_call.1} parent=1 // pred_check_branch
      %41 = sbr.rel (0) target = $region49
    $region48: #{tpu_custom_call.1} parent=1 // pred_region
      _
    $region49: #{tpu_custom_call.1} parent=1 // pred_fallthru
      _
    %v43 = vld [vmem:[%s1] sm:$0xff]
    %v44 = vld [vmem:[%s1 + $0x8] sm:$0xff]
    %v45 = vld [vmem:[%s0] sm:$0xff]
    %v46 = vld [vmem:[%s0 + $0x8] sm:$0xff]
    %v47 = vld [vmem:[%s2] sm:$0x1]
    %v48 = vld [vmem:[%s2 + $0x1] sm:$0x1]
    %v49 = vmul.f32 %v45, %v45
    %v50 = vmul.f32 %v46, %v46
    %vm51 = vcmask 261120
    %v52 = vsel %vm51, %v45, 0.0
    %53 = vadd.xlane.f32.xlu0 %v52
    %v54 = vpop.xlane.xlu0 %53
    %v55 = vsel %vm51, %v46, 0.0
    %56 = vadd.xlane.f32.xlu0 %v55
    %v57 = vpop.xlane.xlu0 %56
    %v58 = vsel %vm51, %v49, 0.0
    %59 = vadd.xlane.f32.xlu0 %v58
    %v60 = vpop.xlane.xlu0 %59
    %v61 = vsel %vm51, %v50, 0.0
    %62 = vadd.xlane.f32.xlu0 %v61
    %v63 = vpop.xlane.xlu0 %62
    %v64 = vmul.f32 %v54, 0.03125
    %v65 = vmul.f32 %v57, 0.03125
    %v66 = vmul.f32 %v60, 0.03125
    %v67 = vmul.f32 %v63, 0.03125
    %v68 = vmul.f32 %v64, %v64
    %v69 = vmul.f32 %v65, %v65
    %v70 = vsub.f32 %v66, %v68
    %v71 = vsub.f32 %v67, %v69
    %v72 = vmax.f32 %v70, 0.0
    %v73 = vmax.f32 %v71, 0.0
    %v74 = vsub.f32 %v45, %v64
    %v75 = vsub.f32 %v46, %v65
    %v76 = vadd.f32 %v72, 1e-12
    %v77 = vadd.f32 %v73, 1e-12
    %v78 = vrsqrt.pop %v76
    %v79 = vrsqrt.pop %v77
    %v80 = vmul.f32 %v74, %v78
    %v81 = vmul.f32 %v75, %v79
    %v82 = vlaneseq
    %v83 = vshrl.u32 %v82, 7
    %v84 = vsub.s32 0, %v83
    %v85 = vrot.slane %v47, %v84
    %v86 = vmul.f32 %v80, %v85
    %v87 = vmul.f32 %v81, %v85
    %v88 = vlaneseq
    %v89 = vshrl.u32 %v88, 7
    %v90 = vsub.s32 0, %v89
    %v91 = vrot.slane %v48, %v90
    %v92 = vadd.f32 %v86, %v91
    %v93 = vadd.f32 %v87, %v91
    %v94 = vpack.c.bf16 %v93, %v92
    %v95 = vld [vmem:[%s3] sm:$0xf]
    %v96 = vld [vmem:[%s3 + $0x4] sm:$0xf]
    %v97 = vld [vmem:[%s3 + $0x8] sm:$0xf]
    %v98 = vld [vmem:[%s3 + $0xc] sm:$0xf]
    %v99 = vld [vmem:[%s4] sm:$0x1]
    %v101 = vlaneseq
    %v102 = vshrl.u32 %v101, 7
    %v103 = vsub.s32 0, %v102
    %v104 = vrot.slane %v99, %v103
    %v110 = vunpack.c.l.b16 %v95
    %v111 = vunpack.c.l.b16 %v96
    %v112 = vunpack.c.l.b16 %v97
    %v113 = vunpack.c.l.b16 %v98
    %v114 = vpack.c.b16 %v111, %v110
    %v115 = vpack.c.b16 %v113, %v112
    %v119 = vsel %vm51, %v94, 0
    %121 = vmatprep.subr.bf16.mxu0 0
    %122 = vmatpush1.bf16.msra.mxu0 %v114
    %123 = vmatprep.subr.bf16.mxu0 0
    %124 = vmatpush1.bf16.msra.mxu0 %v115
    %125 = vmatprep.subr.bf16.mxu0 0
    %126 = vmatpush1.bf16.msra.mxu0 0
    %127 = vmatprep.subr.bf16.mxu0 0
    %128 = vmatpush1.bf16.msra.mxu0 0
    %129 = vmatprep.subr.bf16.mxu0 0
    %130 = vmatpush1.bf16.msra.mxu0 0
    %131 = vmatprep.subr.bf16.mxu0 0
    %132 = vmatpush1.bf16.msra.mxu0 0
    %133 = vmatprep.subr.bf16.mxu0 0
    %134 = vmatpush1.bf16.msra.mxu0 0
    %135 = vmatprep.subr.bf16.mxu0 0
    %136 = vmatpush1.bf16.msra.mxu0 0
    %137 = vmatprep.subr.bf16.mxu0 0
    %138 = vmatpush1.bf16.msra.mxu0 0
    %139 = vmatprep.subr.bf16.mxu0 0
    %140 = vmatpush1.bf16.msra.mxu0 0
    %141 = vmatprep.subr.bf16.mxu0 0
    %142 = vmatpush1.bf16.msra.mxu0 0
    %143 = vmatprep.subr.bf16.mxu0 0
    %144 = vmatpush1.bf16.msra.mxu0 0
    %145 = vmatprep.subr.bf16.mxu0 0
    %146 = vmatpush1.bf16.msra.mxu0 0
    %147 = vmatprep.subr.bf16.mxu0 0
    %148 = vmatpush1.bf16.msra.mxu0 0
    %149 = vmatprep.subr.bf16.mxu0 0
    %150 = vmatpush1.bf16.msra.mxu0 0
    %151 = vmatprep.subr.bf16.mxu0 0
    %152 = vmatpush1.bf16.msra.mxu0 0
    %153 = vmatprep.mubr.bf16.mxu0 0
    %154 = vmatmul.mubr.bf16.gmra.mrb[0].mxu0 %v119
    %v155 = vpop.f32.mrb[0].mxu0
    %v156 = vadd.f32 %v104, %v155
    %v157 = vpop.f32.mrb[0].mxu0
    %v158 = vpop.f32.mrb[0].mxu0
    %v159 = vadd.f32 %v104, %v158
    %v160 = vpop.f32.mrb[0].mxu0
    %161 = vdwg.mxu0
    %164 = vrot.lane.b32.xlu0 %v156, 96
    %v165 = vpop.permute.xlu0 %164
    %166 = vrot.lane.b32.xlu0 %v159, 96
    %v167 = vpop.permute.xlu0 %166
    %vm168 = vcmask 64512
    %v169 = vsel %vm168, %v156, 0
    %v171 = vsel %vm168, %v159, 0
    %v173 = vsel %vm168, %v165, 0
    %v175 = vsel %vm168, %v167, 0
    %177 = vmatprep.subr.mxu0 0.0
    %178 = vmatpush1.xpose.msra.mxu0 %v173
    %179 = vmatprep.subr.mxu0 0.0
    %180 = vmatpush1.xpose.msra.mxu0 %v175
    %181 = vmatprep.subr.mxu0 0.0
    %182 = vmatpush1.xpose.msra.mxu0 0.0
    %183 = vmatprep.subr.mxu0 0.0
    %184 = vmatpush1.xpose.msra.mxu0 0.0
    %185 = vmatprep.subr.mxu0 0.0
    %186 = vmatpush1.xpose.msra.mxu0 0.0
    %187 = vmatprep.subr.mxu0 0.0
    %188 = vmatpush1.xpose.msra.mxu0 0.0
    %189 = vmatprep.subr.mxu0 0.0
    %190 = vmatpush1.xpose.msra.mxu0 0.0
    %191 = vmatprep.subr.mxu0 0.0
    %192 = vmatpush1.xpose.msra.mxu0 0.0
    %193 = vmatprep.subr.mxu0 0.0
    %194 = vmatpush1.xpose.msra.mxu0 0.0
    %195 = vmatprep.subr.mxu0 0.0
    %196 = vmatpush1.xpose.msra.mxu0 0.0
    %197 = vmatprep.subr.mxu0 0.0
    %198 = vmatpush1.xpose.msra.mxu0 0.0
    %199 = vmatprep.subr.mxu0 0.0
    %200 = vmatpush1.xpose.msra.mxu0 0.0
    %201 = vmatprep.subr.mxu0 0.0
    %202 = vmatpush1.xpose.msra.mxu0 0.0
    %203 = vmatprep.subr.mxu0 0.0
    %204 = vmatpush1.xpose.msra.mxu0 0.0
    %205 = vmatprep.subr.mxu0 0.0
    %206 = vmatpush1.xpose.msra.mxu0 0.0
    %207 = vmatprep.subr.mxu0 0.0
    %208 = vmatpush1.xpose.msra.mxu0 0.0
    %209 = vmatprep.subr.mxu0 0.0
    %210 = vmatpush1.xpose.msra.mxu0 0.0
    %211 = vmatprep.subr.mxu0 0.0
    %212 = vmatpush1.xpose.msra.mxu0 0.0
    %213 = vmatprep.subr.mxu0 0.0
    %214 = vmatpush1.xpose.msra.mxu0 0.0
    %215 = vmatprep.subr.mxu0 0.0
    %216 = vmatpush1.xpose.msra.mxu0 0.0
    %217 = vmatprep.subr.mxu0 0.0
    %218 = vmatpush1.xpose.msra.mxu0 0.0
    %219 = vmatprep.subr.mxu0 0.0
    %220 = vmatpush1.xpose.msra.mxu0 0.0
    %221 = vmatprep.subr.mxu0 0.0
    %222 = vmatpush1.xpose.msra.mxu0 0.0
    %223 = vmatprep.subr.mxu0 0.0
    %224 = vmatpush1.xpose.msra.mxu0 0.0
    %225 = vmatprep.subr.mxu0 0.0
    %226 = vmatpush1.xpose.msra.mxu0 0.0
    %227 = vmatprep.subr.mxu0 0.0
    %228 = vmatpush1.xpose.msra.mxu0 0.0
    %229 = vmatprep.subr.mxu0 0.0
    %230 = vmatpush1.xpose.msra.mxu0 0.0
    %231 = vmatprep.subr.mxu0 0.0
    %232 = vmatpush1.xpose.msra.mxu0 0.0
    %233 = vmatprep.subr.mxu0 0.0
    %234 = vmatpush1.xpose.msra.mxu0 0.0
    %235 = vmatprep.subr.mxu0 0.0
    %236 = vmatpush1.xpose.msra.mxu0 0.0
    %237 = vmatprep.subr.mxu0 0.0
    %238 = vmatpush1.xpose.msra.mxu0 0.0
    %239 = vmatprep.subr.mxu0 0.0
    %240 = vmatpush1.xpose.msra.mxu0 0.0
    %241 = vmatprep.mubr.f32.mxu0 0.0
    %242 = vmatmul.mubr.f32.gmra.mrb[0].mxu0 %v169
    %v243 = vpop.f32.mrb[0].mxu0
    %v244 = vadd.f32 %v43, %v243
    %v245 = vpop.f32.mrb[0].mxu0
    %246 = vmatprep.mubr.f32.mxu0 0.0
    %247 = vmatmul.mubr.f32.gmra.mrb[0].mxu0 %v171
    %v248 = vpop.f32.mrb[0].mxu0
    %v249 = vadd.f32 %v44, %v248
    %v250 = vpop.f32.mrb[0].mxu0
    %251 = vdwg.mxu0
    %vm252 = vcmask 130048
    %v253 = vsel %vm252, %v244, -inf
    %254 = vmax.xlane.f32.xlu0 %v253
    %v255 = vpop.xlane.xlu0 %254
    %v256 = vsel %vm252, %v249, -inf
    %257 = vmax.xlane.f32.xlu0 %v256
    %v258 = vpop.xlane.xlu0 %257
    %v259 = vsub.f32 %v244, %v255
    %v260 = vsub.f32 %v249, %v258
    %v261 = vmul.f32 %v259, 1.442695
    %v262 = vpow.pop %v261
    %v263 = vmul.f32 %v260, 1.442695
    %v264 = vpow.pop %v263
    %v265 = vsel %vm252, %v262, 0.0
    %266 = vadd.xlane.f32.xlu0 %v265
    %v267 = vpop.xlane.xlu0 %266
    %v268 = vsel %vm252, %v264, 0.0
    %269 = vadd.xlane.f32.xlu0 %v268
    %v270 = vpop.xlane.xlu0 %269
    %v271 = vrcp.pop %v267
    %v272 = vrcp.pop %v270
    %v273 = vmul.f32 %v262, %v271
    %v274 = vmul.f32 %v264, %v272
    %275 = vrot.lane.b32.xlu0 %v156, 64
    %v276 = vpop.permute.xlu0 %275
    %277 = vrot.lane.b32.xlu0 %v159, 64
    %v278 = vpop.permute.xlu0 %277
    %v282 = vsel %vm252, %v273, 0
    %v285 = vsel %vm252, %v274, 0
    %287 = vmatprep.subr.mxu0 0.0
    %288 = vmatpush1.msra.mxu0 %v276
    %289 = vmatprep.subr.mxu0 0.0
    %290 = vmatpush1.msra.mxu0 %v278
    %291 = vmatprep.subr.mxu0 0.0
    %292 = vmatpush1.msra.mxu0 0.0
    %293 = vmatprep.subr.mxu0 0.0
    %294 = vmatpush1.msra.mxu0 0.0
    %295 = vmatprep.subr.mxu0 0.0
    %296 = vmatpush1.msra.mxu0 0.0
    %297 = vmatprep.subr.mxu0 0.0
    %298 = vmatpush1.msra.mxu0 0.0
    %299 = vmatprep.subr.mxu0 0.0
    %300 = vmatpush1.msra.mxu0 0.0
    %301 = vmatprep.subr.mxu0 0.0
    %302 = vmatpush1.msra.mxu0 0.0
    %303 = vmatprep.subr.mxu0 0.0
    %304 = vmatpush1.msra.mxu0 0.0
    %305 = vmatprep.subr.mxu0 0.0
    %306 = vmatpush1.msra.mxu0 0.0
    %307 = vmatprep.subr.mxu0 0.0
    %308 = vmatpush1.msra.mxu0 0.0
    %309 = vmatprep.subr.mxu0 0.0
    %310 = vmatpush1.msra.mxu0 0.0
    %311 = vmatprep.subr.mxu0 0.0
    %312 = vmatpush1.msra.mxu0 0.0
    %313 = vmatprep.subr.mxu0 0.0
    %314 = vmatpush1.msra.mxu0 0.0
    %315 = vmatprep.subr.mxu0 0.0
    %316 = vmatpush1.msra.mxu0 0.0
    %317 = vmatprep.subr.mxu0 0.0
    %318 = vmatpush1.msra.mxu0 0.0
    %319 = vmatprep.subr.mxu0 0.0
    %320 = vmatpush1.msra.mxu0 0.0
    %321 = vmatprep.subr.mxu0 0.0
    %322 = vmatpush1.msra.mxu0 0.0
    %323 = vmatprep.subr.mxu0 0.0
    %324 = vmatpush1.msra.mxu0 0.0
    %325 = vmatprep.subr.mxu0 0.0
    %326 = vmatpush1.msra.mxu0 0.0
    %327 = vmatprep.subr.mxu0 0.0
    %328 = vmatpush1.msra.mxu0 0.0
    %329 = vmatprep.subr.mxu0 0.0
    %330 = vmatpush1.msra.mxu0 0.0
    %331 = vmatprep.subr.mxu0 0.0
    %332 = vmatpush1.msra.mxu0 0.0
    %333 = vmatprep.subr.mxu0 0.0
    %334 = vmatpush1.msra.mxu0 0.0
    %335 = vmatprep.subr.mxu0 0.0
    %336 = vmatpush1.msra.mxu0 0.0
    %337 = vmatprep.subr.mxu0 0.0
    %338 = vmatpush1.msra.mxu0 0.0
    %339 = vmatprep.subr.mxu0 0.0
    %340 = vmatpush1.msra.mxu0 0.0
    %341 = vmatprep.subr.mxu0 0.0
    %342 = vmatpush1.msra.mxu0 0.0
    %343 = vmatprep.subr.mxu0 0.0
    %344 = vmatpush1.msra.mxu0 0.0
    %345 = vmatprep.subr.mxu0 0.0
    %346 = vmatpush1.msra.mxu0 0.0
    %347 = vmatprep.subr.mxu0 0.0
    %348 = vmatpush1.msra.mxu0 0.0
    %349 = vmatprep.subr.mxu0 0.0
    %350 = vmatpush1.msra.mxu0 0.0
    %351 = vmatprep.mubr.f32.mxu0 0.0
    %352 = vmatmul.mubr.f32.gmra.mrb[0].mxu0 %v282
    %v353 = vpop.f32.mrb[0].mxu0
    %v354 = vadd.f32 0.0, %v353
    %v355 = vpop.f32.mrb[0].mxu0
    %356 = vmatprep.mubr.f32.mxu0 0.0
    %357 = vmatmul.mubr.f32.gmra.mrb[0].mxu0 %v285
    %v358 = vpop.f32.mrb[0].mxu0
    %v359 = vadd.f32 0.0, %v358
    %v360 = vpop.f32.mrb[0].mxu0
    %361 = vdwg.mxu0
    %362 = vrot.lane.b32.xlu0 %v156, 120
    %v363 = vpop.permute.xlu0 %362
    %364 = vrot.lane.b32.xlu0 %v159, 120
    %v365 = vpop.permute.xlu0 %364
    %366 = vrot.lane.b32.xlu0 %v156, 88
    %v367 = vpop.permute.xlu0 %366
    %368 = vrot.lane.b32.xlu0 %v159, 88
    %v369 = vpop.permute.xlu0 %368
    %v370 = vsel %vm168, %v363, 0
    %v372 = vsel %vm168, %v365, 0
    %v374 = vsel %vm168, %v367, 0
    %v376 = vsel %vm168, %v369, 0
    %378 = vmatprep.subr.mxu0 0.0
    %379 = vmatpush1.xpose.msra.mxu0 %v374
    %380 = vmatprep.subr.mxu0 0.0
    %381 = vmatpush1.xpose.msra.mxu0 %v376
    %382 = vmatprep.subr.mxu0 0.0
    %383 = vmatpush1.xpose.msra.mxu0 0.0
    %384 = vmatprep.subr.mxu0 0.0
    %385 = vmatpush1.xpose.msra.mxu0 0.0
    %386 = vmatprep.subr.mxu0 0.0
    %387 = vmatpush1.xpose.msra.mxu0 0.0
    %388 = vmatprep.subr.mxu0 0.0
    %389 = vmatpush1.xpose.msra.mxu0 0.0
    %390 = vmatprep.subr.mxu0 0.0
    %391 = vmatpush1.xpose.msra.mxu0 0.0
    %392 = vmatprep.subr.mxu0 0.0
    %393 = vmatpush1.xpose.msra.mxu0 0.0
    %394 = vmatprep.subr.mxu0 0.0
    %395 = vmatpush1.xpose.msra.mxu0 0.0
    %396 = vmatprep.subr.mxu0 0.0
    %397 = vmatpush1.xpose.msra.mxu0 0.0
    %398 = vmatprep.subr.mxu0 0.0
    %399 = vmatpush1.xpose.msra.mxu0 0.0
    %400 = vmatprep.subr.mxu0 0.0
    %401 = vmatpush1.xpose.msra.mxu0 0.0
    %402 = vmatprep.subr.mxu0 0.0
    %403 = vmatpush1.xpose.msra.mxu0 0.0
    %404 = vmatprep.subr.mxu0 0.0
    %405 = vmatpush1.xpose.msra.mxu0 0.0
    %406 = vmatprep.subr.mxu0 0.0
    %407 = vmatpush1.xpose.msra.mxu0 0.0
    %408 = vmatprep.subr.mxu0 0.0
    %409 = vmatpush1.xpose.msra.mxu0 0.0
    %410 = vmatprep.subr.mxu0 0.0
    %411 = vmatpush1.xpose.msra.mxu0 0.0
    %412 = vmatprep.subr.mxu0 0.0
    %413 = vmatpush1.xpose.msra.mxu0 0.0
    %414 = vmatprep.subr.mxu0 0.0
    %415 = vmatpush1.xpose.msra.mxu0 0.0
    %416 = vmatprep.subr.mxu0 0.0
    %417 = vmatpush1.xpose.msra.mxu0 0.0
    %418 = vmatprep.subr.mxu0 0.0
    %419 = vmatpush1.xpose.msra.mxu0 0.0
    %420 = vmatprep.subr.mxu0 0.0
    %421 = vmatpush1.xpose.msra.mxu0 0.0
    %422 = vmatprep.subr.mxu0 0.0
    %423 = vmatpush1.xpose.msra.mxu0 0.0
    %424 = vmatprep.subr.mxu0 0.0
    %425 = vmatpush1.xpose.msra.mxu0 0.0
    %426 = vmatprep.subr.mxu0 0.0
    %427 = vmatpush1.xpose.msra.mxu0 0.0
    %428 = vmatprep.subr.mxu0 0.0
    %429 = vmatpush1.xpose.msra.mxu0 0.0
    %430 = vmatprep.subr.mxu0 0.0
    %431 = vmatpush1.xpose.msra.mxu0 0.0
    %432 = vmatprep.subr.mxu0 0.0
    %433 = vmatpush1.xpose.msra.mxu0 0.0
    %434 = vmatprep.subr.mxu0 0.0
    %435 = vmatpush1.xpose.msra.mxu0 0.0
    %436 = vmatprep.subr.mxu0 0.0
    %437 = vmatpush1.xpose.msra.mxu0 0.0
    %438 = vmatprep.subr.mxu0 0.0
    %439 = vmatpush1.xpose.msra.mxu0 0.0
    %440 = vmatprep.subr.mxu0 0.0
    %441 = vmatpush1.xpose.msra.mxu0 0.0
    %442 = vmatprep.mubr.f32.mxu0 0.0
    %443 = vmatmul.mubr.f32.gmra.mrb[0].mxu0 %v370
    %v444 = vpop.f32.mrb[0].mxu0
    %v445 = vadd.f32 %v43, %v444
    %v446 = vpop.f32.mrb[0].mxu0
    %447 = vmatprep.mubr.f32.mxu0 0.0
    %448 = vmatmul.mubr.f32.gmra.mrb[0].mxu0 %v372
    %v449 = vpop.f32.mrb[0].mxu0
    %v450 = vadd.f32 %v44, %v449
    %v451 = vpop.f32.mrb[0].mxu0
    %452 = vdwg.mxu0
    %v453 = vsel %vm252, %v445, -inf
    %454 = vmax.xlane.f32.xlu0 %v453
    %v455 = vpop.xlane.xlu0 %454
    %v456 = vsel %vm252, %v450, -inf
    %457 = vmax.xlane.f32.xlu0 %v456
    %v458 = vpop.xlane.xlu0 %457
    %v459 = vsub.f32 %v445, %v455
    %v460 = vsub.f32 %v450, %v458
    %v461 = vmul.f32 %v459, 1.442695
    %v462 = vpow.pop %v461
    %v463 = vmul.f32 %v460, 1.442695
    %v464 = vpow.pop %v463
    %v465 = vsel %vm252, %v462, 0.0
    %466 = vadd.xlane.f32.xlu0 %v465
    %v467 = vpop.xlane.xlu0 %466
    %v468 = vsel %vm252, %v464, 0.0
    %469 = vadd.xlane.f32.xlu0 %v468
    %v470 = vpop.xlane.xlu0 %469
    %v471 = vrcp.pop %v467
    %v472 = vrcp.pop %v470
    %v473 = vmul.f32 %v462, %v471
    %v474 = vmul.f32 %v464, %v472
    %475 = vrot.lane.b32.xlu0 %v156, 56
    %v476 = vpop.permute.xlu0 %475
    %477 = vrot.lane.b32.xlu0 %v159, 56
    %v478 = vpop.permute.xlu0 %477
    %v482 = vsel %vm252, %v473, 0
    %v485 = vsel %vm252, %v474, 0
    %487 = vmatprep.subr.mxu0 0.0
    %488 = vmatpush1.msra.mxu0 %v476
    %489 = vmatprep.subr.mxu0 0.0
    %490 = vmatpush1.msra.mxu0 %v478
    %491 = vmatprep.subr.mxu0 0.0
    %492 = vmatpush1.msra.mxu0 0.0
    %493 = vmatprep.subr.mxu0 0.0
    %494 = vmatpush1.msra.mxu0 0.0
    %495 = vmatprep.subr.mxu0 0.0
    %496 = vmatpush1.msra.mxu0 0.0
    %497 = vmatprep.subr.mxu0 0.0
    %498 = vmatpush1.msra.mxu0 0.0
    %499 = vmatprep.subr.mxu0 0.0
    %500 = vmatpush1.msra.mxu0 0.0
    %501 = vmatprep.subr.mxu0 0.0
    %502 = vmatpush1.msra.mxu0 0.0
    %503 = vmatprep.subr.mxu0 0.0
    %504 = vmatpush1.msra.mxu0 0.0
    %505 = vmatprep.subr.mxu0 0.0
    %506 = vmatpush1.msra.mxu0 0.0
    %507 = vmatprep.subr.mxu0 0.0
    %508 = vmatpush1.msra.mxu0 0.0
    %509 = vmatprep.subr.mxu0 0.0
    %510 = vmatpush1.msra.mxu0 0.0
    %511 = vmatprep.subr.mxu0 0.0
    %512 = vmatpush1.msra.mxu0 0.0
    %513 = vmatprep.subr.mxu0 0.0
    %514 = vmatpush1.msra.mxu0 0.0
    %515 = vmatprep.subr.mxu0 0.0
    %516 = vmatpush1.msra.mxu0 0.0
    %517 = vmatprep.subr.mxu0 0.0
    %518 = vmatpush1.msra.mxu0 0.0
    %519 = vmatprep.subr.mxu0 0.0
    %520 = vmatpush1.msra.mxu0 0.0
    %521 = vmatprep.subr.mxu0 0.0
    %522 = vmatpush1.msra.mxu0 0.0
    %523 = vmatprep.subr.mxu0 0.0
    %524 = vmatpush1.msra.mxu0 0.0
    %525 = vmatprep.subr.mxu0 0.0
    %526 = vmatpush1.msra.mxu0 0.0
    %527 = vmatprep.subr.mxu0 0.0
    %528 = vmatpush1.msra.mxu0 0.0
    %529 = vmatprep.subr.mxu0 0.0
    %530 = vmatpush1.msra.mxu0 0.0
    %531 = vmatprep.subr.mxu0 0.0
    %532 = vmatpush1.msra.mxu0 0.0
    %533 = vmatprep.subr.mxu0 0.0
    %534 = vmatpush1.msra.mxu0 0.0
    %535 = vmatprep.subr.mxu0 0.0
    %536 = vmatpush1.msra.mxu0 0.0
    %537 = vmatprep.subr.mxu0 0.0
    %538 = vmatpush1.msra.mxu0 0.0
    %539 = vmatprep.subr.mxu0 0.0
    %540 = vmatpush1.msra.mxu0 0.0
    %541 = vmatprep.subr.mxu0 0.0
    %542 = vmatpush1.msra.mxu0 0.0
    %543 = vmatprep.subr.mxu0 0.0
    %544 = vmatpush1.msra.mxu0 0.0
    %545 = vmatprep.subr.mxu0 0.0
    %546 = vmatpush1.msra.mxu0 0.0
    %547 = vmatprep.subr.mxu0 0.0
    %548 = vmatpush1.msra.mxu0 0.0
    %549 = vmatprep.subr.mxu0 0.0
    %550 = vmatpush1.msra.mxu0 0.0
    %551 = vmatprep.mubr.f32.mxu0 0.0
    %552 = vmatmul.mubr.f32.gmra.mrb[0].mxu0 %v482
    %v553 = vpop.f32.mrb[0].mxu0
    %v554 = vadd.f32 0.0, %v553
    %v555 = vpop.f32.mrb[0].mxu0
    %556 = vmatprep.mubr.f32.mxu0 0.0
    %557 = vmatmul.mubr.f32.gmra.mrb[0].mxu0 %v485
    %v558 = vpop.f32.mrb[0].mxu0
    %v559 = vadd.f32 0.0, %v558
    %v560 = vpop.f32.mrb[0].mxu0
    %561 = vdwg.mxu0
    %562 = vrot.lane.b32.xlu0 %v156, 112
    %v563 = vpop.permute.xlu0 %562
    %564 = vrot.lane.b32.xlu0 %v159, 112
    %v565 = vpop.permute.xlu0 %564
    %566 = vrot.lane.b32.xlu0 %v156, 80
    %v567 = vpop.permute.xlu0 %566
    %568 = vrot.lane.b32.xlu0 %v159, 80
    %v569 = vpop.permute.xlu0 %568
    %v570 = vsel %vm168, %v563, 0
    %v572 = vsel %vm168, %v565, 0
    %v574 = vsel %vm168, %v567, 0
    %v576 = vsel %vm168, %v569, 0
    %578 = vmatprep.subr.mxu0 0.0
    %579 = vmatpush1.xpose.msra.mxu0 %v574
    %580 = vmatprep.subr.mxu0 0.0
    %581 = vmatpush1.xpose.msra.mxu0 %v576
    %582 = vmatprep.subr.mxu0 0.0
    %583 = vmatpush1.xpose.msra.mxu0 0.0
    %584 = vmatprep.subr.mxu0 0.0
    %585 = vmatpush1.xpose.msra.mxu0 0.0
    %586 = vmatprep.subr.mxu0 0.0
    %587 = vmatpush1.xpose.msra.mxu0 0.0
    %588 = vmatprep.subr.mxu0 0.0
    %589 = vmatpush1.xpose.msra.mxu0 0.0
    %590 = vmatprep.subr.mxu0 0.0
    %591 = vmatpush1.xpose.msra.mxu0 0.0
    %592 = vmatprep.subr.mxu0 0.0
    %593 = vmatpush1.xpose.msra.mxu0 0.0
    %594 = vmatprep.subr.mxu0 0.0
    %595 = vmatpush1.xpose.msra.mxu0 0.0
    %596 = vmatprep.subr.mxu0 0.0
    %597 = vmatpush1.xpose.msra.mxu0 0.0
    %598 = vmatprep.subr.mxu0 0.0
    %599 = vmatpush1.xpose.msra.mxu0 0.0
    %600 = vmatprep.subr.mxu0 0.0
    %601 = vmatpush1.xpose.msra.mxu0 0.0
    %602 = vmatprep.subr.mxu0 0.0
    %603 = vmatpush1.xpose.msra.mxu0 0.0
    %604 = vmatprep.subr.mxu0 0.0
    %605 = vmatpush1.xpose.msra.mxu0 0.0
    %606 = vmatprep.subr.mxu0 0.0
    %607 = vmatpush1.xpose.msra.mxu0 0.0
    %608 = vmatprep.subr.mxu0 0.0
    %609 = vmatpush1.xpose.msra.mxu0 0.0
    %610 = vmatprep.subr.mxu0 0.0
    %611 = vmatpush1.xpose.msra.mxu0 0.0
    %612 = vmatprep.subr.mxu0 0.0
    %613 = vmatpush1.xpose.msra.mxu0 0.0
    %614 = vmatprep.subr.mxu0 0.0
    %615 = vmatpush1.xpose.msra.mxu0 0.0
    %616 = vmatprep.subr.mxu0 0.0
    %617 = vmatpush1.xpose.msra.mxu0 0.0
    %618 = vmatprep.subr.mxu0 0.0
    %619 = vmatpush1.xpose.msra.mxu0 0.0
    %620 = vmatprep.subr.mxu0 0.0
    %621 = vmatpush1.xpose.msra.mxu0 0.0
    %622 = vmatprep.subr.mxu0 0.0
    %623 = vmatpush1.xpose.msra.mxu0 0.0
    %624 = vmatprep.subr.mxu0 0.0
    %625 = vmatpush1.xpose.msra.mxu0 0.0
    %626 = vmatprep.subr.mxu0 0.0
    %627 = vmatpush1.xpose.msra.mxu0 0.0
    %628 = vmatprep.subr.mxu0 0.0
    %629 = vmatpush1.xpose.msra.mxu0 0.0
    %630 = vmatprep.subr.mxu0 0.0
    %631 = vmatpush1.xpose.msra.mxu0 0.0
    %632 = vmatprep.subr.mxu0 0.0
    %633 = vmatpush1.xpose.msra.mxu0 0.0
    %634 = vmatprep.subr.mxu0 0.0
    %635 = vmatpush1.xpose.msra.mxu0 0.0
    %636 = vmatprep.subr.mxu0 0.0
    %637 = vmatpush1.xpose.msra.mxu0 0.0
    %638 = vmatprep.subr.mxu0 0.0
    %639 = vmatpush1.xpose.msra.mxu0 0.0
    %640 = vmatprep.subr.mxu0 0.0
    %641 = vmatpush1.xpose.msra.mxu0 0.0
    %642 = vmatprep.mubr.f32.mxu0 0.0
    %643 = vmatmul.mubr.f32.gmra.mrb[0].mxu0 %v570
    %v644 = vpop.f32.mrb[0].mxu0
    %v645 = vadd.f32 %v43, %v644
    %v646 = vpop.f32.mrb[0].mxu0
    %647 = vmatprep.mubr.f32.mxu0 0.0
    %648 = vmatmul.mubr.f32.gmra.mrb[0].mxu0 %v572
    %v649 = vpop.f32.mrb[0].mxu0
    %v650 = vadd.f32 %v44, %v649
    %v651 = vpop.f32.mrb[0].mxu0
    %652 = vdwg.mxu0
    %v653 = vsel %vm252, %v645, -inf
    %654 = vmax.xlane.f32.xlu0 %v653
    %v655 = vpop.xlane.xlu0 %654
    %v656 = vsel %vm252, %v650, -inf
    %657 = vmax.xlane.f32.xlu0 %v656
    %v658 = vpop.xlane.xlu0 %657
    %v659 = vsub.f32 %v645, %v655
    %v660 = vsub.f32 %v650, %v658
    %v661 = vmul.f32 %v659, 1.442695
    %v662 = vpow.pop %v661
    %v663 = vmul.f32 %v660, 1.442695
    %v664 = vpow.pop %v663
    %v665 = vsel %vm252, %v662, 0.0
    %666 = vadd.xlane.f32.xlu0 %v665
    %v667 = vpop.xlane.xlu0 %666
    %v668 = vsel %vm252, %v664, 0.0
    %669 = vadd.xlane.f32.xlu0 %v668
    %v670 = vpop.xlane.xlu0 %669
    %v671 = vrcp.pop %v667
    %v672 = vrcp.pop %v670
    %v673 = vmul.f32 %v662, %v671
    %v674 = vmul.f32 %v664, %v672
    %675 = vrot.lane.b32.xlu0 %v156, 48
    %v676 = vpop.permute.xlu0 %675
    %677 = vrot.lane.b32.xlu0 %v159, 48
    %v678 = vpop.permute.xlu0 %677
    %v682 = vsel %vm252, %v673, 0
    %v685 = vsel %vm252, %v674, 0
    %687 = vmatprep.subr.mxu0 0.0
    %688 = vmatpush1.msra.mxu0 %v676
    %689 = vmatprep.subr.mxu0 0.0
    %690 = vmatpush1.msra.mxu0 %v678
    %691 = vmatprep.subr.mxu0 0.0
    %692 = vmatpush1.msra.mxu0 0.0
    %693 = vmatprep.subr.mxu0 0.0
    %694 = vmatpush1.msra.mxu0 0.0
    %695 = vmatprep.subr.mxu0 0.0
    %696 = vmatpush1.msra.mxu0 0.0
    %697 = vmatprep.subr.mxu0 0.0
    %698 = vmatpush1.msra.mxu0 0.0
    %699 = vmatprep.subr.mxu0 0.0
    %700 = vmatpush1.msra.mxu0 0.0
    %701 = vmatprep.subr.mxu0 0.0
    %702 = vmatpush1.msra.mxu0 0.0
    %703 = vmatprep.subr.mxu0 0.0
    %704 = vmatpush1.msra.mxu0 0.0
    %705 = vmatprep.subr.mxu0 0.0
    %706 = vmatpush1.msra.mxu0 0.0
    %707 = vmatprep.subr.mxu0 0.0
    %708 = vmatpush1.msra.mxu0 0.0
    %709 = vmatprep.subr.mxu0 0.0
    %710 = vmatpush1.msra.mxu0 0.0
    %711 = vmatprep.subr.mxu0 0.0
    %712 = vmatpush1.msra.mxu0 0.0
    %713 = vmatprep.subr.mxu0 0.0
    %714 = vmatpush1.msra.mxu0 0.0
    %715 = vmatprep.subr.mxu0 0.0
    %716 = vmatpush1.msra.mxu0 0.0
    %717 = vmatprep.subr.mxu0 0.0
    %718 = vmatpush1.msra.mxu0 0.0
    %719 = vmatprep.subr.mxu0 0.0
    %720 = vmatpush1.msra.mxu0 0.0
    %721 = vmatprep.subr.mxu0 0.0
    %722 = vmatpush1.msra.mxu0 0.0
    %723 = vmatprep.subr.mxu0 0.0
    %724 = vmatpush1.msra.mxu0 0.0
    %725 = vmatprep.subr.mxu0 0.0
    %726 = vmatpush1.msra.mxu0 0.0
    %727 = vmatprep.subr.mxu0 0.0
    %728 = vmatpush1.msra.mxu0 0.0
    %729 = vmatprep.subr.mxu0 0.0
    %730 = vmatpush1.msra.mxu0 0.0
    %731 = vmatprep.subr.mxu0 0.0
    %732 = vmatpush1.msra.mxu0 0.0
    %733 = vmatprep.subr.mxu0 0.0
    %734 = vmatpush1.msra.mxu0 0.0
    %735 = vmatprep.subr.mxu0 0.0
    %736 = vmatpush1.msra.mxu0 0.0
    %737 = vmatprep.subr.mxu0 0.0
    %738 = vmatpush1.msra.mxu0 0.0
    %739 = vmatprep.subr.mxu0 0.0
    %740 = vmatpush1.msra.mxu0 0.0
    %741 = vmatprep.subr.mxu0 0.0
    %742 = vmatpush1.msra.mxu0 0.0
    %743 = vmatprep.subr.mxu0 0.0
    %744 = vmatpush1.msra.mxu0 0.0
    %745 = vmatprep.subr.mxu0 0.0
    %746 = vmatpush1.msra.mxu0 0.0
    %747 = vmatprep.subr.mxu0 0.0
    %748 = vmatpush1.msra.mxu0 0.0
    %749 = vmatprep.subr.mxu0 0.0
    %750 = vmatpush1.msra.mxu0 0.0
    %751 = vmatprep.mubr.f32.mxu0 0.0
    %752 = vmatmul.mubr.f32.gmra.mrb[0].mxu0 %v682
    %v753 = vpop.f32.mrb[0].mxu0
    %v754 = vadd.f32 0.0, %v753
    %v755 = vpop.f32.mrb[0].mxu0
    %756 = vmatprep.mubr.f32.mxu0 0.0
    %757 = vmatmul.mubr.f32.gmra.mrb[0].mxu0 %v685
    %v758 = vpop.f32.mrb[0].mxu0
    %v759 = vadd.f32 0.0, %v758
    %v760 = vpop.f32.mrb[0].mxu0
    %761 = vdwg.mxu0
    %762 = vrot.lane.b32.xlu0 %v156, 104
    %v763 = vpop.permute.xlu0 %762
    %764 = vrot.lane.b32.xlu0 %v159, 104
    %v765 = vpop.permute.xlu0 %764
    %766 = vrot.lane.b32.xlu0 %v156, 72
    %v767 = vpop.permute.xlu0 %766
    %768 = vrot.lane.b32.xlu0 %v159, 72
    %v769 = vpop.permute.xlu0 %768
    %v770 = vsel %vm168, %v763, 0
    %v772 = vsel %vm168, %v765, 0
    %v774 = vsel %vm168, %v767, 0
    %v776 = vsel %vm168, %v769, 0
    %778 = vmatprep.subr.mxu0 0.0
    %779 = vmatpush1.xpose.msra.mxu0 %v774
    %780 = vmatprep.subr.mxu0 0.0
    %781 = vmatpush1.xpose.msra.mxu0 %v776
    %782 = vmatprep.subr.mxu0 0.0
    %783 = vmatpush1.xpose.msra.mxu0 0.0
    %784 = vmatprep.subr.mxu0 0.0
    %785 = vmatpush1.xpose.msra.mxu0 0.0
    %786 = vmatprep.subr.mxu0 0.0
    %787 = vmatpush1.xpose.msra.mxu0 0.0
    %788 = vmatprep.subr.mxu0 0.0
    %789 = vmatpush1.xpose.msra.mxu0 0.0
    %790 = vmatprep.subr.mxu0 0.0
    %791 = vmatpush1.xpose.msra.mxu0 0.0
    %792 = vmatprep.subr.mxu0 0.0
    %793 = vmatpush1.xpose.msra.mxu0 0.0
    %794 = vmatprep.subr.mxu0 0.0
    %795 = vmatpush1.xpose.msra.mxu0 0.0
    %796 = vmatprep.subr.mxu0 0.0
    %797 = vmatpush1.xpose.msra.mxu0 0.0
    %798 = vmatprep.subr.mxu0 0.0
    %799 = vmatpush1.xpose.msra.mxu0 0.0
    %800 = vmatprep.subr.mxu0 0.0
    %801 = vmatpush1.xpose.msra.mxu0 0.0
    %802 = vmatprep.subr.mxu0 0.0
    %803 = vmatpush1.xpose.msra.mxu0 0.0
    %804 = vmatprep.subr.mxu0 0.0
    %805 = vmatpush1.xpose.msra.mxu0 0.0
    %806 = vmatprep.subr.mxu0 0.0
    %807 = vmatpush1.xpose.msra.mxu0 0.0
    %808 = vmatprep.subr.mxu0 0.0
    %809 = vmatpush1.xpose.msra.mxu0 0.0
    %810 = vmatprep.subr.mxu0 0.0
    %811 = vmatpush1.xpose.msra.mxu0 0.0
    %812 = vmatprep.subr.mxu0 0.0
    %813 = vmatpush1.xpose.msra.mxu0 0.0
    %814 = vmatprep.subr.mxu0 0.0
    %815 = vmatpush1.xpose.msra.mxu0 0.0
    %816 = vmatprep.subr.mxu0 0.0
    %817 = vmatpush1.xpose.msra.mxu0 0.0
    %818 = vmatprep.subr.mxu0 0.0
    %819 = vmatpush1.xpose.msra.mxu0 0.0
    %820 = vmatprep.subr.mxu0 0.0
    %821 = vmatpush1.xpose.msra.mxu0 0.0
    %822 = vmatprep.subr.mxu0 0.0
    %823 = vmatpush1.xpose.msra.mxu0 0.0
    %824 = vmatprep.subr.mxu0 0.0
    %825 = vmatpush1.xpose.msra.mxu0 0.0
    %826 = vmatprep.subr.mxu0 0.0
    %827 = vmatpush1.xpose.msra.mxu0 0.0
    %828 = vmatprep.subr.mxu0 0.0
    %829 = vmatpush1.xpose.msra.mxu0 0.0
    %830 = vmatprep.subr.mxu0 0.0
    %831 = vmatpush1.xpose.msra.mxu0 0.0
    %832 = vmatprep.subr.mxu0 0.0
    %833 = vmatpush1.xpose.msra.mxu0 0.0
    %834 = vmatprep.subr.mxu0 0.0
    %835 = vmatpush1.xpose.msra.mxu0 0.0
    %836 = vmatprep.subr.mxu0 0.0
    %837 = vmatpush1.xpose.msra.mxu0 0.0
    %838 = vmatprep.subr.mxu0 0.0
    %839 = vmatpush1.xpose.msra.mxu0 0.0
    %840 = vmatprep.subr.mxu0 0.0
    %841 = vmatpush1.xpose.msra.mxu0 0.0
    %842 = vmatprep.mubr.f32.mxu0 0.0
    %843 = vmatmul.mubr.f32.gmra.mrb[0].mxu0 %v770
    %v844 = vpop.f32.mrb[0].mxu0
    %v845 = vadd.f32 %v43, %v844
    %v846 = vpop.f32.mrb[0].mxu0
    %847 = vmatprep.mubr.f32.mxu0 0.0
    %848 = vmatmul.mubr.f32.gmra.mrb[0].mxu0 %v772
    %v849 = vpop.f32.mrb[0].mxu0
    %v850 = vadd.f32 %v44, %v849
    %v851 = vpop.f32.mrb[0].mxu0
    %852 = vdwg.mxu0
    %v853 = vsel %vm252, %v845, -inf
    %854 = vmax.xlane.f32.xlu0 %v853
    %v855 = vpop.xlane.xlu0 %854
    %v856 = vsel %vm252, %v850, -inf
    %857 = vmax.xlane.f32.xlu0 %v856
    %v858 = vpop.xlane.xlu0 %857
    %v859 = vsub.f32 %v845, %v855
    %v860 = vsub.f32 %v850, %v858
    %v861 = vmul.f32 %v859, 1.442695
    %v862 = vpow.pop %v861
    %v863 = vmul.f32 %v860, 1.442695
    %v864 = vpow.pop %v863
    %v865 = vsel %vm252, %v862, 0.0
    %866 = vadd.xlane.f32.xlu0 %v865
    %v867 = vpop.xlane.xlu0 %866
    %v868 = vsel %vm252, %v864, 0.0
    %869 = vadd.xlane.f32.xlu0 %v868
    %v870 = vpop.xlane.xlu0 %869
    %v871 = vrcp.pop %v867
    %v872 = vrcp.pop %v870
    %v873 = vmul.f32 %v862, %v871
    %v874 = vmul.f32 %v864, %v872
    %875 = vrot.lane.b32.xlu0 %v156, 40
    %v876 = vpop.permute.xlu0 %875
    %877 = vrot.lane.b32.xlu0 %v159, 40
    %v878 = vpop.permute.xlu0 %877
    %v882 = vsel %vm252, %v873, 0
    %v885 = vsel %vm252, %v874, 0
    %887 = vmatprep.subr.mxu0 0.0
    %888 = vmatpush1.msra.mxu0 %v876
    %889 = vmatprep.subr.mxu0 0.0
    %890 = vmatpush1.msra.mxu0 %v878
    %891 = vmatprep.subr.mxu0 0.0
    %892 = vmatpush1.msra.mxu0 0.0
    %893 = vmatprep.subr.mxu0 0.0
    %894 = vmatpush1.msra.mxu0 0.0
    %895 = vmatprep.subr.mxu0 0.0
    %896 = vmatpush1.msra.mxu0 0.0
    %897 = vmatprep.subr.mxu0 0.0
    %898 = vmatpush1.msra.mxu0 0.0
    %899 = vmatprep.subr.mxu0 0.0
    %900 = vmatpush1.msra.mxu0 0.0
    %901 = vmatprep.subr.mxu0 0.0
    %902 = vmatpush1.msra.mxu0 0.0
    %903 = vmatprep.subr.mxu0 0.0
    %904 = vmatpush1.msra.mxu0 0.0
    %905 = vmatprep.subr.mxu0 0.0
    %906 = vmatpush1.msra.mxu0 0.0
    %907 = vmatprep.subr.mxu0 0.0
    %908 = vmatpush1.msra.mxu0 0.0
    %909 = vmatprep.subr.mxu0 0.0
    %910 = vmatpush1.msra.mxu0 0.0
    %911 = vmatprep.subr.mxu0 0.0
    %912 = vmatpush1.msra.mxu0 0.0
    %913 = vmatprep.subr.mxu0 0.0
    %914 = vmatpush1.msra.mxu0 0.0
    %915 = vmatprep.subr.mxu0 0.0
    %916 = vmatpush1.msra.mxu0 0.0
    %917 = vmatprep.subr.mxu0 0.0
    %918 = vmatpush1.msra.mxu0 0.0
    %919 = vmatprep.subr.mxu0 0.0
    %920 = vmatpush1.msra.mxu0 0.0
    %921 = vmatprep.subr.mxu0 0.0
    %922 = vmatpush1.msra.mxu0 0.0
    %923 = vmatprep.subr.mxu0 0.0
    %924 = vmatpush1.msra.mxu0 0.0
    %925 = vmatprep.subr.mxu0 0.0
    %926 = vmatpush1.msra.mxu0 0.0
    %927 = vmatprep.subr.mxu0 0.0
    %928 = vmatpush1.msra.mxu0 0.0
    %929 = vmatprep.subr.mxu0 0.0
    %930 = vmatpush1.msra.mxu0 0.0
    %931 = vmatprep.subr.mxu0 0.0
    %932 = vmatpush1.msra.mxu0 0.0
    %933 = vmatprep.subr.mxu0 0.0
    %934 = vmatpush1.msra.mxu0 0.0
    %935 = vmatprep.subr.mxu0 0.0
    %936 = vmatpush1.msra.mxu0 0.0
    %937 = vmatprep.subr.mxu0 0.0
    %938 = vmatpush1.msra.mxu0 0.0
    %939 = vmatprep.subr.mxu0 0.0
    %940 = vmatpush1.msra.mxu0 0.0
    %941 = vmatprep.subr.mxu0 0.0
    %942 = vmatpush1.msra.mxu0 0.0
    %943 = vmatprep.subr.mxu0 0.0
    %944 = vmatpush1.msra.mxu0 0.0
    %945 = vmatprep.subr.mxu0 0.0
    %946 = vmatpush1.msra.mxu0 0.0
    %947 = vmatprep.subr.mxu0 0.0
    %948 = vmatpush1.msra.mxu0 0.0
    %949 = vmatprep.subr.mxu0 0.0
    %950 = vmatpush1.msra.mxu0 0.0
    %951 = vmatprep.mubr.f32.mxu0 0.0
    %952 = vmatmul.mubr.f32.gmra.mrb[0].mxu0 %v882
    %v953 = vpop.f32.mrb[0].mxu0
    %v954 = vadd.f32 0.0, %v953
    %v955 = vpop.f32.mrb[0].mxu0
    %956 = vmatprep.mubr.f32.mxu0 0.0
    %957 = vmatmul.mubr.f32.gmra.mrb[0].mxu0 %v885
    %v958 = vpop.f32.mrb[0].mxu0
    %v959 = vadd.f32 0.0, %v958
    %v960 = vpop.f32.mrb[0].mxu0
    %961 = vdwg.mxu0
    %964 = vrot.lane.b32.xlu0 %v554, 8
    %v965 = vpop.permute.xlu0 %964
    %966 = vrot.lane.b32.xlu0 %v559, 8
    %v967 = vpop.permute.xlu0 %966
    %972 = vrot.lane.b32.xlu0 %v754, 16
    %v973 = vpop.permute.xlu0 %972
    %974 = vrot.lane.b32.xlu0 %v759, 16
    %v975 = vpop.permute.xlu0 %974
    %980 = vrot.lane.b32.xlu0 %v954, 24
    %v981 = vpop.permute.xlu0 %980
    %982 = vrot.lane.b32.xlu0 %v959, 24
    %v983 = vpop.permute.xlu0 %982
    %v986 = vsel %vm168, %v354, %v965
    %v987 = vsel %vm168, %v359, %v967
    %v988 = vsel %vm252, %v986, %v973
    %v989 = vsel %vm252, %v987, %v975
    %vm990 = vcmask 195584
    %v991 = vsel %vm990, %v988, %v981
    %v992 = vsel %vm990, %v989, %v983
    %v993 = vpack.c.bf16 %v992, %v991
    %v994 = vld [vmem:[%s5] sm:$0xf]
    %v995 = vld [vmem:[%s5 + $0x4] sm:$0xf]
    %v996 = vld [vmem:[%s5 + $0x8] sm:$0xf]
    %v997 = vld [vmem:[%s5 + $0xc] sm:$0xf]
    %v998 = vld [vmem:[%s6] sm:$0x1]
    %v999 = vlaneseq
    %v1000 = vshrl.u32 %v999, 7
    %v1001 = vsub.s32 0, %v1000
    %v1002 = vrot.slane %v998, %v1001
    %v1007 = vunpack.c.l.b16 %v994
    %v1008 = vunpack.c.l.b16 %v995
    %v1009 = vunpack.c.l.b16 %v996
    %v1010 = vunpack.c.l.b16 %v997
    %v1011 = vpack.c.b16 %v1008, %v1007
    %v1012 = vpack.c.b16 %v1010, %v1009
    %v1016 = vsel %vm51, %v993, 0
    %1018 = vmatprep.subr.bf16.mxu0 0
    %1019 = vmatpush1.bf16.msra.mxu0 %v1011
    %1020 = vmatprep.subr.bf16.mxu0 0
    %1021 = vmatpush1.bf16.msra.mxu0 %v1012
    %1022 = vmatprep.subr.bf16.mxu0 0
    %1023 = vmatpush1.bf16.msra.mxu0 0
    %1024 = vmatprep.subr.bf16.mxu0 0
    %1025 = vmatpush1.bf16.msra.mxu0 0
    %1026 = vmatprep.subr.bf16.mxu0 0
    %1027 = vmatpush1.bf16.msra.mxu0 0
    %1028 = vmatprep.subr.bf16.mxu0 0
    %1029 = vmatpush1.bf16.msra.mxu0 0
    %1030 = vmatprep.subr.bf16.mxu0 0
    %1031 = vmatpush1.bf16.msra.mxu0 0
    %1032 = vmatprep.subr.bf16.mxu0 0
    %1033 = vmatpush1.bf16.msra.mxu0 0
    %1034 = vmatprep.subr.bf16.mxu0 0
    %1035 = vmatpush1.bf16.msra.mxu0 0
    %1036 = vmatprep.subr.bf16.mxu0 0
    %1037 = vmatpush1.bf16.msra.mxu0 0
    %1038 = vmatprep.subr.bf16.mxu0 0
    %1039 = vmatpush1.bf16.msra.mxu0 0
    %1040 = vmatprep.subr.bf16.mxu0 0
    %1041 = vmatpush1.bf16.msra.mxu0 0
    %1042 = vmatprep.subr.bf16.mxu0 0
    %1043 = vmatpush1.bf16.msra.mxu0 0
    %1044 = vmatprep.subr.bf16.mxu0 0
    %1045 = vmatpush1.bf16.msra.mxu0 0
    %1046 = vmatprep.subr.bf16.mxu0 0
    %1047 = vmatpush1.bf16.msra.mxu0 0
    %1048 = vmatprep.subr.bf16.mxu0 0
    %1049 = vmatpush1.bf16.msra.mxu0 0
    %1050 = vmatprep.mubr.bf16.mxu0 0
    %1051 = vmatmul.mubr.bf16.gmra.mrb[0].mxu0 %v1016
    %v1052 = vpop.f32.mrb[0].mxu0
    %v1053 = vadd.f32 %v1002, %v1052
    %v1054 = vpop.f32.mrb[0].mxu0
    %v1055 = vpop.f32.mrb[0].mxu0
    %v1056 = vadd.f32 %v1002, %v1055
    %v1057 = vpop.f32.mrb[0].mxu0
    %1058 = vdwg.mxu0
    %v1059 = vadd.f32 %v92, %v1053
    %v1060 = vadd.f32 %v93, %v1056
    %v1061 = vld [vmem:[%s6 + $0x1] sm:$0x1]
    %v1062 = vld [vmem:[%s6 + $0x2] sm:$0x1]
    %v1063 = vmul.f32 %v1059, %v1059
    %v1064 = vmul.f32 %v1060, %v1060
    %v1065 = vsel %vm51, %v1059, 0.0
    %1066 = vadd.xlane.f32.xlu0 %v1065
    %v1067 = vpop.xlane.xlu0 %1066
    %v1068 = vsel %vm51, %v1060, 0.0
    %1069 = vadd.xlane.f32.xlu0 %v1068
    %v1070 = vpop.xlane.xlu0 %1069
    %v1071 = vsel %vm51, %v1063, 0.0
    %1072 = vadd.xlane.f32.xlu0 %v1071
    %v1073 = vpop.xlane.xlu0 %1072
    %v1074 = vsel %vm51, %v1064, 0.0
    %1075 = vadd.xlane.f32.xlu0 %v1074
    %v1076 = vpop.xlane.xlu0 %1075
    %v1077 = vmul.f32 %v1067, 0.03125
    %v1078 = vmul.f32 %v1070, 0.03125
    %v1079 = vmul.f32 %v1073, 0.03125
    %v1080 = vmul.f32 %v1076, 0.03125
    %v1081 = vmul.f32 %v1077, %v1077
    %v1082 = vmul.f32 %v1078, %v1078
    %v1083 = vsub.f32 %v1079, %v1081
    %v1084 = vsub.f32 %v1080, %v1082
    %v1085 = vmax.f32 %v1083, 0.0
    %v1086 = vmax.f32 %v1084, 0.0
    %v1087 = vsub.f32 %v1059, %v1077
    %v1088 = vsub.f32 %v1060, %v1078
    %v1089 = vadd.f32 %v1085, 1e-12
    %v1090 = vadd.f32 %v1086, 1e-12
    %v1091 = vrsqrt.pop %v1089
    %v1092 = vrsqrt.pop %v1090
    %v1093 = vmul.f32 %v1087, %v1091
    %v1094 = vmul.f32 %v1088, %v1092
    %v1095 = vlaneseq
    %v1096 = vshrl.u32 %v1095, 7
    %v1097 = vsub.s32 0, %v1096
    %v1098 = vrot.slane %v1061, %v1097
    %v1099 = vmul.f32 %v1093, %v1098
    %v1100 = vmul.f32 %v1094, %v1098
    %v1101 = vlaneseq
    %v1102 = vshrl.u32 %v1101, 7
    %v1103 = vsub.s32 0, %v1102
    %v1104 = vrot.slane %v1062, %v1103
    %v1105 = vadd.f32 %v1099, %v1104
    %v1106 = vadd.f32 %v1100, %v1104
    %v1107 = vpack.c.bf16 %v1106, %v1105
    %v1108 = vld [vmem:[%s7] sm:$0xf]
    %v1109 = vld [vmem:[%s7 + $0x4] sm:$0xf]
    %v1110 = vld [vmem:[%s7 + $0x8] sm:$0xf]
    %v1111 = vld [vmem:[%s7 + $0xc] sm:$0xf]
    %v1112 = vld [vmem:[%s8] sm:$0x1]
    %v1114 = vlaneseq
    %v1115 = vshrl.u32 %v1114, 7
    %v1116 = vsub.s32 0, %v1115
    %v1117 = vrot.slane %v1112, %v1116
    %v1123 = vunpack.c.l.b16 %v1108
    %v1124 = vunpack.c.l.b16 %v1109
    %v1125 = vunpack.c.l.b16 %v1110
    %v1126 = vunpack.c.l.b16 %v1111
    %v1127 = vpack.c.b16 %v1124, %v1123
    %v1128 = vpack.c.b16 %v1126, %v1125
    %v1132 = vsel %vm51, %v1107, 0
    %1134 = vmatprep.subr.bf16.mxu0 0
    %1135 = vmatpush1.bf16.msra.mxu0 %v1127
    %1136 = vmatprep.subr.bf16.mxu0 0
    %1137 = vmatpush1.bf16.msra.mxu0 %v1128
    %1138 = vmatprep.subr.bf16.mxu0 0
    %1139 = vmatpush1.bf16.msra.mxu0 0
    %1140 = vmatprep.subr.bf16.mxu0 0
    %1141 = vmatpush1.bf16.msra.mxu0 0
    %1142 = vmatprep.subr.bf16.mxu0 0
    %1143 = vmatpush1.bf16.msra.mxu0 0
    %1144 = vmatprep.subr.bf16.mxu0 0
    %1145 = vmatpush1.bf16.msra.mxu0 0
    %1146 = vmatprep.subr.bf16.mxu0 0
    %1147 = vmatpush1.bf16.msra.mxu0 0
    %1148 = vmatprep.subr.bf16.mxu0 0
    %1149 = vmatpush1.bf16.msra.mxu0 0
    %1150 = vmatprep.subr.bf16.mxu0 0
    %1151 = vmatpush1.bf16.msra.mxu0 0
    %1152 = vmatprep.subr.bf16.mxu0 0
    %1153 = vmatpush1.bf16.msra.mxu0 0
    %1154 = vmatprep.subr.bf16.mxu0 0
    %1155 = vmatpush1.bf16.msra.mxu0 0
    %1156 = vmatprep.subr.bf16.mxu0 0
    %1157 = vmatpush1.bf16.msra.mxu0 0
    %1158 = vmatprep.subr.bf16.mxu0 0
    %1159 = vmatpush1.bf16.msra.mxu0 0
    %1160 = vmatprep.subr.bf16.mxu0 0
    %1161 = vmatpush1.bf16.msra.mxu0 0
    %1162 = vmatprep.subr.bf16.mxu0 0
    %1163 = vmatpush1.bf16.msra.mxu0 0
    %1164 = vmatprep.subr.bf16.mxu0 0
    %1165 = vmatpush1.bf16.msra.mxu0 0
    %1166 = vmatprep.mubr.bf16.mxu0 0
    %1167 = vmatmul.mubr.bf16.gmra.mrb[0].mxu0 %v1132
    %v1168 = vpop.f32.mrb[0].mxu0
    %v1169 = vadd.f32 %v1117, %v1168
    %v1170 = vpop.f32.mrb[0].mxu0
    %v1171 = vpop.f32.mrb[0].mxu0
    %v1172 = vadd.f32 %v1117, %v1171
    %v1173 = vpop.f32.mrb[0].mxu0
    %1174 = vdwg.mxu0
    %v1175 = vmul.f32 %v1169, %v1169
    %v1176 = vmul.f32 %v1172, %v1172
    %v1177 = vmul.f32 %v1169, %v1175
    %v1178 = vmul.f32 %v1172, %v1176
    %v1179 = vmul.f32 %v1177, 0.044715
    %v1180 = vmul.f32 %v1178, 0.044715
    %v1181 = vadd.f32 %v1169, %v1179
    %v1182 = vadd.f32 %v1172, %v1180
    %v1183 = vmul.f32 %v1181, 0.7978846
    %v1184 = vmul.f32 %v1182, 0.7978846
    %v1185 = vtanh.pop %v1183
    %v1186 = vtanh.pop %v1184
    %v1187 = vadd.f32 %v1185, 1.0
    %v1188 = vadd.f32 %v1186, 1.0
    %v1189 = vmul.f32 %v1187, 0.5
    %v1190 = vmul.f32 %v1188, 0.5
    %v1191 = vmul.f32 %v1169, %v1189
    %v1192 = vmul.f32 %v1172, %v1190
    %v1193 = vpack.c.bf16 %v1192, %v1191
    %v1194 = vld [vmem:[%s9] sm:$0xf]
    %v1195 = vld [vmem:[%s9 + $0x4] sm:$0xf]
    %v1196 = vld [vmem:[%s9 + $0x8] sm:$0xf]
    %v1197 = vld [vmem:[%s9 + $0xc] sm:$0xf]
    %v1198 = vld [vmem:[%s9 + $0x10] sm:$0xf]
    %v1199 = vld [vmem:[%s9 + $0x14] sm:$0xf]
    %v1200 = vld [vmem:[%s9 + $0x18] sm:$0xf]
    %v1201 = vld [vmem:[%s9 + $0x1c] sm:$0xf]
    %v1202 = vld [vmem:[%s9 + $0x20] sm:$0xf]
    %v1203 = vld [vmem:[%s9 + $0x24] sm:$0xf]
    %v1204 = vld [vmem:[%s9 + $0x28] sm:$0xf]
    %v1205 = vld [vmem:[%s9 + $0x2c] sm:$0xf]
    %v1206 = vld [vmem:[%s9 + $0x30] sm:$0xf]
    %v1207 = vld [vmem:[%s9 + $0x34] sm:$0xf]
    %v1208 = vld [vmem:[%s9 + $0x38] sm:$0xf]
    %v1209 = vld [vmem:[%s9 + $0x3c] sm:$0xf]
    %v1210 = vld [vmem:[%s6 + $0x3] sm:$0x1]
    %v1211 = vlaneseq
    %v1212 = vshrl.u32 %v1211, 7
    %v1213 = vsub.s32 0, %v1212
    %v1214 = vrot.slane %v1210, %v1213
    %v1231 = vunpack.c.l.b16 %v1194
    %v1232 = vunpack.c.l.b16 %v1195
    %v1233 = vunpack.c.l.b16 %v1196
    %v1234 = vunpack.c.l.b16 %v1197
    %v1235 = vunpack.c.l.b16 %v1198
    %v1236 = vunpack.c.l.b16 %v1199
    %v1237 = vunpack.c.l.b16 %v1200
    %v1238 = vunpack.c.l.b16 %v1201
    %v1239 = vunpack.c.l.b16 %v1202
    %v1240 = vunpack.c.l.b16 %v1203
    %v1241 = vunpack.c.l.b16 %v1204
    %v1242 = vunpack.c.l.b16 %v1205
    %v1243 = vunpack.c.l.b16 %v1206
    %v1244 = vunpack.c.l.b16 %v1207
    %v1245 = vunpack.c.l.b16 %v1208
    %v1246 = vunpack.c.l.b16 %v1209
    %v1247 = vpack.c.b16 %v1232, %v1231
    %v1248 = vpack.c.b16 %v1234, %v1233
    %v1249 = vpack.c.b16 %v1236, %v1235
    %v1250 = vpack.c.b16 %v1238, %v1237
    %v1251 = vpack.c.b16 %v1240, %v1239
    %v1252 = vpack.c.b16 %v1242, %v1241
    %v1253 = vpack.c.b16 %v1244, %v1243
    %v1254 = vpack.c.b16 %v1246, %v1245
    %1263 = vmatprep.subr.bf16.mxu0 0
    %1264 = vmatpush1.bf16.msra.mxu0 %v1247
    %1265 = vmatprep.subr.bf16.mxu0 0
    %1266 = vmatpush1.bf16.msra.mxu0 %v1248
    %1267 = vmatprep.subr.bf16.mxu0 0
    %1268 = vmatpush1.bf16.msra.mxu0 %v1249
    %1269 = vmatprep.subr.bf16.mxu0 0
    %1270 = vmatpush1.bf16.msra.mxu0 %v1250
    %1271 = vmatprep.subr.bf16.mxu0 0
    %1272 = vmatpush1.bf16.msra.mxu0 %v1251
    %1273 = vmatprep.subr.bf16.mxu0 0
    %1274 = vmatpush1.bf16.msra.mxu0 %v1252
    %1275 = vmatprep.subr.bf16.mxu0 0
    %1276 = vmatpush1.bf16.msra.mxu0 %v1253
    %1277 = vmatprep.subr.bf16.mxu0 0
    %1278 = vmatpush1.bf16.msra.mxu0 %v1254
    %1279 = vmatprep.subr.bf16.mxu0 0
    %1280 = vmatpush1.bf16.msra.mxu0 0
    %1281 = vmatprep.subr.bf16.mxu0 0
    %1282 = vmatpush1.bf16.msra.mxu0 0
    %1283 = vmatprep.subr.bf16.mxu0 0
    %1284 = vmatpush1.bf16.msra.mxu0 0
    %1285 = vmatprep.subr.bf16.mxu0 0
    %1286 = vmatpush1.bf16.msra.mxu0 0
    %1287 = vmatprep.subr.bf16.mxu0 0
    %1288 = vmatpush1.bf16.msra.mxu0 0
    %1289 = vmatprep.subr.bf16.mxu0 0
    %1290 = vmatpush1.bf16.msra.mxu0 0
    %1291 = vmatprep.subr.bf16.mxu0 0
    %1292 = vmatpush1.bf16.msra.mxu0 0
    %1293 = vmatprep.subr.bf16.mxu0 0
    %1294 = vmatpush1.bf16.msra.mxu0 0
    %1295 = vmatprep.mubr.bf16.mxu0 0
    %1296 = vmatmul.mubr.bf16.gmra.mrb[0].mxu0 %v1193
    %v1297 = vpop.f32.mrb[0].mxu0
    %v1298 = vadd.f32 %v1214, %v1297
    %v1299 = vpop.f32.mrb[0].mxu0
    %v1300 = vpop.f32.mrb[0].mxu0
    %v1301 = vadd.f32 %v1214, %v1300
    %v1302 = vpop.f32.mrb[0].mxu0
    %1303 = vdwg.mxu0
    %v1304 = vadd.f32 %v1105, %v1298
    %v1305 = vadd.f32 %v1106, %v1301
    %v1306 = vld [vmem:[%s6 + $0x4] sm:$0x1]
    %v1307 = vld [vmem:[%s6 + $0x5] sm:$0x1]
    %v1308 = vmul.f32 %v1304, %v1304
    %v1309 = vmul.f32 %v1305, %v1305
    %v1310 = vsel %vm51, %v1304, 0.0
    %1311 = vadd.xlane.f32.xlu0 %v1310
    %v1312 = vpop.xlane.xlu0 %1311
    %v1313 = vsel %vm51, %v1305, 0.0
    %1314 = vadd.xlane.f32.xlu0 %v1313
    %v1315 = vpop.xlane.xlu0 %1314
    %v1316 = vsel %vm51, %v1308, 0.0
    %1317 = vadd.xlane.f32.xlu0 %v1316
    %v1318 = vpop.xlane.xlu0 %1317
    %v1319 = vsel %vm51, %v1309, 0.0
    %1320 = vadd.xlane.f32.xlu0 %v1319
    %v1321 = vpop.xlane.xlu0 %1320
    %v1322 = vmul.f32 %v1312, 0.03125
    %v1323 = vmul.f32 %v1315, 0.03125
    %v1324 = vmul.f32 %v1318, 0.03125
    %v1325 = vmul.f32 %v1321, 0.03125
    %v1326 = vmul.f32 %v1322, %v1322
    %v1327 = vmul.f32 %v1323, %v1323
    %v1328 = vsub.f32 %v1324, %v1326
    %v1329 = vsub.f32 %v1325, %v1327
    %v1330 = vmax.f32 %v1328, 0.0
    %v1331 = vmax.f32 %v1329, 0.0
    %v1332 = vsub.f32 %v1304, %v1322
    %v1333 = vsub.f32 %v1305, %v1323
    %v1334 = vadd.f32 %v1330, 1e-12
    %v1335 = vadd.f32 %v1331, 1e-12
    %v1336 = vrsqrt.pop %v1334
    %v1337 = vrsqrt.pop %v1335
    %v1338 = vmul.f32 %v1332, %v1336
    %v1339 = vmul.f32 %v1333, %v1337
    %v1340 = vlaneseq
    %v1341 = vshrl.u32 %v1340, 7
    %v1342 = vsub.s32 0, %v1341
    %v1343 = vrot.slane %v1306, %v1342
    %v1344 = vmul.f32 %v1338, %v1343
    %v1345 = vmul.f32 %v1339, %v1343
    %v1346 = vlaneseq
    %v1347 = vshrl.u32 %v1346, 7
    %v1348 = vsub.s32 0, %v1347
    %v1349 = vrot.slane %v1307, %v1348
    %v1350 = vadd.f32 %v1344, %v1349
    %v1351 = vadd.f32 %v1345, %v1349
    %v1352 = vpack.c.bf16 %v1351, %v1350
    %s1353 = scalar_lea.vmem %s3, 16
    %v1354 = vld [vmem:[%s1353] sm:$0xf]
    %v1355 = vld [vmem:[%s1353 + $0x4] sm:$0xf]
    %v1356 = vld [vmem:[%s1353 + $0x8] sm:$0xf]
    %v1357 = vld [vmem:[%s1353 + $0xc] sm:$0xf]
    %s1358 = scalar_lea.vmem %s4, 1
    %v1359 = vld [vmem:[%s1358] sm:$0x1]
    %v1361 = vlaneseq
    %v1362 = vshrl.u32 %v1361, 7
    %v1363 = vsub.s32 0, %v1362
    %v1364 = vrot.slane %v1359, %v1363
    %v1370 = vunpack.c.l.b16 %v1354
    %v1371 = vunpack.c.l.b16 %v1355
    %v1372 = vunpack.c.l.b16 %v1356
    %v1373 = vunpack.c.l.b16 %v1357
    %v1374 = vpack.c.b16 %v1371, %v1370
    %v1375 = vpack.c.b16 %v1373, %v1372
    %v1379 = vsel %vm51, %v1352, 0
    %1381 = vmatprep.subr.bf16.mxu0 0
    %1382 = vmatpush1.bf16.msra.mxu0 %v1374
    %1383 = vmatprep.subr.bf16.mxu0 0
    %1384 = vmatpush1.bf16.msra.mxu0 %v1375
    %1385 = vmatprep.subr.bf16.mxu0 0
    %1386 = vmatpush1.bf16.msra.mxu0 0
    %1387 = vmatprep.subr.bf16.mxu0 0
    %1388 = vmatpush1.bf16.msra.mxu0 0
    %1389 = vmatprep.subr.bf16.mxu0 0
    %1390 = vmatpush1.bf16.msra.mxu0 0
    %1391 = vmatprep.subr.bf16.mxu0 0
    %1392 = vmatpush1.bf16.msra.mxu0 0
    %1393 = vmatprep.subr.bf16.mxu0 0
    %1394 = vmatpush1.bf16.msra.mxu0 0
    %1395 = vmatprep.subr.bf16.mxu0 0
    %1396 = vmatpush1.bf16.msra.mxu0 0
    %1397 = vmatprep.subr.bf16.mxu0 0
    %1398 = vmatpush1.bf16.msra.mxu0 0
    %1399 = vmatprep.subr.bf16.mxu0 0
    %1400 = vmatpush1.bf16.msra.mxu0 0
    %1401 = vmatprep.subr.bf16.mxu0 0
    %1402 = vmatpush1.bf16.msra.mxu0 0
    %1403 = vmatprep.subr.bf16.mxu0 0
    %1404 = vmatpush1.bf16.msra.mxu0 0
    %1405 = vmatprep.subr.bf16.mxu0 0
    %1406 = vmatpush1.bf16.msra.mxu0 0
    %1407 = vmatprep.subr.bf16.mxu0 0
    %1408 = vmatpush1.bf16.msra.mxu0 0
    %1409 = vmatprep.subr.bf16.mxu0 0
    %1410 = vmatpush1.bf16.msra.mxu0 0
    %1411 = vmatprep.subr.bf16.mxu0 0
    %1412 = vmatpush1.bf16.msra.mxu0 0
    %1413 = vmatprep.mubr.bf16.mxu0 0
    %1414 = vmatmul.mubr.bf16.gmra.mrb[0].mxu0 %v1379
    %v1415 = vpop.f32.mrb[0].mxu0
    %v1416 = vadd.f32 %v1364, %v1415
    %v1417 = vpop.f32.mrb[0].mxu0
    %v1418 = vpop.f32.mrb[0].mxu0
    %v1419 = vadd.f32 %v1364, %v1418
    %v1420 = vpop.f32.mrb[0].mxu0
    %1421 = vdwg.mxu0
    %1424 = vrot.lane.b32.xlu0 %v1416, 96
    %v1425 = vpop.permute.xlu0 %1424
    %1426 = vrot.lane.b32.xlu0 %v1419, 96
    %v1427 = vpop.permute.xlu0 %1426
    %v1428 = vsel %vm168, %v1416, 0
    %v1430 = vsel %vm168, %v1419, 0
    %v1432 = vsel %vm168, %v1425, 0
    %v1434 = vsel %vm168, %v1427, 0
    %1436 = vmatprep.subr.mxu0 0.0
    %1437 = vmatpush1.xpose.msra.mxu0 %v1432
    %1438 = vmatprep.subr.mxu0 0.0
    %1439 = vmatpush1.xpose.msra.mxu0 %v1434
    %1440 = vmatprep.subr.mxu0 0.0
    %1441 = vmatpush1.xpose.msra.mxu0 0.0
    %1442 = vmatprep.subr.mxu0 0.0
    %1443 = vmatpush1.xpose.msra.mxu0 0.0
    %1444 = vmatprep.subr.mxu0 0.0
    %1445 = vmatpush1.xpose.msra.mxu0 0.0
    %1446 = vmatprep.subr.mxu0 0.0
    %1447 = vmatpush1.xpose.msra.mxu0 0.0
    %1448 = vmatprep.subr.mxu0 0.0
    %1449 = vmatpush1.xpose.msra.mxu0 0.0
    %1450 = vmatprep.subr.mxu0 0.0
    %1451 = vmatpush1.xpose.msra.mxu0 0.0
    %1452 = vmatprep.subr.mxu0 0.0
    %1453 = vmatpush1.xpose.msra.mxu0 0.0
    %1454 = vmatprep.subr.mxu0 0.0
    %1455 = vmatpush1.xpose.msra.mxu0 0.0
    %1456 = vmatprep.subr.mxu0 0.0
    %1457 = vmatpush1.xpose.msra.mxu0 0.0
    %1458 = vmatprep.subr.mxu0 0.0
    %1459 = vmatpush1.xpose.msra.mxu0 0.0
    %1460 = vmatprep.subr.mxu0 0.0
    %1461 = vmatpush1.xpose.msra.mxu0 0.0
    %1462 = vmatprep.subr.mxu0 0.0
    %1463 = vmatpush1.xpose.msra.mxu0 0.0
    %1464 = vmatprep.subr.mxu0 0.0
    %1465 = vmatpush1.xpose.msra.mxu0 0.0
    %1466 = vmatprep.subr.mxu0 0.0
    %1467 = vmatpush1.xpose.msra.mxu0 0.0
    %1468 = vmatprep.subr.mxu0 0.0
    %1469 = vmatpush1.xpose.msra.mxu0 0.0
    %1470 = vmatprep.subr.mxu0 0.0
    %1471 = vmatpush1.xpose.msra.mxu0 0.0
    %1472 = vmatprep.subr.mxu0 0.0
    %1473 = vmatpush1.xpose.msra.mxu0 0.0
    %1474 = vmatprep.subr.mxu0 0.0
    %1475 = vmatpush1.xpose.msra.mxu0 0.0
    %1476 = vmatprep.subr.mxu0 0.0
    %1477 = vmatpush1.xpose.msra.mxu0 0.0
    %1478 = vmatprep.subr.mxu0 0.0
    %1479 = vmatpush1.xpose.msra.mxu0 0.0
    %1480 = vmatprep.subr.mxu0 0.0
    %1481 = vmatpush1.xpose.msra.mxu0 0.0
    %1482 = vmatprep.subr.mxu0 0.0
    %1483 = vmatpush1.xpose.msra.mxu0 0.0
    %1484 = vmatprep.subr.mxu0 0.0
    %1485 = vmatpush1.xpose.msra.mxu0 0.0
    %1486 = vmatprep.subr.mxu0 0.0
    %1487 = vmatpush1.xpose.msra.mxu0 0.0
    %1488 = vmatprep.subr.mxu0 0.0
    %1489 = vmatpush1.xpose.msra.mxu0 0.0
    %1490 = vmatprep.subr.mxu0 0.0
    %1491 = vmatpush1.xpose.msra.mxu0 0.0
    %1492 = vmatprep.subr.mxu0 0.0
    %1493 = vmatpush1.xpose.msra.mxu0 0.0
    %1494 = vmatprep.subr.mxu0 0.0
    %1495 = vmatpush1.xpose.msra.mxu0 0.0
    %1496 = vmatprep.subr.mxu0 0.0
    %1497 = vmatpush1.xpose.msra.mxu0 0.0
    %1498 = vmatprep.subr.mxu0 0.0
    %1499 = vmatpush1.xpose.msra.mxu0 0.0
    %1500 = vmatprep.mubr.f32.mxu0 0.0
    %1501 = vmatmul.mubr.f32.gmra.mrb[0].mxu0 %v1428
    %v1502 = vpop.f32.mrb[0].mxu0
    %v1503 = vadd.f32 %v43, %v1502
    %v1504 = vpop.f32.mrb[0].mxu0
    %1505 = vmatprep.mubr.f32.mxu0 0.0
    %1506 = vmatmul.mubr.f32.gmra.mrb[0].mxu0 %v1430
    %v1507 = vpop.f32.mrb[0].mxu0
    %v1508 = vadd.f32 %v44, %v1507
    %v1509 = vpop.f32.mrb[0].mxu0
    %1510 = vdwg.mxu0
    %v1511 = vsel %vm252, %v1503, -inf
    %1512 = vmax.xlane.f32.xlu0 %v1511
    %v1513 = vpop.xlane.xlu0 %1512
    %v1514 = vsel %vm252, %v1508, -inf
    %1515 = vmax.xlane.f32.xlu0 %v1514
    %v1516 = vpop.xlane.xlu0 %1515
    %v1517 = vsub.f32 %v1503, %v1513
    %v1518 = vsub.f32 %v1508, %v1516
    %v1519 = vmul.f32 %v1517, 1.442695
    %v1520 = vpow.pop %v1519
    %v1521 = vmul.f32 %v1518, 1.442695
    %v1522 = vpow.pop %v1521
    %v1523 = vsel %vm252, %v1520, 0.0
    %1524 = vadd.xlane.f32.xlu0 %v1523
    %v1525 = vpop.xlane.xlu0 %1524
    %v1526 = vsel %vm252, %v1522, 0.0
    %1527 = vadd.xlane.f32.xlu0 %v1526
    %v1528 = vpop.xlane.xlu0 %1527
    %v1529 = vrcp.pop %v1525
    %v1530 = vrcp.pop %v1528
    %v1531 = vmul.f32 %v1520, %v1529
    %v1532 = vmul.f32 %v1522, %v1530
    %1533 = vrot.lane.b32.xlu0 %v1416, 64
    %v1534 = vpop.permute.xlu0 %1533
    %1535 = vrot.lane.b32.xlu0 %v1419, 64
    %v1536 = vpop.permute.xlu0 %1535
    %v1540 = vsel %vm252, %v1531, 0
    %v1543 = vsel %vm252, %v1532, 0
    %1545 = vmatprep.subr.mxu0 0.0
    %1546 = vmatpush1.msra.mxu0 %v1534
    %1547 = vmatprep.subr.mxu0 0.0
    %1548 = vmatpush1.msra.mxu0 %v1536
    %1549 = vmatprep.subr.mxu0 0.0
    %1550 = vmatpush1.msra.mxu0 0.0
    %1551 = vmatprep.subr.mxu0 0.0
    %1552 = vmatpush1.msra.mxu0 0.0
    %1553 = vmatprep.subr.mxu0 0.0
    %1554 = vmatpush1.msra.mxu0 0.0
    %1555 = vmatprep.subr.mxu0 0.0
    %1556 = vmatpush1.msra.mxu0 0.0
    %1557 = vmatprep.subr.mxu0 0.0
    %1558 = vmatpush1.msra.mxu0 0.0
    %1559 = vmatprep.subr.mxu0 0.0
    %1560 = vmatpush1.msra.mxu0 0.0
    %1561 = vmatprep.subr.mxu0 0.0
    %1562 = vmatpush1.msra.mxu0 0.0
    %1563 = vmatprep.subr.mxu0 0.0
    %1564 = vmatpush1.msra.mxu0 0.0
    %1565 = vmatprep.subr.mxu0 0.0
    %1566 = vmatpush1.msra.mxu0 0.0
    %1567 = vmatprep.subr.mxu0 0.0
    %1568 = vmatpush1.msra.mxu0 0.0
    %1569 = vmatprep.subr.mxu0 0.0
    %1570 = vmatpush1.msra.mxu0 0.0
    %1571 = vmatprep.subr.mxu0 0.0
    %1572 = vmatpush1.msra.mxu0 0.0
    %1573 = vmatprep.subr.mxu0 0.0
    %1574 = vmatpush1.msra.mxu0 0.0
    %1575 = vmatprep.subr.mxu0 0.0
    %1576 = vmatpush1.msra.mxu0 0.0
    %1577 = vmatprep.subr.mxu0 0.0
    %1578 = vmatpush1.msra.mxu0 0.0
    %1579 = vmatprep.subr.mxu0 0.0
    %1580 = vmatpush1.msra.mxu0 0.0
    %1581 = vmatprep.subr.mxu0 0.0
    %1582 = vmatpush1.msra.mxu0 0.0
    %1583 = vmatprep.subr.mxu0 0.0
    %1584 = vmatpush1.msra.mxu0 0.0
    %1585 = vmatprep.subr.mxu0 0.0
    %1586 = vmatpush1.msra.mxu0 0.0
    %1587 = vmatprep.subr.mxu0 0.0
    %1588 = vmatpush1.msra.mxu0 0.0
    %1589 = vmatprep.subr.mxu0 0.0
    %1590 = vmatpush1.msra.mxu0 0.0
    %1591 = vmatprep.subr.mxu0 0.0
    %1592 = vmatpush1.msra.mxu0 0.0
    %1593 = vmatprep.subr.mxu0 0.0
    %1594 = vmatpush1.msra.mxu0 0.0
    %1595 = vmatprep.subr.mxu0 0.0
    %1596 = vmatpush1.msra.mxu0 0.0
    %1597 = vmatprep.subr.mxu0 0.0
    %1598 = vmatpush1.msra.mxu0 0.0
    %1599 = vmatprep.subr.mxu0 0.0
    %1600 = vmatpush1.msra.mxu0 0.0
    %1601 = vmatprep.subr.mxu0 0.0
    %1602 = vmatpush1.msra.mxu0 0.0
    %1603 = vmatprep.subr.mxu0 0.0
    %1604 = vmatpush1.msra.mxu0 0.0
    %1605 = vmatprep.subr.mxu0 0.0
    %1606 = vmatpush1.msra.mxu0 0.0
    %1607 = vmatprep.subr.mxu0 0.0
    %1608 = vmatpush1.msra.mxu0 0.0
    %1609 = vmatprep.mubr.f32.mxu0 0.0
    %1610 = vmatmul.mubr.f32.gmra.mrb[0].mxu0 %v1540
    %v1611 = vpop.f32.mrb[0].mxu0
    %v1612 = vadd.f32 0.0, %v1611
    %v1613 = vpop.f32.mrb[0].mxu0
    %1614 = vmatprep.mubr.f32.mxu0 0.0
    %1615 = vmatmul.mubr.f32.gmra.mrb[0].mxu0 %v1543
    %v1616 = vpop.f32.mrb[0].mxu0
    %v1617 = vadd.f32 0.0, %v1616
    %v1618 = vpop.f32.mrb[0].mxu0
    %1619 = vdwg.mxu0
    %1620 = vrot.lane.b32.xlu0 %v1416, 120
    %v1621 = vpop.permute.xlu0 %1620
    %1622 = vrot.lane.b32.xlu0 %v1419, 120
    %v1623 = vpop.permute.xlu0 %1622
    %1624 = vrot.lane.b32.xlu0 %v1416, 88
    %v1625 = vpop.permute.xlu0 %1624
    %1626 = vrot.lane.b32.xlu0 %v1419, 88
    %v1627 = vpop.permute.xlu0 %1626
    %v1628 = vsel %vm168, %v1621, 0
    %v1630 = vsel %vm168, %v1623, 0
    %v1632 = vsel %vm168, %v1625, 0
    %v1634 = vsel %vm168, %v1627, 0
    %1636 = vmatprep.subr.mxu0 0.0
    %1637 = vmatpush1.xpose.msra.mxu0 %v1632
    %1638 = vmatprep.subr.mxu0 0.0
    %1639 = vmatpush1.xpose.msra.mxu0 %v1634
    %1640 = vmatprep.subr.mxu0 0.0
    %1641 = vmatpush1.xpose.msra.mxu0 0.0
    %1642 = vmatprep.subr.mxu0 0.0
    %1643 = vmatpush1.xpose.msra.mxu0 0.0
    %1644 = vmatprep.subr.mxu0 0.0
    %1645 = vmatpush1.xpose.msra.mxu0 0.0
    %1646 = vmatprep.subr.mxu0 0.0
    %1647 = vmatpush1.xpose.msra.mxu0 0.0
    %1648 = vmatprep.subr.mxu0 0.0
    %1649 = vmatpush1.xpose.msra.mxu0 0.0
    %1650 = vmatprep.subr.mxu0 0.0
    %1651 = vmatpush1.xpose.msra.mxu0 0.0
    %1652 = vmatprep.subr.mxu0 0.0
    %1653 = vmatpush1.xpose.msra.mxu0 0.0
    %1654 = vmatprep.subr.mxu0 0.0
    %1655 = vmatpush1.xpose.msra.mxu0 0.0
    %1656 = vmatprep.subr.mxu0 0.0
    %1657 = vmatpush1.xpose.msra.mxu0 0.0
    %1658 = vmatprep.subr.mxu0 0.0
    %1659 = vmatpush1.xpose.msra.mxu0 0.0
    %1660 = vmatprep.subr.mxu0 0.0
    %1661 = vmatpush1.xpose.msra.mxu0 0.0
    %1662 = vmatprep.subr.mxu0 0.0
    %1663 = vmatpush1.xpose.msra.mxu0 0.0
    %1664 = vmatprep.subr.mxu0 0.0
    %1665 = vmatpush1.xpose.msra.mxu0 0.0
    %1666 = vmatprep.subr.mxu0 0.0
    %1667 = vmatpush1.xpose.msra.mxu0 0.0
    %1668 = vmatprep.subr.mxu0 0.0
    %1669 = vmatpush1.xpose.msra.mxu0 0.0
    %1670 = vmatprep.subr.mxu0 0.0
    %1671 = vmatpush1.xpose.msra.mxu0 0.0
    %1672 = vmatprep.subr.mxu0 0.0
    %1673 = vmatpush1.xpose.msra.mxu0 0.0
    %1674 = vmatprep.subr.mxu0 0.0
    %1675 = vmatpush1.xpose.msra.mxu0 0.0
    %1676 = vmatprep.subr.mxu0 0.0
    %1677 = vmatpush1.xpose.msra.mxu0 0.0
    %1678 = vmatprep.subr.mxu0 0.0
    %1679 = vmatpush1.xpose.msra.mxu0 0.0
    %1680 = vmatprep.subr.mxu0 0.0
    %1681 = vmatpush1.xpose.msra.mxu0 0.0
    %1682 = vmatprep.subr.mxu0 0.0
    %1683 = vmatpush1.xpose.msra.mxu0 0.0
    %1684 = vmatprep.subr.mxu0 0.0
    %1685 = vmatpush1.xpose.msra.mxu0 0.0
    %1686 = vmatprep.subr.mxu0 0.0
    %1687 = vmatpush1.xpose.msra.mxu0 0.0
    %1688 = vmatprep.subr.mxu0 0.0
    %1689 = vmatpush1.xpose.msra.mxu0 0.0
    %1690 = vmatprep.subr.mxu0 0.0
    %1691 = vmatpush1.xpose.msra.mxu0 0.0
    %1692 = vmatprep.subr.mxu0 0.0
    %1693 = vmatpush1.xpose.msra.mxu0 0.0
    %1694 = vmatprep.subr.mxu0 0.0
    %1695 = vmatpush1.xpose.msra.mxu0 0.0
    %1696 = vmatprep.subr.mxu0 0.0
    %1697 = vmatpush1.xpose.msra.mxu0 0.0
    %1698 = vmatprep.subr.mxu0 0.0
    %1699 = vmatpush1.xpose.msra.mxu0 0.0
    %1700 = vmatprep.mubr.f32.mxu0 0.0
    %1701 = vmatmul.mubr.f32.gmra.mrb[0].mxu0 %v1628
    %v1702 = vpop.f32.mrb[0].mxu0
    %v1703 = vadd.f32 %v43, %v1702
    %v1704 = vpop.f32.mrb[0].mxu0
    %1705 = vmatprep.mubr.f32.mxu0 0.0
    %1706 = vmatmul.mubr.f32.gmra.mrb[0].mxu0 %v1630
    %v1707 = vpop.f32.mrb[0].mxu0
    %v1708 = vadd.f32 %v44, %v1707
    %v1709 = vpop.f32.mrb[0].mxu0
    %1710 = vdwg.mxu0
    %v1711 = vsel %vm252, %v1703, -inf
    %1712 = vmax.xlane.f32.xlu0 %v1711
    %v1713 = vpop.xlane.xlu0 %1712
    %v1714 = vsel %vm252, %v1708, -inf
    %1715 = vmax.xlane.f32.xlu0 %v1714
    %v1716 = vpop.xlane.xlu0 %1715
    %v1717 = vsub.f32 %v1703, %v1713
    %v1718 = vsub.f32 %v1708, %v1716
    %v1719 = vmul.f32 %v1717, 1.442695
    %v1720 = vpow.pop %v1719
    %v1721 = vmul.f32 %v1718, 1.442695
    %v1722 = vpow.pop %v1721
    %v1723 = vsel %vm252, %v1720, 0.0
    %1724 = vadd.xlane.f32.xlu0 %v1723
    %v1725 = vpop.xlane.xlu0 %1724
    %v1726 = vsel %vm252, %v1722, 0.0
    %1727 = vadd.xlane.f32.xlu0 %v1726
    %v1728 = vpop.xlane.xlu0 %1727
    %v1729 = vrcp.pop %v1725
    %v1730 = vrcp.pop %v1728
    %v1731 = vmul.f32 %v1720, %v1729
    %v1732 = vmul.f32 %v1722, %v1730
    %1733 = vrot.lane.b32.xlu0 %v1416, 56
    %v1734 = vpop.permute.xlu0 %1733
    %1735 = vrot.lane.b32.xlu0 %v1419, 56
    %v1736 = vpop.permute.xlu0 %1735
    %v1740 = vsel %vm252, %v1731, 0
    %v1743 = vsel %vm252, %v1732, 0
    %1745 = vmatprep.subr.mxu0 0.0
    %1746 = vmatpush1.msra.mxu0 %v1734
    %1747 = vmatprep.subr.mxu0 0.0
    %1748 = vmatpush1.msra.mxu0 %v1736
    %1749 = vmatprep.subr.mxu0 0.0
    %1750 = vmatpush1.msra.mxu0 0.0
    %1751 = vmatprep.subr.mxu0 0.0
    %1752 = vmatpush1.msra.mxu0 0.0
    %1753 = vmatprep.subr.mxu0 0.0
    %1754 = vmatpush1.msra.mxu0 0.0
    %1755 = vmatprep.subr.mxu0 0.0
    %1756 = vmatpush1.msra.mxu0 0.0
    %1757 = vmatprep.subr.mxu0 0.0
    %1758 = vmatpush1.msra.mxu0 0.0
    %1759 = vmatprep.subr.mxu0 0.0
    %1760 = vmatpush1.msra.mxu0 0.0
    %1761 = vmatprep.subr.mxu0 0.0
    %1762 = vmatpush1.msra.mxu0 0.0
    %1763 = vmatprep.subr.mxu0 0.0
    %1764 = vmatpush1.msra.mxu0 0.0
    %1765 = vmatprep.subr.mxu0 0.0
    %1766 = vmatpush1.msra.mxu0 0.0
    %1767 = vmatprep.subr.mxu0 0.0
    %1768 = vmatpush1.msra.mxu0 0.0
    %1769 = vmatprep.subr.mxu0 0.0
    %1770 = vmatpush1.msra.mxu0 0.0
    %1771 = vmatprep.subr.mxu0 0.0
    %1772 = vmatpush1.msra.mxu0 0.0
    %1773 = vmatprep.subr.mxu0 0.0
    %1774 = vmatpush1.msra.mxu0 0.0
    %1775 = vmatprep.subr.mxu0 0.0
    %1776 = vmatpush1.msra.mxu0 0.0
    %1777 = vmatprep.subr.mxu0 0.0
    %1778 = vmatpush1.msra.mxu0 0.0
    %1779 = vmatprep.subr.mxu0 0.0
    %1780 = vmatpush1.msra.mxu0 0.0
    %1781 = vmatprep.subr.mxu0 0.0
    %1782 = vmatpush1.msra.mxu0 0.0
    %1783 = vmatprep.subr.mxu0 0.0
    %1784 = vmatpush1.msra.mxu0 0.0
    %1785 = vmatprep.subr.mxu0 0.0
    %1786 = vmatpush1.msra.mxu0 0.0
    %1787 = vmatprep.subr.mxu0 0.0
    %1788 = vmatpush1.msra.mxu0 0.0
    %1789 = vmatprep.subr.mxu0 0.0
    %1790 = vmatpush1.msra.mxu0 0.0
    %1791 = vmatprep.subr.mxu0 0.0
    %1792 = vmatpush1.msra.mxu0 0.0
    %1793 = vmatprep.subr.mxu0 0.0
    %1794 = vmatpush1.msra.mxu0 0.0
    %1795 = vmatprep.subr.mxu0 0.0
    %1796 = vmatpush1.msra.mxu0 0.0
    %1797 = vmatprep.subr.mxu0 0.0
    %1798 = vmatpush1.msra.mxu0 0.0
    %1799 = vmatprep.subr.mxu0 0.0
    %1800 = vmatpush1.msra.mxu0 0.0
    %1801 = vmatprep.subr.mxu0 0.0
    %1802 = vmatpush1.msra.mxu0 0.0
    %1803 = vmatprep.subr.mxu0 0.0
    %1804 = vmatpush1.msra.mxu0 0.0
    %1805 = vmatprep.subr.mxu0 0.0
    %1806 = vmatpush1.msra.mxu0 0.0
    %1807 = vmatprep.subr.mxu0 0.0
    %1808 = vmatpush1.msra.mxu0 0.0
    %1809 = vmatprep.mubr.f32.mxu0 0.0
    %1810 = vmatmul.mubr.f32.gmra.mrb[0].mxu0 %v1740
    %v1811 = vpop.f32.mrb[0].mxu0
    %v1812 = vadd.f32 0.0, %v1811
    %v1813 = vpop.f32.mrb[0].mxu0
    %1814 = vmatprep.mubr.f32.mxu0 0.0
    %1815 = vmatmul.mubr.f32.gmra.mrb[0].mxu0 %v1743
    %v1816 = vpop.f32.mrb[0].mxu0
    %v1817 = vadd.f32 0.0, %v1816
    %v1818 = vpop.f32.mrb[0].mxu0
    %1819 = vdwg.mxu0
    %1820 = vrot.lane.b32.xlu0 %v1416, 112
    %v1821 = vpop.permute.xlu0 %1820
    %1822 = vrot.lane.b32.xlu0 %v1419, 112
    %v1823 = vpop.permute.xlu0 %1822
    %1824 = vrot.lane.b32.xlu0 %v1416, 80
    %v1825 = vpop.permute.xlu0 %1824
    %1826 = vrot.lane.b32.xlu0 %v1419, 80
    %v1827 = vpop.permute.xlu0 %1826
    %v1828 = vsel %vm168, %v1821, 0
    %v1830 = vsel %vm168, %v1823, 0
    %v1832 = vsel %vm168, %v1825, 0
    %v1834 = vsel %vm168, %v1827, 0
    %1836 = vmatprep.subr.mxu0 0.0
    %1837 = vmatpush1.xpose.msra.mxu0 %v1832
    %1838 = vmatprep.subr.mxu0 0.0
    %1839 = vmatpush1.xpose.msra.mxu0 %v1834
    %1840 = vmatprep.subr.mxu0 0.0
    %1841 = vmatpush1.xpose.msra.mxu0 0.0
    %1842 = vmatprep.subr.mxu0 0.0
    %1843 = vmatpush1.xpose.msra.mxu0 0.0
    %1844 = vmatprep.subr.mxu0 0.0
    %1845 = vmatpush1.xpose.msra.mxu0 0.0
    %1846 = vmatprep.subr.mxu0 0.0
    %1847 = vmatpush1.xpose.msra.mxu0 0.0
    %1848 = vmatprep.subr.mxu0 0.0
    %1849 = vmatpush1.xpose.msra.mxu0 0.0
    %1850 = vmatprep.subr.mxu0 0.0
    %1851 = vmatpush1.xpose.msra.mxu0 0.0
    %1852 = vmatprep.subr.mxu0 0.0
    %1853 = vmatpush1.xpose.msra.mxu0 0.0
    %1854 = vmatprep.subr.mxu0 0.0
    %1855 = vmatpush1.xpose.msra.mxu0 0.0
    %1856 = vmatprep.subr.mxu0 0.0
    %1857 = vmatpush1.xpose.msra.mxu0 0.0
    %1858 = vmatprep.subr.mxu0 0.0
    %1859 = vmatpush1.xpose.msra.mxu0 0.0
    %1860 = vmatprep.subr.mxu0 0.0
    %1861 = vmatpush1.xpose.msra.mxu0 0.0
    %1862 = vmatprep.subr.mxu0 0.0
    %1863 = vmatpush1.xpose.msra.mxu0 0.0
    %1864 = vmatprep.subr.mxu0 0.0
    %1865 = vmatpush1.xpose.msra.mxu0 0.0
    %1866 = vmatprep.subr.mxu0 0.0
    %1867 = vmatpush1.xpose.msra.mxu0 0.0
    %1868 = vmatprep.subr.mxu0 0.0
    %1869 = vmatpush1.xpose.msra.mxu0 0.0
    %1870 = vmatprep.subr.mxu0 0.0
    %1871 = vmatpush1.xpose.msra.mxu0 0.0
    %1872 = vmatprep.subr.mxu0 0.0
    %1873 = vmatpush1.xpose.msra.mxu0 0.0
    %1874 = vmatprep.subr.mxu0 0.0
    %1875 = vmatpush1.xpose.msra.mxu0 0.0
    %1876 = vmatprep.subr.mxu0 0.0
    %1877 = vmatpush1.xpose.msra.mxu0 0.0
    %1878 = vmatprep.subr.mxu0 0.0
    %1879 = vmatpush1.xpose.msra.mxu0 0.0
    %1880 = vmatprep.subr.mxu0 0.0
    %1881 = vmatpush1.xpose.msra.mxu0 0.0
    %1882 = vmatprep.subr.mxu0 0.0
    %1883 = vmatpush1.xpose.msra.mxu0 0.0
    %1884 = vmatprep.subr.mxu0 0.0
    %1885 = vmatpush1.xpose.msra.mxu0 0.0
    %1886 = vmatprep.subr.mxu0 0.0
    %1887 = vmatpush1.xpose.msra.mxu0 0.0
    %1888 = vmatprep.subr.mxu0 0.0
    %1889 = vmatpush1.xpose.msra.mxu0 0.0
    %1890 = vmatprep.subr.mxu0 0.0
    %1891 = vmatpush1.xpose.msra.mxu0 0.0
    %1892 = vmatprep.subr.mxu0 0.0
    %1893 = vmatpush1.xpose.msra.mxu0 0.0
    %1894 = vmatprep.subr.mxu0 0.0
    %1895 = vmatpush1.xpose.msra.mxu0 0.0
    %1896 = vmatprep.subr.mxu0 0.0
    %1897 = vmatpush1.xpose.msra.mxu0 0.0
    %1898 = vmatprep.subr.mxu0 0.0
    %1899 = vmatpush1.xpose.msra.mxu0 0.0
    %1900 = vmatprep.mubr.f32.mxu0 0.0
    %1901 = vmatmul.mubr.f32.gmra.mrb[0].mxu0 %v1828
    %v1902 = vpop.f32.mrb[0].mxu0
    %v1903 = vadd.f32 %v43, %v1902
    %v1904 = vpop.f32.mrb[0].mxu0
    %1905 = vmatprep.mubr.f32.mxu0 0.0
    %1906 = vmatmul.mubr.f32.gmra.mrb[0].mxu0 %v1830
    %v1907 = vpop.f32.mrb[0].mxu0
    %v1908 = vadd.f32 %v44, %v1907
    %v1909 = vpop.f32.mrb[0].mxu0
    %1910 = vdwg.mxu0
    %v1911 = vsel %vm252, %v1903, -inf
    %1912 = vmax.xlane.f32.xlu0 %v1911
    %v1913 = vpop.xlane.xlu0 %1912
    %v1914 = vsel %vm252, %v1908, -inf
    %1915 = vmax.xlane.f32.xlu0 %v1914
    %v1916 = vpop.xlane.xlu0 %1915
    %v1917 = vsub.f32 %v1903, %v1913
    %v1918 = vsub.f32 %v1908, %v1916
    %v1919 = vmul.f32 %v1917, 1.442695
    %v1920 = vpow.pop %v1919
    %v1921 = vmul.f32 %v1918, 1.442695
    %v1922 = vpow.pop %v1921
    %v1923 = vsel %vm252, %v1920, 0.0
    %1924 = vadd.xlane.f32.xlu0 %v1923
    %v1925 = vpop.xlane.xlu0 %1924
    %v1926 = vsel %vm252, %v1922, 0.0
    %1927 = vadd.xlane.f32.xlu0 %v1926
    %v1928 = vpop.xlane.xlu0 %1927
    %v1929 = vrcp.pop %v1925
    %v1930 = vrcp.pop %v1928
    %v1931 = vmul.f32 %v1920, %v1929
    %v1932 = vmul.f32 %v1922, %v1930
    %1933 = vrot.lane.b32.xlu0 %v1416, 48
    %v1934 = vpop.permute.xlu0 %1933
    %1935 = vrot.lane.b32.xlu0 %v1419, 48
    %v1936 = vpop.permute.xlu0 %1935
    %v1940 = vsel %vm252, %v1931, 0
    %v1943 = vsel %vm252, %v1932, 0
    %1945 = vmatprep.subr.mxu0 0.0
    %1946 = vmatpush1.msra.mxu0 %v1934
    %1947 = vmatprep.subr.mxu0 0.0
    %1948 = vmatpush1.msra.mxu0 %v1936
    %1949 = vmatprep.subr.mxu0 0.0
    %1950 = vmatpush1.msra.mxu0 0.0
    %1951 = vmatprep.subr.mxu0 0.0
    %1952 = vmatpush1.msra.mxu0 0.0
    %1953 = vmatprep.subr.mxu0 0.0
    %1954 = vmatpush1.msra.mxu0 0.0
    %1955 = vmatprep.subr.mxu0 0.0
    %1956 = vmatpush1.msra.mxu0 0.0
    %1957 = vmatprep.subr.mxu0 0.0
    %1958 = vmatpush1.msra.mxu0 0.0
    %1959 = vmatprep.subr.mxu0 0.0
    %1960 = vmatpush1.msra.mxu0 0.0
    %1961 = vmatprep.subr.mxu0 0.0
    %1962 = vmatpush1.msra.mxu0 0.0
    %1963 = vmatprep.subr.mxu0 0.0
    %1964 = vmatpush1.msra.mxu0 0.0
    %1965 = vmatprep.subr.mxu0 0.0
    %1966 = vmatpush1.msra.mxu0 0.0
    %1967 = vmatprep.subr.mxu0 0.0
    %1968 = vmatpush1.msra.mxu0 0.0
    %1969 = vmatprep.subr.mxu0 0.0
    %1970 = vmatpush1.msra.mxu0 0.0
    %1971 = vmatprep.subr.mxu0 0.0
    %1972 = vmatpush1.msra.mxu0 0.0
    %1973 = vmatprep.subr.mxu0 0.0
    %1974 = vmatpush1.msra.mxu0 0.0
    %1975 = vmatprep.subr.mxu0 0.0
    %1976 = vmatpush1.msra.mxu0 0.0
    %1977 = vmatprep.subr.mxu0 0.0
    %1978 = vmatpush1.msra.mxu0 0.0
    %1979 = vmatprep.subr.mxu0 0.0
    %1980 = vmatpush1.msra.mxu0 0.0
    %1981 = vmatprep.subr.mxu0 0.0
    %1982 = vmatpush1.msra.mxu0 0.0
    %1983 = vmatprep.subr.mxu0 0.0
    %1984 = vmatpush1.msra.mxu0 0.0
    %1985 = vmatprep.subr.mxu0 0.0
    %1986 = vmatpush1.msra.mxu0 0.0
    %1987 = vmatprep.subr.mxu0 0.0
    %1988 = vmatpush1.msra.mxu0 0.0
    %1989 = vmatprep.subr.mxu0 0.0
    %1990 = vmatpush1.msra.mxu0 0.0
    %1991 = vmatprep.subr.mxu0 0.0
    %1992 = vmatpush1.msra.mxu0 0.0
    %1993 = vmatprep.subr.mxu0 0.0
    %1994 = vmatpush1.msra.mxu0 0.0
    %1995 = vmatprep.subr.mxu0 0.0
    %1996 = vmatpush1.msra.mxu0 0.0
    %1997 = vmatprep.subr.mxu0 0.0
    %1998 = vmatpush1.msra.mxu0 0.0
    %1999 = vmatprep.subr.mxu0 0.0
    %2000 = vmatpush1.msra.mxu0 0.0
    %2001 = vmatprep.subr.mxu0 0.0
    %2002 = vmatpush1.msra.mxu0 0.0
    %2003 = vmatprep.subr.mxu0 0.0
    %2004 = vmatpush1.msra.mxu0 0.0
    %2005 = vmatprep.subr.mxu0 0.0
    %2006 = vmatpush1.msra.mxu0 0.0
    %2007 = vmatprep.subr.mxu0 0.0
    %2008 = vmatpush1.msra.mxu0 0.0
    %2009 = vmatprep.mubr.f32.mxu0 0.0
    %2010 = vmatmul.mubr.f32.gmra.mrb[0].mxu0 %v1940
    %v2011 = vpop.f32.mrb[0].mxu0
    %v2012 = vadd.f32 0.0, %v2011
    %v2013 = vpop.f32.mrb[0].mxu0
    %2014 = vmatprep.mubr.f32.mxu0 0.0
    %2015 = vmatmul.mubr.f32.gmra.mrb[0].mxu0 %v1943
    %v2016 = vpop.f32.mrb[0].mxu0
    %v2017 = vadd.f32 0.0, %v2016
    %v2018 = vpop.f32.mrb[0].mxu0
    %2019 = vdwg.mxu0
    %2020 = vrot.lane.b32.xlu0 %v1416, 104
    %v2021 = vpop.permute.xlu0 %2020
    %2022 = vrot.lane.b32.xlu0 %v1419, 104
    %v2023 = vpop.permute.xlu0 %2022
    %2024 = vrot.lane.b32.xlu0 %v1416, 72
    %v2025 = vpop.permute.xlu0 %2024
    %2026 = vrot.lane.b32.xlu0 %v1419, 72
    %v2027 = vpop.permute.xlu0 %2026
    %v2028 = vsel %vm168, %v2021, 0
    %v2030 = vsel %vm168, %v2023, 0
    %v2032 = vsel %vm168, %v2025, 0
    %v2034 = vsel %vm168, %v2027, 0
    %2036 = vmatprep.subr.mxu0 0.0
    %2037 = vmatpush1.xpose.msra.mxu0 %v2032
    %2038 = vmatprep.subr.mxu0 0.0
    %2039 = vmatpush1.xpose.msra.mxu0 %v2034
    %2040 = vmatprep.subr.mxu0 0.0
    %2041 = vmatpush1.xpose.msra.mxu0 0.0
    %2042 = vmatprep.subr.mxu0 0.0
    %2043 = vmatpush1.xpose.msra.mxu0 0.0
    %2044 = vmatprep.subr.mxu0 0.0
    %2045 = vmatpush1.xpose.msra.mxu0 0.0
    %2046 = vmatprep.subr.mxu0 0.0
    %2047 = vmatpush1.xpose.msra.mxu0 0.0
    %2048 = vmatprep.subr.mxu0 0.0
    %2049 = vmatpush1.xpose.msra.mxu0 0.0
    %2050 = vmatprep.subr.mxu0 0.0
    %2051 = vmatpush1.xpose.msra.mxu0 0.0
    %2052 = vmatprep.subr.mxu0 0.0
    %2053 = vmatpush1.xpose.msra.mxu0 0.0
    %2054 = vmatprep.subr.mxu0 0.0
    %2055 = vmatpush1.xpose.msra.mxu0 0.0
    %2056 = vmatprep.subr.mxu0 0.0
    %2057 = vmatpush1.xpose.msra.mxu0 0.0
    %2058 = vmatprep.subr.mxu0 0.0
    %2059 = vmatpush1.xpose.msra.mxu0 0.0
    %2060 = vmatprep.subr.mxu0 0.0
    %2061 = vmatpush1.xpose.msra.mxu0 0.0
    %2062 = vmatprep.subr.mxu0 0.0
    %2063 = vmatpush1.xpose.msra.mxu0 0.0
    %2064 = vmatprep.subr.mxu0 0.0
    %2065 = vmatpush1.xpose.msra.mxu0 0.0
    %2066 = vmatprep.subr.mxu0 0.0
    %2067 = vmatpush1.xpose.msra.mxu0 0.0
    %2068 = vmatprep.subr.mxu0 0.0
    %2069 = vmatpush1.xpose.msra.mxu0 0.0
    %2070 = vmatprep.subr.mxu0 0.0
    %2071 = vmatpush1.xpose.msra.mxu0 0.0
    %2072 = vmatprep.subr.mxu0 0.0
    %2073 = vmatpush1.xpose.msra.mxu0 0.0
    %2074 = vmatprep.subr.mxu0 0.0
    %2075 = vmatpush1.xpose.msra.mxu0 0.0
    %2076 = vmatprep.subr.mxu0 0.0
    %2077 = vmatpush1.xpose.msra.mxu0 0.0
    %2078 = vmatprep.subr.mxu0 0.0
    %2079 = vmatpush1.xpose.msra.mxu0 0.0
    %2080 = vmatprep.subr.mxu0 0.0
    %2081 = vmatpush1.xpose.msra.mxu0 0.0
    %2082 = vmatprep.subr.mxu0 0.0
    %2083 = vmatpush1.xpose.msra.mxu0 0.0
    %2084 = vmatprep.subr.mxu0 0.0
    %2085 = vmatpush1.xpose.msra.mxu0 0.0
    %2086 = vmatprep.subr.mxu0 0.0
    %2087 = vmatpush1.xpose.msra.mxu0 0.0
    %2088 = vmatprep.subr.mxu0 0.0
    %2089 = vmatpush1.xpose.msra.mxu0 0.0
    %2090 = vmatprep.subr.mxu0 0.0
    %2091 = vmatpush1.xpose.msra.mxu0 0.0
    %2092 = vmatprep.subr.mxu0 0.0
    %2093 = vmatpush1.xpose.msra.mxu0 0.0
    %2094 = vmatprep.subr.mxu0 0.0
    %2095 = vmatpush1.xpose.msra.mxu0 0.0
    %2096 = vmatprep.subr.mxu0 0.0
    %2097 = vmatpush1.xpose.msra.mxu0 0.0
    %2098 = vmatprep.subr.mxu0 0.0
    %2099 = vmatpush1.xpose.msra.mxu0 0.0
    %2100 = vmatprep.mubr.f32.mxu0 0.0
    %2101 = vmatmul.mubr.f32.gmra.mrb[0].mxu0 %v2028
    %v2102 = vpop.f32.mrb[0].mxu0
    %v2103 = vadd.f32 %v43, %v2102
    %v2104 = vpop.f32.mrb[0].mxu0
    %2105 = vmatprep.mubr.f32.mxu0 0.0
    %2106 = vmatmul.mubr.f32.gmra.mrb[0].mxu0 %v2030
    %v2107 = vpop.f32.mrb[0].mxu0
    %v2108 = vadd.f32 %v44, %v2107
    %v2109 = vpop.f32.mrb[0].mxu0
    %2110 = vdwg.mxu0
    %v2111 = vsel %vm252, %v2103, -inf
    %2112 = vmax.xlane.f32.xlu0 %v2111
    %v2113 = vpop.xlane.xlu0 %2112
    %v2114 = vsel %vm252, %v2108, -inf
    %2115 = vmax.xlane.f32.xlu0 %v2114
    %v2116 = vpop.xlane.xlu0 %2115
    %v2117 = vsub.f32 %v2103, %v2113
    %v2118 = vsub.f32 %v2108, %v2116
    %v2119 = vmul.f32 %v2117, 1.442695
    %v2120 = vpow.pop %v2119
    %v2121 = vmul.f32 %v2118, 1.442695
    %v2122 = vpow.pop %v2121
    %v2123 = vsel %vm252, %v2120, 0.0
    %2124 = vadd.xlane.f32.xlu0 %v2123
    %v2125 = vpop.xlane.xlu0 %2124
    %v2126 = vsel %vm252, %v2122, 0.0
    %2127 = vadd.xlane.f32.xlu0 %v2126
    %v2128 = vpop.xlane.xlu0 %2127
    %v2129 = vrcp.pop %v2125
    %v2130 = vrcp.pop %v2128
    %v2131 = vmul.f32 %v2120, %v2129
    %v2132 = vmul.f32 %v2122, %v2130
    %2133 = vrot.lane.b32.xlu0 %v1416, 40
    %v2134 = vpop.permute.xlu0 %2133
    %2135 = vrot.lane.b32.xlu0 %v1419, 40
    %v2136 = vpop.permute.xlu0 %2135
    %v2140 = vsel %vm252, %v2131, 0
    %v2143 = vsel %vm252, %v2132, 0
    %2145 = vmatprep.subr.mxu0 0.0
    %2146 = vmatpush1.msra.mxu0 %v2134
    %2147 = vmatprep.subr.mxu0 0.0
    %2148 = vmatpush1.msra.mxu0 %v2136
    %2149 = vmatprep.subr.mxu0 0.0
    %2150 = vmatpush1.msra.mxu0 0.0
    %2151 = vmatprep.subr.mxu0 0.0
    %2152 = vmatpush1.msra.mxu0 0.0
    %2153 = vmatprep.subr.mxu0 0.0
    %2154 = vmatpush1.msra.mxu0 0.0
    %2155 = vmatprep.subr.mxu0 0.0
    %2156 = vmatpush1.msra.mxu0 0.0
    %2157 = vmatprep.subr.mxu0 0.0
    %2158 = vmatpush1.msra.mxu0 0.0
    %2159 = vmatprep.subr.mxu0 0.0
    %2160 = vmatpush1.msra.mxu0 0.0
    %2161 = vmatprep.subr.mxu0 0.0
    %2162 = vmatpush1.msra.mxu0 0.0
    %2163 = vmatprep.subr.mxu0 0.0
    %2164 = vmatpush1.msra.mxu0 0.0
    %2165 = vmatprep.subr.mxu0 0.0
    %2166 = vmatpush1.msra.mxu0 0.0
    %2167 = vmatprep.subr.mxu0 0.0
    %2168 = vmatpush1.msra.mxu0 0.0
    %2169 = vmatprep.subr.mxu0 0.0
    %2170 = vmatpush1.msra.mxu0 0.0
    %2171 = vmatprep.subr.mxu0 0.0
    %2172 = vmatpush1.msra.mxu0 0.0
    %2173 = vmatprep.subr.mxu0 0.0
    %2174 = vmatpush1.msra.mxu0 0.0
    %2175 = vmatprep.subr.mxu0 0.0
    %2176 = vmatpush1.msra.mxu0 0.0
    %2177 = vmatprep.subr.mxu0 0.0
    %2178 = vmatpush1.msra.mxu0 0.0
    %2179 = vmatprep.subr.mxu0 0.0
    %2180 = vmatpush1.msra.mxu0 0.0
    %2181 = vmatprep.subr.mxu0 0.0
    %2182 = vmatpush1.msra.mxu0 0.0
    %2183 = vmatprep.subr.mxu0 0.0
    %2184 = vmatpush1.msra.mxu0 0.0
    %2185 = vmatprep.subr.mxu0 0.0
    %2186 = vmatpush1.msra.mxu0 0.0
    %2187 = vmatprep.subr.mxu0 0.0
    %2188 = vmatpush1.msra.mxu0 0.0
    %2189 = vmatprep.subr.mxu0 0.0
    %2190 = vmatpush1.msra.mxu0 0.0
    %2191 = vmatprep.subr.mxu0 0.0
    %2192 = vmatpush1.msra.mxu0 0.0
    %2193 = vmatprep.subr.mxu0 0.0
    %2194 = vmatpush1.msra.mxu0 0.0
    %2195 = vmatprep.subr.mxu0 0.0
    %2196 = vmatpush1.msra.mxu0 0.0
    %2197 = vmatprep.subr.mxu0 0.0
    %2198 = vmatpush1.msra.mxu0 0.0
    %2199 = vmatprep.subr.mxu0 0.0
    %2200 = vmatpush1.msra.mxu0 0.0
    %2201 = vmatprep.subr.mxu0 0.0
    %2202 = vmatpush1.msra.mxu0 0.0
    %2203 = vmatprep.subr.mxu0 0.0
    %2204 = vmatpush1.msra.mxu0 0.0
    %2205 = vmatprep.subr.mxu0 0.0
    %2206 = vmatpush1.msra.mxu0 0.0
    %2207 = vmatprep.subr.mxu0 0.0
    %2208 = vmatpush1.msra.mxu0 0.0
    %2209 = vmatprep.mubr.f32.mxu0 0.0
    %2210 = vmatmul.mubr.f32.gmra.mrb[0].mxu0 %v2140
    %v2211 = vpop.f32.mrb[0].mxu0
    %v2212 = vadd.f32 0.0, %v2211
    %v2213 = vpop.f32.mrb[0].mxu0
    %2214 = vmatprep.mubr.f32.mxu0 0.0
    %2215 = vmatmul.mubr.f32.gmra.mrb[0].mxu0 %v2143
    %v2216 = vpop.f32.mrb[0].mxu0
    %v2217 = vadd.f32 0.0, %v2216
    %v2218 = vpop.f32.mrb[0].mxu0
    %2219 = vdwg.mxu0
    %2222 = vrot.lane.b32.xlu0 %v1812, 8
    %v2223 = vpop.permute.xlu0 %2222
    %2224 = vrot.lane.b32.xlu0 %v1817, 8
    %v2225 = vpop.permute.xlu0 %2224
    %2230 = vrot.lane.b32.xlu0 %v2012, 16
    %v2231 = vpop.permute.xlu0 %2230
    %2232 = vrot.lane.b32.xlu0 %v2017, 16
    %v2233 = vpop.permute.xlu0 %2232
    %2238 = vrot.lane.b32.xlu0 %v2212, 24
    %v2239 = vpop.permute.xlu0 %2238
    %2240 = vrot.lane.b32.xlu0 %v2217, 24
    %v2241 = vpop.permute.xlu0 %2240
    %v2244 = vsel %vm168, %v1612, %v2223
    %v2245 = vsel %vm168, %v1617, %v2225
    %v2246 = vsel %vm252, %v2244, %v2231
    %v2247 = vsel %vm252, %v2245, %v2233
    %v2248 = vsel %vm990, %v2246, %v2239
    %v2249 = vsel %vm990, %v2247, %v2241
    %v2250 = vpack.c.bf16 %v2249, %v2248
    %s2251 = scalar_lea.vmem %s5, 16
    %v2252 = vld [vmem:[%s2251] sm:$0xf]
    %v2253 = vld [vmem:[%s2251 + $0x4] sm:$0xf]
    %v2254 = vld [vmem:[%s2251 + $0x8] sm:$0xf]
    %v2255 = vld [vmem:[%s2251 + $0xc] sm:$0xf]
    %s2256 = scalar_lea.vmem %s6, 8
    %v2257 = vld [vmem:[%s2256] sm:$0x1]
    %v2258 = vlaneseq
    %v2259 = vshrl.u32 %v2258, 7
    %v2260 = vsub.s32 0, %v2259
    %v2261 = vrot.slane %v2257, %v2260
    %v2266 = vunpack.c.l.b16 %v2252
    %v2267 = vunpack.c.l.b16 %v2253
    %v2268 = vunpack.c.l.b16 %v2254
    %v2269 = vunpack.c.l.b16 %v2255
    %v2270 = vpack.c.b16 %v2267, %v2266
    %v2271 = vpack.c.b16 %v2269, %v2268
    %v2275 = vsel %vm51, %v2250, 0
    %2277 = vmatprep.subr.bf16.mxu0 0
    %2278 = vmatpush1.bf16.msra.mxu0 %v2270
    %2279 = vmatprep.subr.bf16.mxu0 0
    %2280 = vmatpush1.bf16.msra.mxu0 %v2271
    %2281 = vmatprep.subr.bf16.mxu0 0
    %2282 = vmatpush1.bf16.msra.mxu0 0
    %2283 = vmatprep.subr.bf16.mxu0 0
    %2284 = vmatpush1.bf16.msra.mxu0 0
    %2285 = vmatprep.subr.bf16.mxu0 0
    %2286 = vmatpush1.bf16.msra.mxu0 0
    %2287 = vmatprep.subr.bf16.mxu0 0
    %2288 = vmatpush1.bf16.msra.mxu0 0
    %2289 = vmatprep.subr.bf16.mxu0 0
    %2290 = vmatpush1.bf16.msra.mxu0 0
    %2291 = vmatprep.subr.bf16.mxu0 0
    %2292 = vmatpush1.bf16.msra.mxu0 0
    %2293 = vmatprep.subr.bf16.mxu0 0
    %2294 = vmatpush1.bf16.msra.mxu0 0
    %2295 = vmatprep.subr.bf16.mxu0 0
    %2296 = vmatpush1.bf16.msra.mxu0 0
    %2297 = vmatprep.subr.bf16.mxu0 0
    %2298 = vmatpush1.bf16.msra.mxu0 0
    %2299 = vmatprep.subr.bf16.mxu0 0
    %2300 = vmatpush1.bf16.msra.mxu0 0
    %2301 = vmatprep.subr.bf16.mxu0 0
    %2302 = vmatpush1.bf16.msra.mxu0 0
    %2303 = vmatprep.subr.bf16.mxu0 0
    %2304 = vmatpush1.bf16.msra.mxu0 0
    %2305 = vmatprep.subr.bf16.mxu0 0
    %2306 = vmatpush1.bf16.msra.mxu0 0
    %2307 = vmatprep.subr.bf16.mxu0 0
    %2308 = vmatpush1.bf16.msra.mxu0 0
    %2309 = vmatprep.mubr.bf16.mxu0 0
    %2310 = vmatmul.mubr.bf16.gmra.mrb[0].mxu0 %v2275
    %v2311 = vpop.f32.mrb[0].mxu0
    %v2312 = vadd.f32 %v2261, %v2311
    %v2313 = vpop.f32.mrb[0].mxu0
    %v2314 = vpop.f32.mrb[0].mxu0
    %v2315 = vadd.f32 %v2261, %v2314
    %v2316 = vpop.f32.mrb[0].mxu0
    %2317 = vdwg.mxu0
    %v2318 = vadd.f32 %v1350, %v2312
    %v2319 = vadd.f32 %v1351, %v2315
    %v2320 = vld [vmem:[%s2256 + $0x1] sm:$0x1]
    %v2321 = vld [vmem:[%s2256 + $0x2] sm:$0x1]
    %v2322 = vmul.f32 %v2318, %v2318
    %v2323 = vmul.f32 %v2319, %v2319
    %v2324 = vsel %vm51, %v2318, 0.0
    %2325 = vadd.xlane.f32.xlu0 %v2324
    %v2326 = vpop.xlane.xlu0 %2325
    %v2327 = vsel %vm51, %v2319, 0.0
    %2328 = vadd.xlane.f32.xlu0 %v2327
    %v2329 = vpop.xlane.xlu0 %2328
    %v2330 = vsel %vm51, %v2322, 0.0
    %2331 = vadd.xlane.f32.xlu0 %v2330
    %v2332 = vpop.xlane.xlu0 %2331
    %v2333 = vsel %vm51, %v2323, 0.0
    %2334 = vadd.xlane.f32.xlu0 %v2333
    %v2335 = vpop.xlane.xlu0 %2334
    %v2336 = vmul.f32 %v2326, 0.03125
    %v2337 = vmul.f32 %v2329, 0.03125
    %v2338 = vmul.f32 %v2332, 0.03125
    %v2339 = vmul.f32 %v2335, 0.03125
    %v2340 = vmul.f32 %v2336, %v2336
    %v2341 = vmul.f32 %v2337, %v2337
    %v2342 = vsub.f32 %v2338, %v2340
    %v2343 = vsub.f32 %v2339, %v2341
    %v2344 = vmax.f32 %v2342, 0.0
    %v2345 = vmax.f32 %v2343, 0.0
    %v2346 = vsub.f32 %v2318, %v2336
    %v2347 = vsub.f32 %v2319, %v2337
    %v2348 = vadd.f32 %v2344, 1e-12
    %v2349 = vadd.f32 %v2345, 1e-12
    %v2350 = vrsqrt.pop %v2348
    %v2351 = vrsqrt.pop %v2349
    %v2352 = vmul.f32 %v2346, %v2350
    %v2353 = vmul.f32 %v2347, %v2351
    %v2354 = vlaneseq
    %v2355 = vshrl.u32 %v2354, 7
    %v2356 = vsub.s32 0, %v2355
    %v2357 = vrot.slane %v2320, %v2356
    %v2358 = vmul.f32 %v2352, %v2357
    %v2359 = vmul.f32 %v2353, %v2357
    %v2360 = vlaneseq
    %v2361 = vshrl.u32 %v2360, 7
    %v2362 = vsub.s32 0, %v2361
    %v2363 = vrot.slane %v2321, %v2362
    %v2364 = vadd.f32 %v2358, %v2363
    %v2365 = vadd.f32 %v2359, %v2363
    %v2366 = vpack.c.bf16 %v2365, %v2364
    %s2367 = scalar_lea.vmem %s7, 16
    %v2368 = vld [vmem:[%s2367] sm:$0xf]
    %v2369 = vld [vmem:[%s2367 + $0x4] sm:$0xf]
    %v2370 = vld [vmem:[%s2367 + $0x8] sm:$0xf]
    %v2371 = vld [vmem:[%s2367 + $0xc] sm:$0xf]
    %s2372 = scalar_lea.vmem %s8, 1
    %v2373 = vld [vmem:[%s2372] sm:$0x1]
    %v2375 = vlaneseq
    %v2376 = vshrl.u32 %v2375, 7
    %v2377 = vsub.s32 0, %v2376
    %v2378 = vrot.slane %v2373, %v2377
    %v2384 = vunpack.c.l.b16 %v2368
    %v2385 = vunpack.c.l.b16 %v2369
    %v2386 = vunpack.c.l.b16 %v2370
    %v2387 = vunpack.c.l.b16 %v2371
    %v2388 = vpack.c.b16 %v2385, %v2384
    %v2389 = vpack.c.b16 %v2387, %v2386
    %v2393 = vsel %vm51, %v2366, 0
    %2395 = vmatprep.subr.bf16.mxu0 0
    %2396 = vmatpush1.bf16.msra.mxu0 %v2388
    %2397 = vmatprep.subr.bf16.mxu0 0
    %2398 = vmatpush1.bf16.msra.mxu0 %v2389
    %2399 = vmatprep.subr.bf16.mxu0 0
    %2400 = vmatpush1.bf16.msra.mxu0 0
    %2401 = vmatprep.subr.bf16.mxu0 0
    %2402 = vmatpush1.bf16.msra.mxu0 0
    %2403 = vmatprep.subr.bf16.mxu0 0
    %2404 = vmatpush1.bf16.msra.mxu0 0
    %2405 = vmatprep.subr.bf16.mxu0 0
    %2406 = vmatpush1.bf16.msra.mxu0 0
    %2407 = vmatprep.subr.bf16.mxu0 0
    %2408 = vmatpush1.bf16.msra.mxu0 0
    %2409 = vmatprep.subr.bf16.mxu0 0
    %2410 = vmatpush1.bf16.msra.mxu0 0
    %2411 = vmatprep.subr.bf16.mxu0 0
    %2412 = vmatpush1.bf16.msra.mxu0 0
    %2413 = vmatprep.subr.bf16.mxu0 0
    %2414 = vmatpush1.bf16.msra.mxu0 0
    %2415 = vmatprep.subr.bf16.mxu0 0
    %2416 = vmatpush1.bf16.msra.mxu0 0
    %2417 = vmatprep.subr.bf16.mxu0 0
    %2418 = vmatpush1.bf16.msra.mxu0 0
    %2419 = vmatprep.subr.bf16.mxu0 0
    %2420 = vmatpush1.bf16.msra.mxu0 0
    %2421 = vmatprep.subr.bf16.mxu0 0
    %2422 = vmatpush1.bf16.msra.mxu0 0
    %2423 = vmatprep.subr.bf16.mxu0 0
    %2424 = vmatpush1.bf16.msra.mxu0 0
    %2425 = vmatprep.subr.bf16.mxu0 0
    %2426 = vmatpush1.bf16.msra.mxu0 0
    %2427 = vmatprep.mubr.bf16.mxu0 0
    %2428 = vmatmul.mubr.bf16.gmra.mrb[0].mxu0 %v2393
    %v2429 = vpop.f32.mrb[0].mxu0
    %v2430 = vadd.f32 %v2378, %v2429
    %v2431 = vpop.f32.mrb[0].mxu0
    %v2432 = vpop.f32.mrb[0].mxu0
    %v2433 = vadd.f32 %v2378, %v2432
    %v2434 = vpop.f32.mrb[0].mxu0
    %2435 = vdwg.mxu0
    %v2436 = vmul.f32 %v2430, %v2430
    %v2437 = vmul.f32 %v2433, %v2433
    %v2438 = vmul.f32 %v2430, %v2436
    %v2439 = vmul.f32 %v2433, %v2437
    %v2440 = vmul.f32 %v2438, 0.044715
    %v2441 = vmul.f32 %v2439, 0.044715
    %v2442 = vadd.f32 %v2430, %v2440
    %v2443 = vadd.f32 %v2433, %v2441
    %v2444 = vmul.f32 %v2442, 0.7978846
    %v2445 = vmul.f32 %v2443, 0.7978846
    %v2446 = vtanh.pop %v2444
    %v2447 = vtanh.pop %v2445
    %v2448 = vadd.f32 %v2446, 1.0
    %v2449 = vadd.f32 %v2447, 1.0
    %v2450 = vmul.f32 %v2448, 0.5
    %v2451 = vmul.f32 %v2449, 0.5
    %v2452 = vmul.f32 %v2430, %v2450
    %v2453 = vmul.f32 %v2433, %v2451
    %v2454 = vpack.c.bf16 %v2453, %v2452
    %s2455 = scalar_lea.vmem %s9, 64
    %v2456 = vld [vmem:[%s2455] sm:$0xf]
    %v2457 = vld [vmem:[%s2455 + $0x4] sm:$0xf]
    %v2458 = vld [vmem:[%s2455 + $0x8] sm:$0xf]
    %v2459 = vld [vmem:[%s2455 + $0xc] sm:$0xf]
    %v2460 = vld [vmem:[%s2455 + $0x10] sm:$0xf]
    %v2461 = vld [vmem:[%s2455 + $0x14] sm:$0xf]
    %v2462 = vld [vmem:[%s2455 + $0x18] sm:$0xf]
    %v2463 = vld [vmem:[%s2455 + $0x1c] sm:$0xf]
    %v2464 = vld [vmem:[%s2455 + $0x20] sm:$0xf]
    %v2465 = vld [vmem:[%s2455 + $0x24] sm:$0xf]
    %v2466 = vld [vmem:[%s2455 + $0x28] sm:$0xf]
    %v2467 = vld [vmem:[%s2455 + $0x2c] sm:$0xf]
    %v2468 = vld [vmem:[%s2455 + $0x30] sm:$0xf]
    %v2469 = vld [vmem:[%s2455 + $0x34] sm:$0xf]
    %v2470 = vld [vmem:[%s2455 + $0x38] sm:$0xf]
    %v2471 = vld [vmem:[%s2455 + $0x3c] sm:$0xf]
    %v2472 = vld [vmem:[%s2256 + $0x3] sm:$0x1]
    %v2473 = vlaneseq
    %v2474 = vshrl.u32 %v2473, 7
    %v2475 = vsub.s32 0, %v2474
    %v2476 = vrot.slane %v2472, %v2475
    %v2493 = vunpack.c.l.b16 %v2456
    %v2494 = vunpack.c.l.b16 %v2457
    %v2495 = vunpack.c.l.b16 %v2458
    %v2496 = vunpack.c.l.b16 %v2459
    %v2497 = vunpack.c.l.b16 %v2460
    %v2498 = vunpack.c.l.b16 %v2461
    %v2499 = vunpack.c.l.b16 %v2462
    %v2500 = vunpack.c.l.b16 %v2463
    %v2501 = vunpack.c.l.b16 %v2464
    %v2502 = vunpack.c.l.b16 %v2465
    %v2503 = vunpack.c.l.b16 %v2466
    %v2504 = vunpack.c.l.b16 %v2467
    %v2505 = vunpack.c.l.b16 %v2468
    %v2506 = vunpack.c.l.b16 %v2469
    %v2507 = vunpack.c.l.b16 %v2470
    %v2508 = vunpack.c.l.b16 %v2471
    %v2509 = vpack.c.b16 %v2494, %v2493
    %v2510 = vpack.c.b16 %v2496, %v2495
    %v2511 = vpack.c.b16 %v2498, %v2497
    %v2512 = vpack.c.b16 %v2500, %v2499
    %v2513 = vpack.c.b16 %v2502, %v2501
    %v2514 = vpack.c.b16 %v2504, %v2503
    %v2515 = vpack.c.b16 %v2506, %v2505
    %v2516 = vpack.c.b16 %v2508, %v2507
    %2525 = vmatprep.subr.bf16.mxu0 0
    %2526 = vmatpush1.bf16.msra.mxu0 %v2509
    %2527 = vmatprep.subr.bf16.mxu0 0
    %2528 = vmatpush1.bf16.msra.mxu0 %v2510
    %2529 = vmatprep.subr.bf16.mxu0 0
    %2530 = vmatpush1.bf16.msra.mxu0 %v2511
    %2531 = vmatprep.subr.bf16.mxu0 0
    %2532 = vmatpush1.bf16.msra.mxu0 %v2512
    %2533 = vmatprep.subr.bf16.mxu0 0
    %2534 = vmatpush1.bf16.msra.mxu0 %v2513
    %2535 = vmatprep.subr.bf16.mxu0 0
    %2536 = vmatpush1.bf16.msra.mxu0 %v2514
    %2537 = vmatprep.subr.bf16.mxu0 0
    %2538 = vmatpush1.bf16.msra.mxu0 %v2515
    %2539 = vmatprep.subr.bf16.mxu0 0
    %2540 = vmatpush1.bf16.msra.mxu0 %v2516
    %2541 = vmatprep.subr.bf16.mxu0 0
    %2542 = vmatpush1.bf16.msra.mxu0 0
    %2543 = vmatprep.subr.bf16.mxu0 0
    %2544 = vmatpush1.bf16.msra.mxu0 0
    %2545 = vmatprep.subr.bf16.mxu0 0
    %2546 = vmatpush1.bf16.msra.mxu0 0
    %2547 = vmatprep.subr.bf16.mxu0 0
    %2548 = vmatpush1.bf16.msra.mxu0 0
    %2549 = vmatprep.subr.bf16.mxu0 0
    %2550 = vmatpush1.bf16.msra.mxu0 0
    %2551 = vmatprep.subr.bf16.mxu0 0
    %2552 = vmatpush1.bf16.msra.mxu0 0
    %2553 = vmatprep.subr.bf16.mxu0 0
    %2554 = vmatpush1.bf16.msra.mxu0 0
    %2555 = vmatprep.subr.bf16.mxu0 0
    %2556 = vmatpush1.bf16.msra.mxu0 0
    %2557 = vmatprep.mubr.bf16.mxu0 0
    %2558 = vmatmul.mubr.bf16.gmra.mrb[0].mxu0 %v2454
    %v2559 = vpop.f32.mrb[0].mxu0
    %v2560 = vadd.f32 %v2476, %v2559
    %v2561 = vpop.f32.mrb[0].mxu0
    %v2562 = vpop.f32.mrb[0].mxu0
    %v2563 = vadd.f32 %v2476, %v2562
    %v2564 = vpop.f32.mrb[0].mxu0
    %2565 = vdwg.mxu0
    %v2566 = vadd.f32 %v2364, %v2560
    %v2567 = vadd.f32 %v2365, %v2563
    %v2568 = vld [vmem:[%s2256 + $0x4] sm:$0x1]
    %v2569 = vld [vmem:[%s2256 + $0x5] sm:$0x1]
    %v2570 = vmul.f32 %v2566, %v2566
    %v2571 = vmul.f32 %v2567, %v2567
    %v2572 = vsel %vm51, %v2566, 0.0
    %2573 = vadd.xlane.f32.xlu0 %v2572
    %v2574 = vpop.xlane.xlu0 %2573
    %v2575 = vsel %vm51, %v2567, 0.0
    %2576 = vadd.xlane.f32.xlu0 %v2575
    %v2577 = vpop.xlane.xlu0 %2576
    %v2578 = vsel %vm51, %v2570, 0.0
    %2579 = vadd.xlane.f32.xlu0 %v2578
    %v2580 = vpop.xlane.xlu0 %2579
    %v2581 = vsel %vm51, %v2571, 0.0
    %2582 = vadd.xlane.f32.xlu0 %v2581
    %v2583 = vpop.xlane.xlu0 %2582
    %v2584 = vmul.f32 %v2574, 0.03125
    %v2585 = vmul.f32 %v2577, 0.03125
    %v2586 = vmul.f32 %v2580, 0.03125
    %v2587 = vmul.f32 %v2583, 0.03125
    %v2588 = vmul.f32 %v2584, %v2584
    %v2589 = vmul.f32 %v2585, %v2585
    %v2590 = vsub.f32 %v2586, %v2588
    %v2591 = vsub.f32 %v2587, %v2589
    %v2592 = vmax.f32 %v2590, 0.0
    %v2593 = vmax.f32 %v2591, 0.0
    %v2594 = vsub.f32 %v2566, %v2584
    %v2595 = vsub.f32 %v2567, %v2585
    %v2596 = vadd.f32 %v2592, 1e-12
    %v2597 = vadd.f32 %v2593, 1e-12
    %v2598 = vrsqrt.pop %v2596
    %v2599 = vrsqrt.pop %v2597
    %v2600 = vmul.f32 %v2594, %v2598
    %v2601 = vmul.f32 %v2595, %v2599
    %v2602 = vlaneseq
    %v2603 = vshrl.u32 %v2602, 7
    %v2604 = vsub.s32 0, %v2603
    %v2605 = vrot.slane %v2568, %v2604
    %v2606 = vmul.f32 %v2600, %v2605
    %v2607 = vmul.f32 %v2601, %v2605
    %v2608 = vlaneseq
    %v2609 = vshrl.u32 %v2608, 7
    %v2610 = vsub.s32 0, %v2609
    %v2611 = vrot.slane %v2569, %v2610
    %v2612 = vadd.f32 %v2606, %v2611
    %v2613 = vadd.f32 %v2607, %v2611
    %v2615 = vrot.slane %v2613, 7
    %vm2617 = vcmask 1040384
    %v2618 = vsel %vm2617, %v2612, %v2615
    %v2619 = vpack.c.bf16 %v2618, %v2618
    %v2620 = vld [vmem:[%s10] sm:$0xf]
    %v2621 = vld [vmem:[%s10 + $0x4] sm:$0xf]
    %v2622 = vld [vmem:[%s10 + $0x8] sm:$0xf]
    %v2623 = vld [vmem:[%s10 + $0xc] sm:$0xf]
    %v2624 = vld [vmem:[%s11] sm:$0x1]
    %v2626 = vlaneseq
    %v2627 = vshrl.u32 %v2626, 7
    %v2628 = vsub.s32 0, %v2627
    %v2629 = vrot.slane %v2624, %v2628
    %v2635 = vunpack.c.l.b16 %v2620
    %v2636 = vunpack.c.l.b16 %v2621
    %v2637 = vunpack.c.l.b16 %v2622
    %v2638 = vunpack.c.l.b16 %v2623
    %v2639 = vpack.c.b16 %v2636, %v2635
    %v2640 = vpack.c.b16 %v2638, %v2637
    %v2644 = vsel %vm51, %v2619, 0
    %2646 = vmatprep.subr.bf16.mxu0 0
    %2647 = vmatpush1.bf16.msra.mxu0 %v2639
    %2648 = vmatprep.subr.bf16.mxu0 0
    %2649 = vmatpush1.bf16.msra.mxu0 %v2640
    %2650 = vmatprep.subr.bf16.mxu0 0
    %2651 = vmatpush1.bf16.msra.mxu0 0
    %2652 = vmatprep.subr.bf16.mxu0 0
    %2653 = vmatpush1.bf16.msra.mxu0 0
    %2654 = vmatprep.subr.bf16.mxu0 0
    %2655 = vmatpush1.bf16.msra.mxu0 0
    %2656 = vmatprep.subr.bf16.mxu0 0
    %2657 = vmatpush1.bf16.msra.mxu0 0
    %2658 = vmatprep.subr.bf16.mxu0 0
    %2659 = vmatpush1.bf16.msra.mxu0 0
    %2660 = vmatprep.subr.bf16.mxu0 0
    %2661 = vmatpush1.bf16.msra.mxu0 0
    %2662 = vmatprep.subr.bf16.mxu0 0
    %2663 = vmatpush1.bf16.msra.mxu0 0
    %2664 = vmatprep.subr.bf16.mxu0 0
    %2665 = vmatpush1.bf16.msra.mxu0 0
    %2666 = vmatprep.subr.bf16.mxu0 0
    %2667 = vmatpush1.bf16.msra.mxu0 0
    %2668 = vmatprep.subr.bf16.mxu0 0
    %2669 = vmatpush1.bf16.msra.mxu0 0
    %2670 = vmatprep.subr.bf16.mxu0 0
    %2671 = vmatpush1.bf16.msra.mxu0 0
    %2672 = vmatprep.subr.bf16.mxu0 0
    %2673 = vmatpush1.bf16.msra.mxu0 0
    %2674 = vmatprep.subr.bf16.mxu0 0
    %2675 = vmatpush1.bf16.msra.mxu0 0
    %2676 = vmatprep.subr.bf16.mxu0 0
    %2677 = vmatpush1.bf16.msra.mxu0 0
    %2678 = vmatprep.mubr.bf16.mxu0 0
    %2679 = vmatmul.mubr.bf16.gmra.mrb[0].mxu0 %v2644
    %v2680 = vpop.f32.mrb[0].mxu0
    %v2681 = vadd.f32 %v2629, %v2680
    %v2682 = vpop.f32.mrb[0].mxu0
    %v2683 = vpop.f32.mrb[0].mxu0
    %v2684 = vpop.f32.mrb[0].mxu0
    %2685 = vdwg.mxu0
    %vm2686 = vcmask 9216
    %v2687 = vsel %vm2686, %v2681, -inf
    %2688 = vmax.xlane.f32.xlu0 %v2687
    %v2689 = vpop.xlane.xlu0 %2688
    %v2690 = vsub.f32 %v2681, %v2689
    %v2691 = vmul.f32 %v2690, 1.442695
    %v2692 = vpow.pop %v2691
    %v2693 = vsel %vm2686, %v2692, 0.0
    %2694 = vadd.xlane.f32.xlu0 %v2693
    %v2695 = vpop.xlane.xlu0 %2694
    %v2696 = vlog2.pop %v2695
    %v2697 = vmul.f32 %v2696, 0.6931472
    %v2698 = vsub.f32 %v2690, %v2697
    %2699 = vst.msk [vmem:[#allocation2] sm:$0x3] %vm2686, %v2698
    // Predicated region
    $region50: #{tpu_custom_call.1} parent=1 // pred_check
      _
    $region51: #{tpu_custom_call.1} parent=1 // pred_check_branch
      %2701 = sbr.rel (0) target = $region53
    $region52: #{tpu_custom_call.1} parent=1 // pred_region
      %s2703 = ssub.s32 32, 32
      %2704 = vsyncadd [#allocation3], %s2703
      %s2706 = sshll.u32 [#allocation2], 4
      %s2707 = int_to_ptr.vmem [resolvable:$true] %s2706
      %2709 = dma.vmem_to_hbm [thread:$0]  %s2707, 32, %s12, [#allocation3]
    $region53: #{tpu_custom_call.1} parent=1 // pred_fallthru
      _
    // Predicated region
    $region54: #{tpu_custom_call.1} parent=1 // pred_check
      _
    $region55: #{tpu_custom_call.1} parent=1 // pred_check_branch
      %2711 = sbr.rel (0) target = $region57
    $region56: #{tpu_custom_call.1} parent=1 // pred_region
      %2712 = dma.done [#allocation3], 32
    $region57: #{tpu_custom_call.1} parent=1 // pred_fallthru
      _
    %2713 = vsyncpa [#allocation3], 1

</llo_original>
